<compile_context>
chip_gen: v6e
topology: v6e:2x2x1
jax: 0.10.0
libtpu: 0.0.40
codegen_flags: <defaults>
</compile_context>

<pallas_src>
import functools
import math

import numpy as np
import jax
import jax.numpy as jnp
from jax import lax
from jax.experimental import pallas as pl
from jax.experimental.pallas import tpu as pltpu


def _round_up(x, m):
    return ((x + m - 1) // m) * m


@functools.lru_cache(maxsize=None)
def _vmem_budget_bytes():
    """Per-pallas_call VMEM budget derived from the device, conservative default."""
    cap = 0
    try:
        cap = int(getattr(pltpu.get_tpu_info(), "vmem_capacity_bytes", 0) or 0)
    except Exception:
        cap = 0
    if cap <= 0:
        cap = 64 * 1024 * 1024          # conservative: v7x has 64 MiB / TensorCore
    return int(max(16 * 1024 * 1024,
                   min(cap // 2 - 4 * 1024 * 1024, 96 * 1024 * 1024)))


@functools.lru_cache(maxsize=None)
def _erf_supported():
    """Probe whether lax.erf lowers in Mosaic (exact GELU); fall back to tanh if not."""
    def k(x_ref, o_ref):
        o_ref[...] = lax.erf(x_ref[...])
    try:
        x = jnp.zeros((8, 128), jnp.float32)
        jax.block_until_ready(
            pl.pallas_call(k, out_shape=jax.ShapeDtypeStruct((8, 128), jnp.float32))(x))
        return True
    except Exception:
        return False


def _tm_candidates(M, cap=1024):
    start = min(cap, M)
    start -= start % 8
    cands = [t for t in range(start, 7, -8) if M % t == 0]
    return cands or [M]                 # full-M block is always a legal block shape


def _choose_tiles(M, K, N, activation, has_residual, fuse_ln, xb, ob, budget):
    if activation == 'log_softmax':
        tn_cands = [N]                  # softmax reduction needs the full class dim
    else:
        tn_cands = [t for t in (1024, 512, 256, 128) if N % t == 0] or [N]
    if fuse_ln:
        tk_cands = [K]                  # LN needs complete rows in a single K tile
    else:
        tk_cands = ([K] if K <= 4096 else []) + \
                   [t for t in (2048, 1024, 512, 256, 128) if t < K and K % t == 0]
        tk_cands = tk_cands or [K]
    tm_cands = _tm_candidates(M)

    def est(tm, tk, tn):
        nk = K // tk
        v = 2 * tm * tk * xb            # x, double buffered
        v += 2 * tk * tn * xb           # w
        v += 2 * tn * 4                 # bias
        v += 2 * tm * tn * ob           # output
        if fuse_ln:
            v += 4 * tk * 4             # gamma/beta
            v += 2 * tm * tk * 4        # f32 LN temporaries
        if has_residual:
            v += 2 * tm * tn * xb
        if nk > 1:
            v += tm * tn * 4            # f32 accumulator scratch (single buffered)
        v += 2 * tm * tn * 4            # f32 epilogue temporaries
        return v

    limit = int(budget * 0.8)
    # priority: big tm (cuts weight re-streaming), then nk==1, then big lane-dense tn
    for tm in tm_cands:
        for tk in tk_cands:
            for tn in tn_cands:
                if est(tm, tk, tn) <= limit:
                    return tm, tk, tn
    return tm_cands[-1], tk_cands[-1], tn_cands[-1]


# ----------------------------- Linear (+fused LN / epilogue) ------------------------
@functools.lru_cache(maxsize=None)
def _linear_call(M, K, N, activation, has_residual, fuse_ln, eps,
                 x_dtype_name, out_dtype_name):
    x_dtype = jnp.dtype(x_dtype_name)
    out_dtype = jnp.dtype(out_dtype_name)
    budget = _vmem_budget_bytes()
    tm, tk, tn = _choose_tiles(M, K, N, activation, has_residual, fuse_ln,
                               x_dtype.itemsize, out_dtype.itemsize, budget)
    nk = K // tk
    assert not (fuse_ln and nk != 1)
    use_erf = (activation == 'gelu') and _erf_supported()

    def kernel(*refs):
        x_ref, w_ref, b_ref = refs[0], refs[1], refs[2]
        pos = 3
        if fuse_ln:
            g_ref, bb_ref = refs[3], refs[4]
            pos = 5
        r_ref = None
        if has_residual:
            r_ref = refs[pos]
            pos += 1
        o_ref = refs[pos]
        pos += 1
        acc_ref = refs[pos] if nk > 1 else None

        def epilogue(acc):
            r = acc + b_ref[...]                       # f32 bias
            if activation == 'gelu':
                if use_erf:                            # exact erf GELU (torchvision nn.GELU)
                    r = 0.5 * r * (1.0 + lax.erf(r * (1.0 / math.sqrt(2.0))))
                else:
                    # TODO(synk): tanh fallback only if exact erf is unavailable in Mosaic.
                    c = math.sqrt(2.0 / math.pi)
                    r = 0.5 * r * (1.0 + jnp.tanh(c * (r + 0.044715 * r * r * r)))
            elif activation == 'log_softmax':
                r = r - jnp.max(r, axis=-1, keepdims=True)
                r = r - jnp.log(jnp.sum(jnp.exp(r), axis=-1, keepdims=True))
            if has_residual:
                r = r + r_ref[...].astype(jnp.float32)
            return r.astype(o_ref.dtype)

        if nk == 1:
            # accumulator-free specialization: dot result goes straight to the epilogue
            x = x_ref[...]
            if fuse_ln:
                xf = x.astype(jnp.float32)
                mu = jnp.mean(xf, axis=-1, keepdims=True)
                xc = xf - mu
                var = jnp.mean(xc * xc, axis=-1, keepdims=True)
                xn = xc * lax.rsqrt(var + eps)
                x = (xn * g_ref[...] + bb_ref[...]).astype(x_ref.dtype)
            acc = jnp.dot(x, w_ref[...], preferred_element_type=jnp.float32)
            o_ref[...] = epilogue(acc)
        else:
            k = pl.program_id(2)

            @pl.when(k == 0)
            def _():
                acc_ref[...] = jnp.zeros_like(acc_ref)

            acc_ref[...] += jnp.dot(x_ref[...], w_ref[...],
                                    preferred_element_type=jnp.float32)

            @pl.when(k == nk - 1)
            def _():
                o_ref[...] = epilogue(acc_ref[...])

    if nk == 1:
        grid = (M // tm, N // tn)
        im_x = lambda i, j: (i, 0)
        im_w = lambda i, j: (0, j)
        im_n = lambda i, j: (0, j)
        im_k = lambda i, j: (0, 0)
        im_o = lambda i, j: (i, j)
        dims = ("parallel", "parallel")
        scratch = []
    else:
        grid = (M // tm, N // tn, nk)
        im_x = lambda i, j, k: (i, k)
        im_w = lambda i, j, k: (k, j)
        im_n = lambda i, j, k: (0, j)
        im_k = lambda i, j, k: (0, 0)
        im_o = lambda i, j, k: (i, j)
        dims = ("parallel", "parallel", "arbitrary")
        scratch = [pltpu.VMEM((tm, tn), jnp.float32)]

    in_specs = [pl.BlockSpec((tm, tk), im_x),
                pl.BlockSpec((tk, tn), im_w),
                pl.BlockSpec((1, tn), im_n)]
    if fuse_ln:
        in_specs += [pl.BlockSpec((1, tk), im_k), pl.BlockSpec((1, tk), im_k)]
    if has_residual:
        in_specs.append(pl.BlockSpec((tm, tn), im_o))

    return pl.pallas_call(
        kernel,
        out_shape=jax.ShapeDtypeStruct((M, N), out_dtype),
        grid_spec=pltpu.PrefetchScalarGridSpec(
            num_scalar_prefetch=0,
            grid=grid,
            in_specs=in_specs,
            out_specs=pl.BlockSpec((tm, tn), im_o),
            scratch_shapes=scratch),
        compiler_params=pltpu.CompilerParams(
            dimension_semantics=dims,
            vmem_limit_bytes=int(budget)),
    )


def linear(x, w, b, activation='none', residual=None, ln=None, eps=1e-6, out_dtype=None):
    M, K = x.shape
    N = w.shape[1]
    out_dtype = x.dtype if out_dtype is None else jnp.dtype(out_dtype)
    call = _linear_call(M, K, N, activation, residual is not None, ln is not None,
                        float(eps), str(x.dtype), str(jnp.dtype(out_dtype)))
    args = [x, w, b.reshape(1, N).astype(jnp.float32)]
    if ln is not None:
        g, bb = ln
        args += [g.reshape(1, K).astype(jnp.float32),
                 bb.reshape(1, K).astype(jnp.float32)]
    if residual is not None:
        args.append(residual)
    return call(*args)


# --------------------------------- Multi-head attention -----------------------------
@functools.lru_cache(maxsize=None)
def _attention_call(B, S_pad, S_real, H, dh, dtype_name):
    dtype = jnp.dtype(dtype_name)
    D = H * dh
    # group heads so the BlockSpec last dim is lane-dense (multiple of 128)
    G = 1
    while G <= H and (H % G != 0 or (G * dh) % 128 != 0):
        G += 1
    if G > H:
        G = H
    assert H % G == 0 and (G * dh) % 128 == 0, "head width must tile to 128 lanes"
    bw = G * dh
    nH = H // G
    scale = 1.0 / math.sqrt(dh)

    def kernel(q_ref, k_ref, v_ref, o_ref):
        qb = q_ref[0]                               # (S_pad, bw) bf16
        kb = k_ref[0]
        vb = v_ref[0]
        for g in range(G):                          # static unroll over heads in block
            c0, c1 = g * dh, (g + 1) * dh
            qg = qb[:, c0:c1] * scale               # fold 1/sqrt(dh) into q
            kg = kb[:, c0:c1]
            vg = vb[:, c0:c1]
            s = lax.dot_general(qg, kg, (((1,), (1,)), ((), ())),
                                preferred_element_type=jnp.float32)   # (S_pad, S_pad)
            if S_pad > S_real:                      # mask padded key positions
                kidx = lax.broadcasted_iota(jnp.int32, (1, S_pad), 1)
                s = jnp.where(kidx < S_real, s, -1e30)
            m = jnp.max(s, axis=-1, keepdims=True)
            p = jnp.exp(s - m)
            l = jnp.sum(p, axis=-1, keepdims=True)
            og = jnp.dot(p.astype(vb.dtype), vg, preferred_element_type=jnp.float32)
            og = og * pl.reciprocal(l, approx=True)
            o_ref[0, :, c0:c1] = og.astype(o_ref.dtype)

    blk = (1, S_pad, bw)
    return pl.pallas_call(
        kernel,
        out_shape=jax.ShapeDtypeStruct((B, S_pad, D), dtype),
        grid_spec=pltpu.PrefetchScalarGridSpec(
            num_scalar_prefetch=0,
            grid=(B, nH),
            in_specs=[pl.BlockSpec(blk, lambda b, j: (b, 0, j)),            # q cols
                      pl.BlockSpec(blk, lambda b, j: (b, 0, nH + j)),       # k cols
                      pl.BlockSpec(blk, lambda b, j: (b, 0, 2 * nH + j))],  # v cols
            out_specs=pl.BlockSpec(blk, lambda b, j: (b, 0, j))),
        compiler_params=pltpu.CompilerParams(
            dimension_semantics=("parallel", "parallel")),
    )


def attention(qkv_bsd, H, dh, S_real):
    # qkv_bsd: (B, S_pad, 3*D) laid out as [q | k | v]; same array passed three times,
    # the BlockSpecs pick the q/k/v column groups -> no HBM transposes.
    B, S_pad, _ = qkv_bsd.shape
    return _attention_call(B, S_pad, S_real, H, dh, str(qkv_bsd.dtype))(
        qkv_bsd, qkv_bsd, qkv_bsd)


# ------------------------------------ patch embed -----------------------------------
def patch_embed(x_nchw, w, b, patch):
    # Conv2d(C, D, kernel=stride=patch) == one matmul over K = C*patch*patch.
    N, C, Hh, Ww = x_nchw.shape
    nh, nw = Hh // patch, Ww // patch
    xp = x_nchw.reshape(N, C, nh, patch, nw, patch)
    xp = xp.transpose(0, 2, 4, 1, 3, 5).reshape(N * nh * nw, C * patch * patch)
    y = linear(xp, w, b)
    return y.reshape(N, nh * nw, w.shape[1])


# ------------------------------------- parameters -----------------------------------
def init_params(key, cfg, dtype=jnp.bfloat16):
    # TODO(synk): pretrained ViT_L_16_Weights not loadable here; deterministic random
    # init with the exact same parameter structure/shapes instead.
    C = 3
    P, D, L = cfg['patch_size'], cfg['hidden_dim'], cfg['num_layers']
    Dm, img = cfg['mlp_dim'], cfg['image_size']
    n_classes = cfg['n_classes']
    S = (img // P) ** 2 + 1

    def dense(k, din, dout):
        std = float(1.0 / np.sqrt(din))
        return (jax.random.normal(k, (din, dout), jnp.float32) * std).astype(dtype)

    params = {}
    key, k1, k2, k3 = jax.random.split(key, 4)
    params['conv_w'] = dense(k1, C * P * P, D)
    params['conv_b'] = jnp.zeros((D,), jnp.float32)
    params['class_token'] = (jax.random.normal(k2, (1, 1, D), jnp.float32) * 0.02).astype(dtype)
    params['pos_embedding'] = (jax.random.normal(k3, (1, S, D), jnp.float32) * 0.02).astype(dtype)

    layers = []
    for _ in range(L):
        key, ka, kb, kc, kd = jax.random.split(key, 5)
        layers.append({
            'ln1_g': jnp.ones((D,), jnp.float32), 'ln1_b': jnp.zeros((D,), jnp.float32),
            'qkv_w': dense(ka, D, 3 * D), 'qkv_b': jnp.zeros((3 * D,), jnp.float32),
            'out_w': dense(kb, D, D), 'out_b': jnp.zeros((D,), jnp.float32),
            'ln2_g': jnp.ones((D,), jnp.float32), 'ln2_b': jnp.zeros((D,), jnp.float32),
            'mlp1_w': dense(kc, D, Dm), 'mlp1_b': jnp.zeros((Dm,), jnp.float32),
            'mlp2_w': dense(kd, Dm, D), 'mlp2_b': jnp.zeros((D,), jnp.float32),
        })
    params['layers'] = layers
    params['ln_g'] = jnp.ones((D,), jnp.float32)
    params['ln_b'] = jnp.zeros((D,), jnp.float32)

    # prediction head, padded to a lane-dense 128-wide output; padded logits get a
    # -1e9 bias so they vanish inside the fused log_softmax.
    NP = _round_up(n_classes, 128)
    key, kh = jax.random.split(key)
    hw = jax.random.normal(kh, (D, n_classes), jnp.float32) * float(1.0 / np.sqrt(D))
    params['head_w'] = jnp.pad(hw, ((0, 0), (0, NP - n_classes))).astype(dtype)
    params['head_b'] = jnp.zeros((NP,), jnp.float32).at[n_classes:].set(-1e9)
    return params


# -------------------------------------- forward -------------------------------------
def make_forward(cfg):
    P, D, H = cfg['patch_size'], cfg['hidden_dim'], cfg['num_heads']
    dh = D // H
    n_classes = cfg['n_classes']

    def forward(x_nchw, params):
        cd = params['conv_w'].dtype
        B = x_nchw.shape[0]
        x = x_nchw.astype(cd)
        tok = patch_embed(x, params['conv_w'], params['conv_b'], P)      # (B, np, D)
        cls = jnp.broadcast_to(params['class_token'].astype(cd), (B, 1, D))
        seq = jnp.concatenate([cls, tok], axis=1)                        # (B, S, D)
        seq = seq + params['pos_embedding'].astype(cd)
        S_real = seq.shape[1]
        S_pad = _round_up(S_real, 8)        # pad tokens; padded keys are masked in attn
        if S_pad != S_real:
            seq = jnp.pad(seq, ((0, 0), (0, S_pad - S_real), (0, 0)))
        M = B * S_pad
        h = seq.reshape(M, D)
        # TODO(synk): encoder/attention dropout treated as identity (inference semantics).
        # TODO(synk): residual stream carried in bf16; use f32 if strict parity is needed.
        for lyr in params['layers']:
            qkv = linear(h, lyr['qkv_w'], lyr['qkv_b'],
                         ln=(lyr['ln1_g'], lyr['ln1_b']))                # LN1 fused
            attn = attention(qkv.reshape(B, S_pad, 3 * D), H, dh, S_real)  # (B, S_pad, D)
            h = linear(attn.reshape(M, D), lyr['out_w'], lyr['out_b'],
                       residual=h)                                       # +residual fused
            y = linear(h, lyr['mlp1_w'], lyr['mlp1_b'], activation='gelu',
                       ln=(lyr['ln2_g'], lyr['ln2_b']))                  # LN2 + GELU fused
            h = linear(y, lyr['mlp2_w'], lyr['mlp2_b'], residual=h)      # +residual fused
        cls_tok = h.reshape(B, S_pad, D)[:, 0, :]                        # heads = Identity
        logits = linear(cls_tok, params['head_w'], params['head_b'],
                        activation='log_softmax',
                        ln=(params['ln_g'], params['ln_b']),             # final LN fused
                        out_dtype=jnp.float32)
        return logits[:, :n_classes]

    return forward


if __name__ == "__main__":
    # Small config for a fast smoke test; real ViT-L/16 is image=224, patch=16,
    # hidden=1024, 24 layers, 16 heads, mlp=4096 — same kernels, bigger dims.
    cfg = dict(image_size=32, patch_size=16, hidden_dim=256, num_layers=2,
               num_heads=4, mlp_dim=512, n_classes=10)

    key = jax.random.PRNGKey(0)
    kx, kp = jax.random.split(key)
    x = jax.random.normal(kx, (2, 3, cfg['image_size'], cfg['image_size']), jnp.float32)
    params = init_params(kp, cfg)

    fwd = jax.jit(make_forward(cfg))
    out = jax.block_until_ready(fwd(x, params))

    assert out.shape == (2, cfg['n_classes']), out.shape
    assert bool(jnp.all(jnp.isfinite(out)))
    # rows of log_softmax must exp-sum to 1
    assert bool(jnp.allclose(jnp.sum(jnp.exp(out), axis=1), 1.0, atol=1e-3))
    print("KERNEL_OK")
</pallas_src>

<mosaic_0001>
module attributes {stable_mosaic.version = 11 : i64} {
  func.func @kernel(%arg0: i32, %arg1: i32, %arg2: memref<1x8x128xbf16, #tpu.memory_space<vmem>>, %arg3: memref<1x8x128xbf16, #tpu.memory_space<vmem>>, %arg4: memref<1x8x128xbf16, #tpu.memory_space<vmem>>, %arg5: memref<1x8x128xbf16, #tpu.memory_space<vmem>>) attributes {dimension_semantics = [#tpu.dimension_semantics<parallel>, #tpu.dimension_semantics<parallel>], iteration_bounds = array<i64: 2, 2>, scalar_prefetch = 0 : i64, scratch_operands = 0 : i64, tpu.core_type = #tpu.core_type<tc>, window_params = [{transform_indices = @transform_0, window_bounds = array<i64: 1, 8, 128>}, {transform_indices = @transform_1, window_bounds = array<i64: 1, 8, 128>}, {transform_indices = @transform_2, window_bounds = array<i64: 1, 8, 128>}, {transform_indices = @transform_3, window_bounds = array<i64: 1, 8, 128>}]} {
    %c0 = arith.constant 0 : index
    %c0_0 = arith.constant 0 : index
    %c0_1 = arith.constant 0 : index
    %0 = vector.load %arg2[%c0, %c0_0, %c0_1] : memref<1x8x128xbf16, #tpu.memory_space<vmem>>, vector<1x8x128xbf16>
    %1 = vector.shape_cast %0 : vector<1x8x128xbf16> to vector<8x128xbf16>
    %c0_2 = arith.constant 0 : index
    %c0_3 = arith.constant 0 : index
    %c0_4 = arith.constant 0 : index
    %2 = vector.load %arg3[%c0_2, %c0_3, %c0_4] : memref<1x8x128xbf16, #tpu.memory_space<vmem>>, vector<1x8x128xbf16>
    %3 = vector.shape_cast %2 : vector<1x8x128xbf16> to vector<8x128xbf16>
    %c0_5 = arith.constant 0 : index
    %c0_6 = arith.constant 0 : index
    %c0_7 = arith.constant 0 : index
    %4 = vector.load %arg4[%c0_5, %c0_6, %c0_7] : memref<1x8x128xbf16, #tpu.memory_space<vmem>>, vector<1x8x128xbf16>
    %5 = vector.shape_cast %4 : vector<1x8x128xbf16> to vector<8x128xbf16>
    %6 = vector.extract_strided_slice %1 {offsets = [0, 0], sizes = [8, 64], strides = [1, 1]} : vector<8x128xbf16> to vector<8x64xbf16>
    %cst = arith.constant 1.250000e-01 : bf16
    %7 = vector.broadcast %cst : bf16 to vector<8x64xbf16>
    %8 = arith.mulf %6, %7 : vector<8x64xbf16>
    %9 = vector.extract_strided_slice %3 {offsets = [0, 0], sizes = [8, 64], strides = [1, 1]} : vector<8x128xbf16> to vector<8x64xbf16>
    %10 = vector.extract_strided_slice %5 {offsets = [0, 0], sizes = [8, 64], strides = [1, 1]} : vector<8x128xbf16> to vector<8x64xbf16>
    %cst_8 = arith.constant dense<0.000000e+00> : vector<8x8xf32>
    %11 = tpu.matmul %8, %9, %cst_8 {dimension_numbers = #tpu.dot_dimension_numbers<[1], [1], [0], [0], [0, 0, 1, 0], [], []>} : vector<8x64xbf16>, vector<8x64xbf16>, vector<8x8xf32> -> vector<8x8xf32>
    %12 = tpu.iota {dimensions = array<i32: 1>} : vector<1x8xi32>
    %c5_i32 = arith.constant 5 : i32
    %13 = vector.broadcast %c5_i32 : i32 to vector<1x8xi32>
    %14 = arith.cmpi slt, %12, %13 : vector<1x8xi32>
    %cst_9 = arith.constant -1.000000e+30 : f32
    %15 = vector.shape_cast %14 : vector<1x8xi1> to vector<1x8xi1>
    %16 = vector.broadcast %15 : vector<1x8xi1> to vector<8x8xi1>
    %17 = vector.broadcast %cst_9 : f32 to vector<8x8xf32>
    %18 = arith.select %16, %11, %17 : vector<8x8xi1>, vector<8x8xf32>
    %cst_10 = arith.constant dense<0xFF800000> : vector<8xf32>
    %19 = vector.multi_reduction <maximumf>, %18, %cst_10 [1] : vector<8x8xf32> to vector<8xf32>
    %20 = vector.shape_cast %19 : vector<8xf32> to vector<8x1xf32>
    %21 = vector.broadcast %20 : vector<8x1xf32> to vector<8x8xf32>
    %22 = arith.subf %18, %21 : vector<8x8xf32>
    %23 = math.exp %22 : vector<8x8xf32>
    %cst_11 = arith.constant dense<0.000000e+00> : vector<8xf32>
    %24 = vector.multi_reduction <add>, %23, %cst_11 [1] : vector<8x8xf32> to vector<8xf32>
    %25 = vector.shape_cast %24 : vector<8xf32> to vector<8x1xf32>
    %26 = arith.truncf %23 : vector<8x8xf32> to vector<8x8xbf16>
    %cst_12 = arith.constant dense<0.000000e+00> : vector<8x64xf32>
    %27 = tpu.matmul %26, %10, %cst_12 {dimension_numbers = #tpu.dot_dimension_numbers<[1], [0], [0], [1], [0, 0, 1, 1], [], []>} : vector<8x8xbf16>, vector<8x64xbf16>, vector<8x64xf32> -> vector<8x64xf32>
    %28 = tpu.reciprocal %25 {approx = true} : vector<8x1xf32> -> vector<8x1xf32>
    %29 = vector.broadcast %28 : vector<8x1xf32> to vector<8x64xf32>
    %30 = arith.mulf %27, %29 : vector<8x64xf32>
    %31 = arith.truncf %30 : vector<8x64xf32> to vector<8x64xbf16>
    %c0_13 = arith.constant 0 : index
    %c0_14 = arith.constant 0 : index
    %c0_15 = arith.constant 0 : index
    %32 = vector.load %arg5[%c0_13, %c0_14, %c0_15] : memref<1x8x128xbf16, #tpu.memory_space<vmem>>, vector<1x8x64xbf16>
    %33 = vector.shape_cast %32 : vector<1x8x64xbf16> to vector<8x64xbf16>
    %34 = vector.shape_cast %31 : vector<8x64xbf16> to vector<1x8x64xbf16>
    tpu.vector_store %arg5[%c0_13, %c0_14, %c0_15], %34 {strides = array<i32>} : memref<1x8x128xbf16, #tpu.memory_space<vmem>>, vector<1x8x64xbf16>,
    %35 = vector.extract_strided_slice %1 {offsets = [0, 64], sizes = [8, 64], strides = [1, 1]} : vector<8x128xbf16> to vector<8x64xbf16>
    %cst_16 = arith.constant 1.250000e-01 : bf16
    %36 = vector.broadcast %cst_16 : bf16 to vector<8x64xbf16>
    %37 = arith.mulf %35, %36 : vector<8x64xbf16>
    %38 = vector.extract_strided_slice %3 {offsets = [0, 64], sizes = [8, 64], strides = [1, 1]} : vector<8x128xbf16> to vector<8x64xbf16>
    %39 = vector.extract_strided_slice %5 {offsets = [0, 64], sizes = [8, 64], strides = [1, 1]} : vector<8x128xbf16> to vector<8x64xbf16>
    %cst_17 = arith.constant dense<0.000000e+00> : vector<8x8xf32>
    %40 = tpu.matmul %37, %38, %cst_17 {dimension_numbers = #tpu.dot_dimension_numbers<[1], [1], [0], [0], [0, 0, 1, 0], [], []>} : vector<8x64xbf16>, vector<8x64xbf16>, vector<8x8xf32> -> vector<8x8xf32>
    %41 = tpu.iota {dimensions = array<i32: 1>} : vector<1x8xi32>
    %c5_i32_18 = arith.constant 5 : i32
    %42 = vector.broadcast %c5_i32_18 : i32 to vector<1x8xi32>
    %43 = arith.cmpi slt, %41, %42 : vector<1x8xi32>
    %cst_19 = arith.constant -1.000000e+30 : f32
    %44 = vector.shape_cast %43 : vector<1x8xi1> to vector<1x8xi1>
    %45 = vector.broadcast %44 : vector<1x8xi1> to vector<8x8xi1>
    %46 = vector.broadcast %cst_19 : f32 to vector<8x8xf32>
    %47 = arith.select %45, %40, %46 : vector<8x8xi1>, vector<8x8xf32>
    %cst_20 = arith.constant dense<0xFF800000> : vector<8xf32>
    %48 = vector.multi_reduction <maximumf>, %47, %cst_20 [1] : vector<8x8xf32> to vector<8xf32>
    %49 = vector.shape_cast %48 : vector<8xf32> to vector<8x1xf32>
    %50 = vector.broadcast %49 : vector<8x1xf32> to vector<8x8xf32>
    %51 = arith.subf %47, %50 : vector<8x8xf32>
    %52 = math.exp %51 : vector<8x8xf32>
    %cst_21 = arith.constant dense<0.000000e+00> : vector<8xf32>
    %53 = vector.multi_reduction <add>, %52, %cst_21 [1] : vector<8x8xf32> to vector<8xf32>
    %54 = vector.shape_cast %53 : vector<8xf32> to vector<8x1xf32>
    %55 = arith.truncf %52 : vector<8x8xf32> to vector<8x8xbf16>
    %cst_22 = arith.constant dense<0.000000e+00> : vector<8x64xf32>
    %56 = tpu.matmul %55, %39, %cst_22 {dimension_numbers = #tpu.dot_dimension_numbers<[1], [0], [0], [1], [0, 0, 1, 1], [], []>} : vector<8x8xbf16>, vector<8x64xbf16>, vector<8x64xf32> -> vector<8x64xf32>
    %57 = tpu.reciprocal %54 {approx = true} : vector<8x1xf32> -> vector<8x1xf32>
    %58 = vector.broadcast %57 : vector<8x1xf32> to vector<8x64xf32>
    %59 = arith.mulf %56, %58 : vector<8x64xf32>
    %60 = arith.truncf %59 : vector<8x64xf32> to vector<8x64xbf16>
    %c0_23 = arith.constant 0 : index
    %c0_24 = arith.constant 0 : index
    %c64 = arith.constant 64 : index
    %61 = vector.load %arg5[%c0_23, %c0_24, %c64] : memref<1x8x128xbf16, #tpu.memory_space<vmem>>, vector<1x8x64xbf16>
    %62 = vector.shape_cast %61 : vector<1x8x64xbf16> to vector<8x64xbf16>
    %63 = vector.shape_cast %60 : vector<8x64xbf16> to vector<1x8x64xbf16>
    tpu.vector_store %arg5[%c0_23, %c0_24, %c64], %63 {strides = array<i32>} : memref<1x8x128xbf16, #tpu.memory_space<vmem>>, vector<1x8x64xbf16>,
    return
  }
  func.func @transform_0(%arg0: i32, %arg1: i32) -> (i32, i32, i32) {
    %c0_i32 = arith.constant 0 : i32
    %c0_i32_0 = arith.constant 0 : i32
    return %arg0, %c0_i32, %arg1 : i32, i32, i32
  }
  func.func @transform_1(%arg0: i32, %arg1: i32) -> (i32, i32, i32) {
    %c2_i32 = arith.constant 2 : i32
    %0 = arith.addi %c2_i32, %arg1 : i32
    %c0_i32 = arith.constant 0 : i32
    %c0_i32_0 = arith.constant 0 : i32
    return %arg0, %c0_i32, %0 : i32, i32, i32
  }
  func.func @transform_2(%arg0: i32, %arg1: i32) -> (i32, i32, i32) {
    %c4_i32 = arith.constant 4 : i32
    %0 = arith.addi %c4_i32, %arg1 : i32
    %c0_i32 = arith.constant 0 : i32
    %c0_i32_0 = arith.constant 0 : i32
    return %arg0, %c0_i32, %0 : i32, i32, i32
  }
  func.func @transform_3(%arg0: i32, %arg1: i32) -> (i32, i32, i32) {
    %c0_i32 = arith.constant 0 : i32
    %c0_i32_0 = arith.constant 0 : i32
    return %arg0, %c0_i32, %arg1 : i32, i32, i32
  }
}

module attributes {stable_mosaic.version = 11 : i64} {
  func.func @kernel(%arg0: i32, %arg1: i32, %arg2: memref<8x768xbf16, #tpu.memory_space<vmem>>, %arg3: memref<768x256xbf16, #tpu.memory_space<vmem>>, %arg4: memref<1x256xf32, #tpu.memory_space<vmem>>, %arg5: memref<8x256xbf16, #tpu.memory_space<vmem>>) attributes {dimension_semantics = [#tpu.dimension_semantics<parallel>, #tpu.dimension_semantics<parallel>], iteration_bounds = array<i64: 1, 1>, scalar_prefetch = 0 : i64, scratch_operands = 0 : i64, tpu.core_type = #tpu.core_type<tc>, window_params = [{transform_indices = @transform_0, window_bounds = array<i64: 8, 768>}, {transform_indices = @transform_1, window_bounds = array<i64: 768, 256>}, {transform_indices = @transform_2, window_bounds = array<i64: 1, 256>}, {transform_indices = @transform_3, window_bounds = array<i64: 8, 256>}]} {
    %c0 = arith.constant 0 : index
    %c0_0 = arith.constant 0 : index
    %0 = vector.load %arg2[%c0, %c0_0] : memref<8x768xbf16, #tpu.memory_space<vmem>>, vector<8x768xbf16>
    %c0_1 = arith.constant 0 : index
    %c0_2 = arith.constant 0 : index
    %1 = vector.load %arg3[%c0_1, %c0_2] : memref<768x256xbf16, #tpu.memory_space<vmem>>, vector<768x256xbf16>
    %cst = arith.constant dense<0.000000e+00> : vector<8x256xf32>
    %2 = tpu.matmul %0, %1, %cst {dimension_numbers = #tpu.dot_dimension_numbers<[1], [0], [0], [1], [0, 0, 1, 1], [], []>} : vector<8x768xbf16>, vector<768x256xbf16>, vector<8x256xf32> -> vector<8x256xf32>
    %c0_3 = arith.constant 0 : index
    %c0_4 = arith.constant 0 : index
    %3 = vector.load %arg4[%c0_3, %c0_4] : memref<1x256xf32, #tpu.memory_space<vmem>>, vector<1x256xf32>
    %4 = vector.broadcast %3 : vector<1x256xf32> to vector<8x256xf32>
    %5 = arith.addf %2, %4 : vector<8x256xf32>
    %6 = arith.truncf %5 : vector<8x256xf32> to vector<8x256xbf16>
    %c0_5 = arith.constant 0 : index
    %c0_6 = arith.constant 0 : index
    %7 = vector.load %arg5[%c0_5, %c0_6] : memref<8x256xbf16, #tpu.memory_space<vmem>>, vector<8x256xbf16>
    tpu.vector_store %arg5[%c0_5, %c0_6], %6 {strides = array<i32>} : memref<8x256xbf16, #tpu.memory_space<vmem>>, vector<8x256xbf16>,
    return
  }
  func.func @transform_0(%arg0: i32, %arg1: i32) -> (i32, i32) {
    %c0_i32 = arith.constant 0 : i32
    %c0_i32_0 = arith.constant 0 : i32
    return %arg0, %c0_i32 : i32, i32
  }
  func.func @transform_1(%arg0: i32, %arg1: i32) -> (i32, i32) {
    %c0_i32 = arith.constant 0 : i32
    %c0_i32_0 = arith.constant 0 : i32
    return %c0_i32, %arg1 : i32, i32
  }
  func.func @transform_2(%arg0: i32, %arg1: i32) -> (i32, i32) {
    %c0_i32 = arith.constant 0 : i32
    %c0_i32_0 = arith.constant 0 : i32
    return %c0_i32, %arg1 : i32, i32
  }
  func.func @transform_3(%arg0: i32, %arg1: i32) -> (i32, i32) {
    %c0_i32 = arith.constant 0 : i32
    return %arg0, %arg1 : i32, i32
  }
}

module attributes {stable_mosaic.version = 11 : i64} {
  func.func @kernel(%arg0: i32, %arg1: i32, %arg2: memref<16x256xbf16, #tpu.memory_space<vmem>>, %arg3: memref<256x256xbf16, #tpu.memory_space<vmem>>, %arg4: memref<1x256xf32, #tpu.memory_space<vmem>>, %arg5: memref<16x256xbf16, #tpu.memory_space<vmem>>, %arg6: memref<16x256xbf16, #tpu.memory_space<vmem>>) attributes {dimension_semantics = [#tpu.dimension_semantics<parallel>, #tpu.dimension_semantics<parallel>], iteration_bounds = array<i64: 1, 1>, scalar_prefetch = 0 : i64, scratch_operands = 0 : i64, tpu.core_type = #tpu.core_type<tc>, window_params = [{transform_indices = @transform_0, window_bounds = array<i64: 16, 256>}, {transform_indices = @transform_1, window_bounds = array<i64: 256, 256>}, {transform_indices = @transform_2, window_bounds = array<i64: 1, 256>}, {transform_indices = @transform_3, window_bounds = array<i64: 16, 256>}, {transform_indices = @transform_4, window_bounds = array<i64: 16, 256>}]} {
    %c0 = arith.constant 0 : index
    %c0_0 = arith.constant 0 : index
    %0 = vector.load %arg2[%c0, %c0_0] : memref<16x256xbf16, #tpu.memory_space<vmem>>, vector<16x256xbf16>
    %c0_1 = arith.constant 0 : index
    %c0_2 = arith.constant 0 : index
    %1 = vector.load %arg3[%c0_1, %c0_2] : memref<256x256xbf16, #tpu.memory_space<vmem>>, vector<256x256xbf16>
    %cst = arith.constant dense<0.000000e+00> : vector<16x256xf32>
    %2 = tpu.matmul %0, %1, %cst {dimension_numbers = #tpu.dot_dimension_numbers<[1], [0], [0], [1], [0, 0, 1, 1], [], []>} : vector<16x256xbf16>, vector<256x256xbf16>, vector<16x256xf32> -> vector<16x256xf32>
    %c0_3 = arith.constant 0 : index
    %c0_4 = arith.constant 0 : index
    %3 = vector.load %arg4[%c0_3, %c0_4] : memref<1x256xf32, #tpu.memory_space<vmem>>, vector<1x256xf32>
    %4 = vector.broadcast %3 : vector<1x256xf32> to vector<16x256xf32>
    %5 = arith.addf %2, %4 : vector<16x256xf32>
    %c0_5 = arith.constant 0 : index
    %c0_6 = arith.constant 0 : index
    %6 = vector.load %arg5[%c0_5, %c0_6] : memref<16x256xbf16, #tpu.memory_space<vmem>>, vector<16x256xbf16>
    %7 = arith.extf %6 : vector<16x256xbf16> to vector<16x256xf32>
    %8 = arith.addf %5, %7 : vector<16x256xf32>
    %9 = arith.truncf %8 : vector<16x256xf32> to vector<16x256xbf16>
    %c0_7 = arith.constant 0 : index
    %c0_8 = arith.constant 0 : index
    %10 = vector.load %arg6[%c0_7, %c0_8] : memref<16x256xbf16, #tpu.memory_space<vmem>>, vector<16x256xbf16>
    tpu.vector_store %arg6[%c0_7, %c0_8], %9 {strides = array<i32>} : memref<16x256xbf16, #tpu.memory_space<vmem>>, vector<16x256xbf16>,
    return
  }
  func.func @transform_0(%arg0: i32, %arg1: i32) -> (i32, i32) {
    %c0_i32 = arith.constant 0 : i32
    %c0_i32_0 = arith.constant 0 : i32
    return %arg0, %c0_i32 : i32, i32
  }
  func.func @transform_1(%arg0: i32, %arg1: i32) -> (i32, i32) {
    %c0_i32 = arith.constant 0 : i32
    %c0_i32_0 = arith.constant 0 : i32
    return %c0_i32, %arg1 : i32, i32
  }
  func.func @transform_2(%arg0: i32, %arg1: i32) -> (i32, i32) {
    %c0_i32 = arith.constant 0 : i32
    %c0_i32_0 = arith.constant 0 : i32
    return %c0_i32, %arg1 : i32, i32
  }
  func.func @transform_3(%arg0: i32, %arg1: i32) -> (i32, i32) {
    %c0_i32 = arith.constant 0 : i32
    return %arg0, %arg1 : i32, i32
  }
  func.func @transform_4(%arg0: i32, %arg1: i32) -> (i32, i32) {
    %c0_i32 = arith.constant 0 : i32
    return %arg0, %arg1 : i32, i32
  }
}

module attributes {stable_mosaic.version = 11 : i64} {
  func.func @kernel(%arg0: i32, %arg1: i32, %arg2: memref<16x256xbf16, #tpu.memory_space<vmem>>, %arg3: memref<256x256xbf16, #tpu.memory_space<vmem>>, %arg4: memref<1x256xf32, #tpu.memory_space<vmem>>, %arg5: memref<1x256xf32, #tpu.memory_space<vmem>>, %arg6: memref<1x256xf32, #tpu.memory_space<vmem>>, %arg7: memref<16x256xbf16, #tpu.memory_space<vmem>>) attributes {dimension_semantics = [#tpu.dimension_semantics<parallel>, #tpu.dimension_semantics<parallel>], iteration_bounds = array<i64: 1, 3>, scalar_prefetch = 0 : i64, scratch_operands = 0 : i64, tpu.core_type = #tpu.core_type<tc>, window_params = [{transform_indices = @transform_0, window_bounds = array<i64: 16, 256>}, {transform_indices = @transform_1, window_bounds = array<i64: 256, 256>}, {transform_indices = @transform_2, window_bounds = array<i64: 1, 256>}, {pipeline_mode = #tpu.pipeline_mode<synchronous>, transform_indices = @transform_3, window_bounds = array<i64: 1, 256>}, {pipeline_mode = #tpu.pipeline_mode<synchronous>, transform_indices = @transform_4, window_bounds = array<i64: 1, 256>}, {transform_indices = @transform_5, window_bounds = array<i64: 16, 256>}]} {
    %c0 = arith.constant 0 : index
    %c0_0 = arith.constant 0 : index
    %0 = vector.load %arg2[%c0, %c0_0] : memref<16x256xbf16, #tpu.memory_space<vmem>>, vector<16x256xbf16>
    %1 = arith.extf %0 : vector<16x256xbf16> to vector<16x256xf32>
    %cst = arith.constant dense<0.000000e+00> : vector<16xf32>
    %2 = vector.multi_reduction <add>, %1, %cst [1] : vector<16x256xf32> to vector<16xf32>
    %3 = vector.shape_cast %2 : vector<16xf32> to vector<16x1xf32>
    %cst_1 = arith.constant 2.560000e+02 : f32
    %4 = vector.broadcast %cst_1 : f32 to vector<16x1xf32>
    %5 = arith.divf %3, %4 : vector<16x1xf32>
    %6 = vector.broadcast %5 : vector<16x1xf32> to vector<16x256xf32>
    %7 = arith.subf %1, %6 : vector<16x256xf32>
    %8 = arith.mulf %7, %7 : vector<16x256xf32>
    %cst_2 = arith.constant dense<0.000000e+00> : vector<16xf32>
    %9 = vector.multi_reduction <add>, %8, %cst_2 [1] : vector<16x256xf32> to vector<16xf32>
    %10 = vector.shape_cast %9 : vector<16xf32> to vector<16x1xf32>
    %cst_3 = arith.constant 2.560000e+02 : f32
    %11 = vector.broadcast %cst_3 : f32 to vector<16x1xf32>
    %12 = arith.divf %10, %11 : vector<16x1xf32>
    %cst_4 = arith.constant 9.99999997E-7 : f32
    %13 = vector.broadcast %cst_4 : f32 to vector<16x1xf32>
    %14 = arith.addf %12, %13 : vector<16x1xf32>
    %15 = math.rsqrt %14 : vector<16x1xf32>
    %16 = vector.broadcast %15 : vector<16x1xf32> to vector<16x256xf32>
    %17 = arith.mulf %7, %16 : vector<16x256xf32>
    %c0_5 = arith.constant 0 : index
    %c0_6 = arith.constant 0 : index
    %18 = vector.load %arg5[%c0_5, %c0_6] : memref<1x256xf32, #tpu.memory_space<vmem>>, vector<1x256xf32>
    %19 = vector.broadcast %18 : vector<1x256xf32> to vector<16x256xf32>
    %20 = arith.mulf %17, %19 : vector<16x256xf32>
    %c0_7 = arith.constant 0 : index
    %c0_8 = arith.constant 0 : index
    %21 = vector.load %arg6[%c0_7, %c0_8] : memref<1x256xf32, #tpu.memory_space<vmem>>, vector<1x256xf32>
    %22 = vector.broadcast %21 : vector<1x256xf32> to vector<16x256xf32>
    %23 = arith.addf %20, %22 : vector<16x256xf32>
    %24 = arith.truncf %23 : vector<16x256xf32> to vector<16x256xbf16>
    %c0_9 = arith.constant 0 : index
    %c0_10 = arith.constant 0 : index
    %25 = vector.load %arg3[%c0_9, %c0_10] : memref<256x256xbf16, #tpu.memory_space<vmem>>, vector<256x256xbf16>
    %cst_11 = arith.constant dense<0.000000e+00> : vector<16x256xf32>
    %26 = tpu.matmul %24, %25, %cst_11 {dimension_numbers = #tpu.dot_dimension_numbers<[1], [0], [0], [1], [0, 0, 1, 1], [], []>} : vector<16x256xbf16>, vector<256x256xbf16>, vector<16x256xf32> -> vector<16x256xf32>
    %c0_12 = arith.constant 0 : index
    %c0_13 = arith.constant 0 : index
    %27 = vector.load %arg4[%c0_12, %c0_13] : memref<1x256xf32, #tpu.memory_space<vmem>>, vector<1x256xf32>
    %28 = vector.broadcast %27 : vector<1x256xf32> to vector<16x256xf32>
    %29 = arith.addf %26, %28 : vector<16x256xf32>
    %30 = arith.truncf %29 : vector<16x256xf32> to vector<16x256xbf16>
    %c0_14 = arith.constant 0 : index
    %c0_15 = arith.constant 0 : index
    %31 = vector.load %arg7[%c0_14, %c0_15] : memref<16x256xbf16, #tpu.memory_space<vmem>>, vector<16x256xbf16>
    tpu.vector_store %arg7[%c0_14, %c0_15], %30 {strides = array<i32>} : memref<16x256xbf16, #tpu.memory_space<vmem>>, vector<16x256xbf16>,
    return
  }
  func.func @transform_0(%arg0: i32, %arg1: i32) -> (i32, i32) {
    %c0_i32 = arith.constant 0 : i32
    %c0_i32_0 = arith.constant 0 : i32
    return %arg0, %c0_i32 : i32, i32
  }
  func.func @transform_1(%arg0: i32, %arg1: i32) -> (i32, i32) {
    %c0_i32 = arith.constant 0 : i32
    %c0_i32_0 = arith.constant 0 : i32
    return %c0_i32, %arg1 : i32, i32
  }
  func.func @transform_2(%arg0: i32, %arg1: i32) -> (i32, i32) {
    %c0_i32 = arith.constant 0 : i32
    %c0_i32_0 = arith.constant 0 : i32
    return %c0_i32, %arg1 : i32, i32
  }
  func.func @transform_3(%arg0: i32, %arg1: i32) -> (i32, i32) {
    %c0_i32 = arith.constant 0 : i32
    %c0_i32_0 = arith.constant 0 : i32
    %c0_i32_1 = arith.constant 0 : i32
    return %c0_i32, %c0_i32_0 : i32, i32
  }
  func.func @transform_4(%arg0: i32, %arg1: i32) -> (i32, i32) {
    %c0_i32 = arith.constant 0 : i32
    %c0_i32_0 = arith.constant 0 : i32
    %c0_i32_1 = arith.constant 0 : i32
    return %c0_i32, %c0_i32_0 : i32, i32
  }
  func.func @transform_5(%arg0: i32, %arg1: i32) -> (i32, i32) {
    %c0_i32 = arith.constant 0 : i32
    return %arg0, %arg1 : i32, i32
  }
}

module attributes {stable_mosaic.version = 11 : i64} {
  func.func @kernel(%arg0: i32, %arg1: i32, %arg2: memref<16x256xbf16, #tpu.memory_space<vmem>>, %arg3: memref<256x512xbf16, #tpu.memory_space<vmem>>, %arg4: memref<1x512xf32, #tpu.memory_space<vmem>>, %arg5: memref<1x256xf32, #tpu.memory_space<vmem>>, %arg6: memref<1x256xf32, #tpu.memory_space<vmem>>, %arg7: memref<16x512xbf16, #tpu.memory_space<vmem>>) attributes {dimension_semantics = [#tpu.dimension_semantics<parallel>, #tpu.dimension_semantics<parallel>], iteration_bounds = array<i64: 1, 1>, scalar_prefetch = 0 : i64, scratch_operands = 0 : i64, tpu.core_type = #tpu.core_type<tc>, window_params = [{transform_indices = @transform_0, window_bounds = array<i64: 16, 256>}, {transform_indices = @transform_1, window_bounds = array<i64: 256, 512>}, {transform_indices = @transform_2, window_bounds = array<i64: 1, 512>}, {pipeline_mode = #tpu.pipeline_mode<synchronous>, transform_indices = @transform_3, window_bounds = array<i64: 1, 256>}, {pipeline_mode = #tpu.pipeline_mode<synchronous>, transform_indices = @transform_4, window_bounds = array<i64: 1, 256>}, {transform_indices = @transform_5, window_bounds = array<i64: 16, 512>}]} {
    %c0 = arith.constant 0 : index
    %c0_0 = arith.constant 0 : index
    %0 = vector.load %arg2[%c0, %c0_0] : memref<16x256xbf16, #tpu.memory_space<vmem>>, vector<16x256xbf16>
    %1 = arith.extf %0 : vector<16x256xbf16> to vector<16x256xf32>
    %cst = arith.constant dense<0.000000e+00> : vector<16xf32>
    %2 = vector.multi_reduction <add>, %1, %cst [1] : vector<16x256xf32> to vector<16xf32>
    %3 = vector.shape_cast %2 : vector<16xf32> to vector<16x1xf32>
    %cst_1 = arith.constant 2.560000e+02 : f32
    %4 = vector.broadcast %cst_1 : f32 to vector<16x1xf32>
    %5 = arith.divf %3, %4 : vector<16x1xf32>
    %6 = vector.broadcast %5 : vector<16x1xf32> to vector<16x256xf32>
    %7 = arith.subf %1, %6 : vector<16x256xf32>
    %8 = arith.mulf %7, %7 : vector<16x256xf32>
    %cst_2 = arith.constant dense<0.000000e+00> : vector<16xf32>
    %9 = vector.multi_reduction <add>, %8, %cst_2 [1] : vector<16x256xf32> to vector<16xf32>
    %10 = vector.shape_cast %9 : vector<16xf32> to vector<16x1xf32>
    %cst_3 = arith.constant 2.560000e+02 : f32
    %11 = vector.broadcast %cst_3 : f32 to vector<16x1xf32>
    %12 = arith.divf %10, %11 : vector<16x1xf32>
    %cst_4 = arith.constant 9.99999997E-7 : f32
    %13 = vector.broadcast %cst_4 : f32 to vector<16x1xf32>
    %14 = arith.addf %12, %13 : vector<16x1xf32>
    %15 = math.rsqrt %14 : vector<16x1xf32>
    %16 = vector.broadcast %15 : vector<16x1xf32> to vector<16x256xf32>
    %17 = arith.mulf %7, %16 : vector<16x256xf32>
    %c0_5 = arith.constant 0 : index
    %c0_6 = arith.constant 0 : index
    %18 = vector.load %arg5[%c0_5, %c0_6] : memref<1x256xf32, #tpu.memory_space<vmem>>, vector<1x256xf32>
    %19 = vector.broadcast %18 : vector<1x256xf32> to vector<16x256xf32>
    %20 = arith.mulf %17, %19 : vector<16x256xf32>
    %c0_7 = arith.constant 0 : index
    %c0_8 = arith.constant 0 : index
    %21 = vector.load %arg6[%c0_7, %c0_8] : memref<1x256xf32, #tpu.memory_space<vmem>>, vector<1x256xf32>
    %22 = vector.broadcast %21 : vector<1x256xf32> to vector<16x256xf32>
    %23 = arith.addf %20, %22 : vector<16x256xf32>
    %24 = arith.truncf %23 : vector<16x256xf32> to vector<16x256xbf16>
    %c0_9 = arith.constant 0 : index
    %c0_10 = arith.constant 0 : index
    %25 = vector.load %arg3[%c0_9, %c0_10] : memref<256x512xbf16, #tpu.memory_space<vmem>>, vector<256x512xbf16>
    %cst_11 = arith.constant dense<0.000000e+00> : vector<16x512xf32>
    %26 = tpu.matmul %24, %25, %cst_11 {dimension_numbers = #tpu.dot_dimension_numbers<[1], [0], [0], [1], [0, 0, 1, 1], [], []>} : vector<16x256xbf16>, vector<256x512xbf16>, vector<16x512xf32> -> vector<16x512xf32>
    %c0_12 = arith.constant 0 : index
    %c0_13 = arith.constant 0 : index
    %27 = vector.load %arg4[%c0_12, %c0_13] : memref<1x512xf32, #tpu.memory_space<vmem>>, vector<1x512xf32>
    %28 = vector.broadcast %27 : vector<1x512xf32> to vector<16x512xf32>
    %29 = arith.addf %26, %28 : vector<16x512xf32>
    %cst_14 = arith.constant 5.000000e-01 : f32
    %30 = vector.broadcast %cst_14 : f32 to vector<16x512xf32>
    %31 = arith.mulf %30, %29 : vector<16x512xf32>
    %cst_15 = arith.constant 0.707106769 : f32
    %32 = vector.broadcast %cst_15 : f32 to vector<16x512xf32>
    %33 = arith.mulf %29, %32 : vector<16x512xf32>
    %34 = math.erf %33 : vector<16x512xf32>
    %cst_16 = arith.constant 1.000000e+00 : f32
    %35 = vector.broadcast %cst_16 : f32 to vector<16x512xf32>
    %36 = arith.addf %35, %34 : vector<16x512xf32>
    %37 = arith.mulf %31, %36 : vector<16x512xf32>
    %38 = arith.truncf %37 : vector<16x512xf32> to vector<16x512xbf16>
    %c0_17 = arith.constant 0 : index
    %c0_18 = arith.constant 0 : index
    %39 = vector.load %arg7[%c0_17, %c0_18] : memref<16x512xbf16, #tpu.memory_space<vmem>>, vector<16x512xbf16>
    tpu.vector_store %arg7[%c0_17, %c0_18], %38 {strides = array<i32>} : memref<16x512xbf16, #tpu.memory_space<vmem>>, vector<16x512xbf16>,
    return
  }
  func.func @transform_0(%arg0: i32, %arg1: i32) -> (i32, i32) {
    %c0_i32 = arith.constant 0 : i32
    %c0_i32_0 = arith.constant 0 : i32
    return %arg0, %c0_i32 : i32, i32
  }
  func.func @transform_1(%arg0: i32, %arg1: i32) -> (i32, i32) {
    %c0_i32 = arith.constant 0 : i32
    %c0_i32_0 = arith.constant 0 : i32
    return %c0_i32, %arg1 : i32, i32
  }
  func.func @transform_2(%arg0: i32, %arg1: i32) -> (i32, i32) {
    %c0_i32 = arith.constant 0 : i32
    %c0_i32_0 = arith.constant 0 : i32
    return %c0_i32, %arg1 : i32, i32
  }
  func.func @transform_3(%arg0: i32, %arg1: i32) -> (i32, i32) {
    %c0_i32 = arith.constant 0 : i32
    %c0_i32_0 = arith.constant 0 : i32
    %c0_i32_1 = arith.constant 0 : i32
    return %c0_i32, %c0_i32_0 : i32, i32
  }
  func.func @transform_4(%arg0: i32, %arg1: i32) -> (i32, i32) {
    %c0_i32 = arith.constant 0 : i32
    %c0_i32_0 = arith.constant 0 : i32
    %c0_i32_1 = arith.constant 0 : i32
    return %c0_i32, %c0_i32_0 : i32, i32
  }
  func.func @transform_5(%arg0: i32, %arg1: i32) -> (i32, i32) {
    %c0_i32 = arith.constant 0 : i32
    return %arg0, %arg1 : i32, i32
  }
}

module attributes {stable_mosaic.version = 11 : i64} {
  func.func @kernel(%arg0: i32, %arg1: i32, %arg2: memref<16x512xbf16, #tpu.memory_space<vmem>>, %arg3: memref<512x256xbf16, #tpu.memory_space<vmem>>, %arg4: memref<1x256xf32, #tpu.memory_space<vmem>>, %arg5: memref<16x256xbf16, #tpu.memory_space<vmem>>, %arg6: memref<16x256xbf16, #tpu.memory_space<vmem>>) attributes {dimension_semantics = [#tpu.dimension_semantics<parallel>, #tpu.dimension_semantics<parallel>], iteration_bounds = array<i64: 1, 1>, scalar_prefetch = 0 : i64, scratch_operands = 0 : i64, tpu.core_type = #tpu.core_type<tc>, window_params = [{transform_indices = @transform_0, window_bounds = array<i64: 16, 512>}, {transform_indices = @transform_1, window_bounds = array<i64: 512, 256>}, {transform_indices = @transform_2, window_bounds = array<i64: 1, 256>}, {transform_indices = @transform_3, window_bounds = array<i64: 16, 256>}, {transform_indices = @transform_4, window_bounds = array<i64: 16, 256>}]} {
    %c0 = arith.constant 0 : index
    %c0_0 = arith.constant 0 : index
    %0 = vector.load %arg2[%c0, %c0_0] : memref<16x512xbf16, #tpu.memory_space<vmem>>, vector<16x512xbf16>
    %c0_1 = arith.constant 0 : index
    %c0_2 = arith.constant 0 : index
    %1 = vector.load %arg3[%c0_1, %c0_2] : memref<512x256xbf16, #tpu.memory_space<vmem>>, vector<512x256xbf16>
    %cst = arith.constant dense<0.000000e+00> : vector<16x256xf32>
    %2 = tpu.matmul %0, %1, %cst {dimension_numbers = #tpu.dot_dimension_numbers<[1], [0], [0], [1], [0, 0, 1, 1], [], []>} : vector<16x512xbf16>, vector<512x256xbf16>, vector<16x256xf32> -> vector<16x256xf32>
    %c0_3 = arith.constant 0 : index
    %c0_4 = arith.constant 0 : index
    %3 = vector.load %arg4[%c0_3, %c0_4] : memref<1x256xf32, #tpu.memory_space<vmem>>, vector<1x256xf32>
    %4 = vector.broadcast %3 : vector<1x256xf32> to vector<16x256xf32>
    %5 = arith.addf %2, %4 : vector<16x256xf32>
    %c0_5 = arith.constant 0 : index
    %c0_6 = arith.constant 0 : index
    %6 = vector.load %arg5[%c0_5, %c0_6] : memref<16x256xbf16, #tpu.memory_space<vmem>>, vector<16x256xbf16>
    %7 = arith.extf %6 : vector<16x256xbf16> to vector<16x256xf32>
    %8 = arith.addf %5, %7 : vector<16x256xf32>
    %9 = arith.truncf %8 : vector<16x256xf32> to vector<16x256xbf16>
    %c0_7 = arith.constant 0 : index
    %c0_8 = arith.constant 0 : index
    %10 = vector.load %arg6[%c0_7, %c0_8] : memref<16x256xbf16, #tpu.memory_space<vmem>>, vector<16x256xbf16>
    tpu.vector_store %arg6[%c0_7, %c0_8], %9 {strides = array<i32>} : memref<16x256xbf16, #tpu.memory_space<vmem>>, vector<16x256xbf16>,
    return
  }
  func.func @transform_0(%arg0: i32, %arg1: i32) -> (i32, i32) {
    %c0_i32 = arith.constant 0 : i32
    %c0_i32_0 = arith.constant 0 : i32
    return %arg0, %c0_i32 : i32, i32
  }
  func.func @transform_1(%arg0: i32, %arg1: i32) -> (i32, i32) {
    %c0_i32 = arith.constant 0 : i32
    %c0_i32_0 = arith.constant 0 : i32
    return %c0_i32, %arg1 : i32, i32
  }
  func.func @transform_2(%arg0: i32, %arg1: i32) -> (i32, i32) {
    %c0_i32 = arith.constant 0 : i32
    %c0_i32_0 = arith.constant 0 : i32
    return %c0_i32, %arg1 : i32, i32
  }
  func.func @transform_3(%arg0: i32, %arg1: i32) -> (i32, i32) {
    %c0_i32 = arith.constant 0 : i32
    return %arg0, %arg1 : i32, i32
  }
  func.func @transform_4(%arg0: i32, %arg1: i32) -> (i32, i32) {
    %c0_i32 = arith.constant 0 : i32
    return %arg0, %arg1 : i32, i32
  }
}

module attributes {stable_mosaic.version = 11 : i64} {
  func.func @kernel(%arg0: i32, %arg1: i32, %arg2: memref<2x256xbf16, #tpu.memory_space<vmem>>, %arg3: memref<256x128xbf16, #tpu.memory_space<vmem>>, %arg4: memref<1x128xf32, #tpu.memory_space<vmem>>, %arg5: memref<1x256xf32, #tpu.memory_space<vmem>>, %arg6: memref<1x256xf32, #tpu.memory_space<vmem>>, %arg7: memref<2x128xf32, #tpu.memory_space<vmem>>) attributes {dimension_semantics = [#tpu.dimension_semantics<parallel>, #tpu.dimension_semantics<parallel>], iteration_bounds = array<i64: 1, 1>, scalar_prefetch = 0 : i64, scratch_operands = 0 : i64, tpu.core_type = #tpu.core_type<tc>, window_params = [{transform_indices = @transform_0, window_bounds = array<i64: 2, 256>}, {transform_indices = @transform_1, window_bounds = array<i64: 256, 128>}, {transform_indices = @transform_2, window_bounds = array<i64: 1, 128>}, {pipeline_mode = #tpu.pipeline_mode<synchronous>, transform_indices = @transform_3, window_bounds = array<i64: 1, 256>}, {pipeline_mode = #tpu.pipeline_mode<synchronous>, transform_indices = @transform_4, window_bounds = array<i64: 1, 256>}, {transform_indices = @transform_5, window_bounds = array<i64: 2, 128>}]} {
    %c0 = arith.constant 0 : index
    %c0_0 = arith.constant 0 : index
    %0 = vector.load %arg2[%c0, %c0_0] : memref<2x256xbf16, #tpu.memory_space<vmem>>, vector<2x256xbf16>
    %1 = arith.extf %0 : vector<2x256xbf16> to vector<2x256xf32>
    %cst = arith.constant dense<0.000000e+00> : vector<2xf32>
    %2 = vector.multi_reduction <add>, %1, %cst [1] : vector<2x256xf32> to vector<2xf32>
    %3 = vector.shape_cast %2 : vector<2xf32> to vector<2x1xf32>
    %cst_1 = arith.constant 2.560000e+02 : f32
    %4 = vector.broadcast %cst_1 : f32 to vector<2x1xf32>
    %5 = arith.divf %3, %4 : vector<2x1xf32>
    %6 = vector.broadcast %5 : vector<2x1xf32> to vector<2x256xf32>
    %7 = arith.subf %1, %6 : vector<2x256xf32>
    %8 = arith.mulf %7, %7 : vector<2x256xf32>
    %cst_2 = arith.constant dense<0.000000e+00> : vector<2xf32>
    %9 = vector.multi_reduction <add>, %8, %cst_2 [1] : vector<2x256xf32> to vector<2xf32>
    %10 = vector.shape_cast %9 : vector<2xf32> to vector<2x1xf32>
    %cst_3 = arith.constant 2.560000e+02 : f32
    %11 = vector.broadcast %cst_3 : f32 to vector<2x1xf32>
    %12 = arith.divf %10, %11 : vector<2x1xf32>
    %cst_4 = arith.constant 9.99999997E-7 : f32
    %13 = vector.broadcast %cst_4 : f32 to vector<2x1xf32>
    %14 = arith.addf %12, %13 : vector<2x1xf32>
    %15 = math.rsqrt %14 : vector<2x1xf32>
    %16 = vector.broadcast %15 : vector<2x1xf32> to vector<2x256xf32>
    %17 = arith.mulf %7, %16 : vector<2x256xf32>
    %c0_5 = arith.constant 0 : index
    %c0_6 = arith.constant 0 : index
    %18 = vector.load %arg5[%c0_5, %c0_6] : memref<1x256xf32, #tpu.memory_space<vmem>>, vector<1x256xf32>
    %19 = vector.broadcast %18 : vector<1x256xf32> to vector<2x256xf32>
    %20 = arith.mulf %17, %19 : vector<2x256xf32>
    %c0_7 = arith.constant 0 : index
    %c0_8 = arith.constant 0 : index
    %21 = vector.load %arg6[%c0_7, %c0_8] : memref<1x256xf32, #tpu.memory_space<vmem>>, vector<1x256xf32>
    %22 = vector.broadcast %21 : vector<1x256xf32> to vector<2x256xf32>
    %23 = arith.addf %20, %22 : vector<2x256xf32>
    %24 = arith.truncf %23 : vector<2x256xf32> to vector<2x256xbf16>
    %c0_9 = arith.constant 0 : index
    %c0_10 = arith.constant 0 : index
    %25 = vector.load %arg3[%c0_9, %c0_10] : memref<256x128xbf16, #tpu.memory_space<vmem>>, vector<256x128xbf16>
    %cst_11 = arith.constant dense<0.000000e+00> : vector<2x128xf32>
    %26 = tpu.matmul %24, %25, %cst_11 {dimension_numbers = #tpu.dot_dimension_numbers<[1], [0], [0], [1], [0, 0, 1, 1], [], []>} : vector<2x256xbf16>, vector<256x128xbf16>, vector<2x128xf32> -> vector<2x128xf32>
    %c0_12 = arith.constant 0 : index
    %c0_13 = arith.constant 0 : index
    %27 = vector.load %arg4[%c0_12, %c0_13] : memref<1x128xf32, #tpu.memory_space<vmem>>, vector<1x128xf32>
    %28 = vector.broadcast %27 : vector<1x128xf32> to vector<2x128xf32>
    %29 = arith.addf %26, %28 : vector<2x128xf32>
    %cst_14 = arith.constant dense<0xFF800000> : vector<2xf32>
    %30 = vector.multi_reduction <maximumf>, %29, %cst_14 [1] : vector<2x128xf32> to vector<2xf32>
    %31 = vector.shape_cast %30 : vector<2xf32> to vector<2x1xf32>
    %32 = vector.broadcast %31 : vector<2x1xf32> to vector<2x128xf32>
    %33 = arith.subf %29, %32 : vector<2x128xf32>
    %34 = math.exp %33 : vector<2x128xf32>
    %cst_15 = arith.constant dense<0.000000e+00> : vector<2xf32>
    %35 = vector.multi_reduction <add>, %34, %cst_15 [1] : vector<2x128xf32> to vector<2xf32>
    %36 = vector.shape_cast %35 : vector<2xf32> to vector<2x1xf32>
    %37 = math.log %36 : vector<2x1xf32>
    %38 = vector.broadcast %37 : vector<2x1xf32> to vector<2x128xf32>
    %39 = arith.subf %33, %38 : vector<2x128xf32>
    %c0_16 = arith.constant 0 : index
    %c0_17 = arith.constant 0 : index
    %40 = vector.load %arg7[%c0_16, %c0_17] : memref<2x128xf32, #tpu.memory_space<vmem>>, vector<2x128xf32>
    tpu.vector_store %arg7[%c0_16, %c0_17], %39 {strides = array<i32>} : memref<2x128xf32, #tpu.memory_space<vmem>>, vector<2x128xf32>,
    return
  }
  func.func @transform_0(%arg0: i32, %arg1: i32) -> (i32, i32) {
    %c0_i32 = arith.constant 0 : i32
    %c0_i32_0 = arith.constant 0 : i32
    return %arg0, %c0_i32 : i32, i32
  }
  func.func @transform_1(%arg0: i32, %arg1: i32) -> (i32, i32) {
    %c0_i32 = arith.constant 0 : i32
    %c0_i32_0 = arith.constant 0 : i32
    return %c0_i32, %arg1 : i32, i32
  }
  func.func @transform_2(%arg0: i32, %arg1: i32) -> (i32, i32) {
    %c0_i32 = arith.constant 0 : i32
    %c0_i32_0 = arith.constant 0 : i32
    return %c0_i32, %arg1 : i32, i32
  }
  func.func @transform_3(%arg0: i32, %arg1: i32) -> (i32, i32) {
    %c0_i32 = arith.constant 0 : i32
    %c0_i32_0 = arith.constant 0 : i32
    %c0_i32_1 = arith.constant 0 : i32
    return %c0_i32, %c0_i32_0 : i32, i32
  }
  func.func @transform_4(%arg0: i32, %arg1: i32) -> (i32, i32) {
    %c0_i32 = arith.constant 0 : i32
    %c0_i32_0 = arith.constant 0 : i32
    %c0_i32_1 = arith.constant 0 : i32
    return %c0_i32, %c0_i32_0 : i32, i32
  }
  func.func @transform_5(%arg0: i32, %arg1: i32) -> (i32, i32) {
    %c0_i32 = arith.constant 0 : i32
    return %arg0, %arg1 : i32, i32
  }
}

</mosaic_0001>

<llo_original>
// kernel: forward.14
$region0: #{forward.14}
  #allocation0 [shape = 'u32[]', space=smem, size = 0x4, offset = 0x4, fixed_abs, tag = 'smem constant byte address 0x4 - core index']
  #allocation1 [shape = 'u32[144,128]{1,0:T(1,128)}', space=vmem, size = 0x12000, scoped, tag = 'internal scratch']
  %s0 = inlined_call_operand.vmem [shape: bf16[2,8,768], index: 0, kind: input, shape index: {}, may-alias: {0,1,2}]
  %s1 = inlined_call_operand.vmem [shape: bf16[2,8,768], index: 1, kind: input, shape index: {}, may-alias: {0,1,2}]
  %s2 = inlined_call_operand.vmem [shape: bf16[2,8,768], index: 2, kind: input, shape index: {}, may-alias: {0,1,2}]
  %s3 = inlined_call_operand.vmem [shape: bf16[2,8,256], index: 3, kind: output, shape index: {}]
  %s4 = sld [smem:[#allocation0]]
  $region45: #{forward.14} parent=0
    _
  %s6 = ssub.s32 1, %s4
  %s7 = scalar_select 0, %s6, %s4
  loop: start=0, step=1, limit=6
  $region2: #{forward.14} parent=0 // loop_pre_header
    _
  $region3: #{forward.14} parent=0 // loop_header
    %s9 = sphi 0, %s13
    %p10 = scmp.ge.s32.totalorder %s9, 6
    %s16 = sphi 0, %s28
    %s17 = sphi 0, %s24
    %s18 = sphi 0, %s16
    %s19 = sphi 0, %s17
    %s20 = sphi 0, %s18
    %s21 = sphi 0, %s19
    %s33 = sphi 0, %s35
    %s36 = sphi 0, %s33
    %s37 = sphi 0, %s36
    %s53 = sphi 0, %s37
    %s63 = sphi 0, %s65
    %s66 = sphi 0, %s63
    %s67 = sphi 0, %s66
    %s83 = sphi 0, %s67
    %s93 = sphi 0, %s95
    %s96 = sphi 0, %s93
    %s97 = sphi 0, %s96
    %s113 = sphi 0, %s97
    %s121 = sphi 0, %s123
    %s124 = sphi 0, %s121
    %s125 = sphi 0, %s124
    %s141 = sphi 0, %s125
  $region4: #{forward.14} parent=0 // loop_header_branch
    %12 = sbr.rel (%p10) target = $region8
  $region5: #{forward.14} parent=0 // loop_body
    %s14 = ssub.s32 %s9, 1
    %s15 = ssub.s32 %s9, 2
    %s22 = sadd.s32 1, %s17
    %p23 = scmp.ge.s32.totalorder %s22, 2
    %s24 = scalar_select %p23, 0, %s22
    %s25 = sadd.s32 1, %s16
    %s26 = scalar_select %p23, %s25, %s16
    %p27 = scmp.ge.s32.totalorder %s26, 2
    %s28 = scalar_select %p27, 0, %s26
    %s29 = ssub.s32 %s16, %s28
    %s30 = ssub.s32 %s17, %s24
    %s31 = sor.u32 %s29, %s30
    %p32 = scmp.eq.s32.totalorder %s31, 0
    %s34 = sadd.s32 %s33, 1
    %s35 = scalar_select %p32, %s33, %s34
    %p38 = pneg %p32
    %p39 = scmp.eq.s32.totalorder %s9, 3
    %p40 = por %p38, %p39
    %p41 = scmp.ne.s32.totalorder %s33, %s36
    %p42 = scmp.eq.s32.totalorder %s9, 0
    %p43 = por %p41, %p42
    %p44 = scmp.ne.s32.totalorder %s33, %s36
    %p45 = scmp.eq.s32.totalorder %s14, 3
    %p46 = por %p44, %p45
    %p47 = scmp.ne.s32.totalorder %s36, %s37
    %p48 = scmp.eq.s32.totalorder %s14, 0
    %p49 = por %p47, %p48
    %p50 = scmp.ne.s32.totalorder %s36, %s37
    %p51 = scmp.eq.s32.totalorder %s15, 3
    %p52 = por %p50, %p51
    %p54 = scmp.ne.s32.totalorder %s37, %s53
    %p55 = scmp.eq.s32.totalorder %s15, 0
    %p56 = por %p54, %p55
    %s57 = sadd.s32 %s17, 2
    %s58 = sadd.s32 %s24, 2
    %s59 = ssub.s32 %s16, %s28
    %s60 = ssub.s32 %s57, %s58
    %s61 = sor.u32 %s59, %s60
    %p62 = scmp.eq.s32.totalorder %s61, 0
    %s64 = sadd.s32 %s63, 1
    %s65 = scalar_select %p62, %s63, %s64
    %p68 = pneg %p62
    %p69 = scmp.eq.s32.totalorder %s9, 3
    %p70 = por %p68, %p69
    %p71 = scmp.ne.s32.totalorder %s63, %s66
    %p72 = scmp.eq.s32.totalorder %s9, 0
    %p73 = por %p71, %p72
    %p74 = scmp.ne.s32.totalorder %s63, %s66
    %p75 = scmp.eq.s32.totalorder %s14, 3
    %p76 = por %p74, %p75
    %p77 = scmp.ne.s32.totalorder %s66, %s67
    %p78 = scmp.eq.s32.totalorder %s14, 0
    %p79 = por %p77, %p78
    %p80 = scmp.ne.s32.totalorder %s66, %s67
    %p81 = scmp.eq.s32.totalorder %s15, 3
    %p82 = por %p80, %p81
    %p84 = scmp.ne.s32.totalorder %s67, %s83
    %p85 = scmp.eq.s32.totalorder %s15, 0
    %p86 = por %p84, %p85
    %s87 = sadd.s32 %s17, 4
    %s88 = sadd.s32 %s24, 4
    %s89 = ssub.s32 %s16, %s28
    %s90 = ssub.s32 %s87, %s88
    %s91 = sor.u32 %s89, %s90
    %p92 = scmp.eq.s32.totalorder %s91, 0
    %s94 = sadd.s32 %s93, 1
    %s95 = scalar_select %p92, %s93, %s94
    %p98 = pneg %p92
    %p99 = scmp.eq.s32.totalorder %s9, 3
    %p100 = por %p98, %p99
    %p101 = scmp.ne.s32.totalorder %s93, %s96
    %p102 = scmp.eq.s32.totalorder %s9, 0
    %p103 = por %p101, %p102
    %p104 = scmp.ne.s32.totalorder %s93, %s96
    %p105 = scmp.eq.s32.totalorder %s14, 3
    %p106 = por %p104, %p105
    %p107 = scmp.ne.s32.totalorder %s96, %s97
    %p108 = scmp.eq.s32.totalorder %s14, 0
    %p109 = por %p107, %p108
    %p110 = scmp.ne.s32.totalorder %s96, %s97
    %p111 = scmp.eq.s32.totalorder %s15, 3
    %p112 = por %p110, %p111
    %p114 = scmp.ne.s32.totalorder %s97, %s113
    %p115 = scmp.eq.s32.totalorder %s15, 0
    %p116 = por %p114, %p115
    %s117 = ssub.s32 %s16, %s28
    %s118 = ssub.s32 %s17, %s24
    %s119 = sor.u32 %s117, %s118
    %p120 = scmp.eq.s32.totalorder %s119, 0
    %s122 = sadd.s32 %s121, 1
    %s123 = scalar_select %p120, %s121, %s122
    %p126 = pneg %p120
    %p127 = scmp.eq.s32.totalorder %s9, 3
    %p128 = por %p126, %p127
    %p129 = scmp.ne.s32.totalorder %s121, %s124
    %p130 = scmp.eq.s32.totalorder %s9, 0
    %p131 = por %p129, %p130
    %p132 = scmp.ne.s32.totalorder %s121, %s124
    %p133 = scmp.eq.s32.totalorder %s14, 3
    %p134 = por %p132, %p133
    %p135 = scmp.ne.s32.totalorder %s124, %s125
    %p136 = scmp.eq.s32.totalorder %s14, 0
    %p137 = por %p135, %p136
    %p138 = scmp.ne.s32.totalorder %s124, %s125
    %p139 = scmp.eq.s32.totalorder %s15, 3
    %p140 = por %p138, %p139
    %p142 = scmp.ne.s32.totalorder %s125, %s141
    %p143 = scmp.eq.s32.totalorder %s15, 0
    %p144 = por %p142, %p143
    %p145 = scmp.le.s32.totalorder 1, %s9
    %p146 = scmp.lt.s32.totalorder %s9, 5
    %p147 = pnand %p145, %p146
    %p148 = pneg %p147
    // Predicated region
    $region9: #{forward.14} parent=5 // pred_check
      _
    $region10: #{forward.14} parent=5 // pred_check_branch
      %150 = sbr.rel (%p147) target = $region12
    $region11: #{forward.14} parent=5 // pred_region
      %s151 = ssub.s32 %s9, 1
    $region12: #{forward.14} parent=5 // pred_fallthru
      _
    %p152 = scmp.lt.s32.totalorder %s9, 4
    // Predicated region
    $region13: #{forward.14} parent=5 // pred_check
      %p153 = pneg %p152
    $region14: #{forward.14} parent=5 // pred_check_branch
      %155 = sbr.rel (%p153) target = $region16
    $region15: #{forward.14} parent=5 // pred_region
      // Predicated region
      $region17: #{forward.14} parent=15 // pred_check
        %p156 = pneg %p43
      $region18: #{forward.14} parent=15 // pred_check_branch
        %158 = sbr.rel (%p156) target = $region20
      $region19: #{forward.14} parent=15 // pred_region
        %p159 = scmp.lt.s32.totalorder %s16, 1
        %s160 = scalar_select %p159, %s16, 1
        %p161 = scmp.lt.s32.totalorder %s17, 5
        %s162 = scalar_select %p161, %s17, 5
        %s163 = smul.addr %s160, 6
        %s164 = sadd.s32 %s162, %s163
        %s165 = smul.addr %s164, 4
        %s166 = scalar_lea.vmem %s0, %s165
      $region20: #{forward.14} parent=15 // pred_fallthru
        _
      // Predicated region
      $region21: #{forward.14} parent=15 // pred_check
        %p167 = pneg %p73
      $region22: #{forward.14} parent=15 // pred_check_branch
        %169 = sbr.rel (%p167) target = $region24
      $region23: #{forward.14} parent=15 // pred_region
        %s170 = sadd.s32 %s17, 2
        %p171 = scmp.lt.s32.totalorder %s16, 1
        %s172 = scalar_select %p171, %s16, 1
        %p173 = scmp.lt.s32.totalorder %s170, 5
        %s174 = scalar_select %p173, %s170, 5
        %s175 = smul.addr %s172, 6
        %s176 = sadd.s32 %s174, %s175
        %s177 = smul.addr %s176, 4
        %s178 = scalar_lea.vmem %s1, %s177
        %s179 = sadd.s32 %s17, 2
      $region24: #{forward.14} parent=15 // pred_fallthru
        _
      // Predicated region
      $region25: #{forward.14} parent=15 // pred_check
        %p180 = pneg %p103
      $region26: #{forward.14} parent=15 // pred_check_branch
        %182 = sbr.rel (%p180) target = $region28
      $region27: #{forward.14} parent=15 // pred_region
        %s183 = sadd.s32 %s17, 4
        %p184 = scmp.lt.s32.totalorder %s16, 1
        %s185 = scalar_select %p184, %s16, 1
        %p186 = scmp.lt.s32.totalorder %s183, 5
        %s187 = scalar_select %p186, %s183, 5
        %s188 = smul.addr %s185, 6
        %s189 = sadd.s32 %s187, %s188
        %s190 = smul.addr %s189, 4
        %s191 = scalar_lea.vmem %s2, %s190
        %s192 = sadd.s32 %s17, 4
      $region28: #{forward.14} parent=15 // pred_fallthru
        _
    $region16: #{forward.14} parent=5 // pred_fallthru
      _
    %p193 = scmp.le.s32.totalorder 1, %s9
    %p194 = scmp.lt.s32.totalorder %s9, 5
    %p195 = pnand %p193, %p194
    %p196 = pneg %p195
    // Predicated region
    $region29: #{forward.14} parent=5 // pred_check
      _
    $region30: #{forward.14} parent=5 // pred_check_branch
      %198 = sbr.rel (%p195) target = $region32
    $region31: #{forward.14} parent=5 // pred_region
      %s199 = ssub.s32 %s9, 1
      %p200 = scmp.lt.s32.totalorder %s18, 1
      %s201 = scalar_select %p200, %s18, 1
      %p202 = scmp.lt.s32.totalorder %s19, 5
      %s203 = scalar_select %p202, %s19, 5
      %s204 = smul.addr %s201, 6
      %s205 = sadd.s32 %s203, %s204
      %s206 = smul.addr %s205, 4
      %s207 = scalar_lea.vmem %s0, %s206
      %p208 = pneg %p49
      %p209 = pneg %p46
      %s210 = sadd.s32 %s19, 2
      %p211 = scmp.lt.s32.totalorder %s18, 1
      %s212 = scalar_select %p211, %s18, 1
      %p213 = scmp.lt.s32.totalorder %s210, 5
      %s214 = scalar_select %p213, %s210, 5
      %s215 = smul.addr %s212, 6
      %s216 = sadd.s32 %s214, %s215
      %s217 = smul.addr %s216, 4
      %s218 = scalar_lea.vmem %s1, %s217
      %p219 = pneg %p79
      %p220 = pneg %p76
      %s221 = sadd.s32 %s19, 4
      %p222 = scmp.lt.s32.totalorder %s18, 1
      %s223 = scalar_select %p222, %s18, 1
      %p224 = scmp.lt.s32.totalorder %s221, 5
      %s225 = scalar_select %p224, %s221, 5
      %s226 = smul.addr %s223, 6
      %s227 = sadd.s32 %s225, %s226
      %s228 = smul.addr %s227, 4
      %s229 = scalar_lea.vmem %s2, %s228
      %p230 = pneg %p109
      %p231 = pneg %p106
      %p232 = pneg %p137
      %p233 = pneg %p134
      %p234 = scmp.lt.s32.totalorder %s18, 1
      %s235 = scalar_select %p234, %s18, 1
      %p236 = scmp.lt.s32.totalorder %s19, 1
      %s237 = scalar_select %p236, %s19, 1
      %s238 = smul.addr %s235, 2
      %s239 = sadd.s32 %s237, %s238
      %s240 = smul.addr %s239, 4
      %s241 = scalar_lea.vmem %s3, %s240
      %p242 = scmp.lt.s32.totalorder %s18, 1
      %s243 = scalar_select %p242, %s18, 1
      %p244 = scmp.lt.s32.totalorder %s19, 5
      %s245 = scalar_select %p244, %s19, 5
      %s246 = smul.addr %s243, 6
      %s247 = sadd.s32 %s245, %s246
      %s248 = smul.addr %s247, 4
      %s249 = scalar_lea.vmem %s0, %s248
      %s250 = sadd.s32 %s19, 2
      %p251 = scmp.lt.s32.totalorder %s18, 1
      %s252 = scalar_select %p251, %s18, 1
      %p253 = scmp.lt.s32.totalorder %s250, 5
      %s254 = scalar_select %p253, %s250, 5
      %s255 = smul.addr %s252, 6
      %s256 = sadd.s32 %s254, %s255
      %s257 = smul.addr %s256, 4
      %s258 = scalar_lea.vmem %s1, %s257
      %s259 = sadd.s32 %s19, 2
      %s260 = sadd.s32 %s19, 4
      %p261 = scmp.lt.s32.totalorder %s18, 1
      %s262 = scalar_select %p261, %s18, 1
      %p263 = scmp.lt.s32.totalorder %s260, 5
      %s264 = scalar_select %p263, %s260, 5
      %s265 = smul.addr %s262, 6
      %s266 = sadd.s32 %s264, %s265
      %s267 = smul.addr %s266, 4
      %s268 = scalar_lea.vmem %s2, %s267
      %s269 = sadd.s32 %s19, 4
      %p270 = scmp.lt.s32.totalorder %s18, 1
      %s271 = scalar_select %p270, %s18, 1
      %p272 = scmp.lt.s32.totalorder %s19, 1
      %s273 = scalar_select %p272, %s19, 1
      %s274 = smul.addr %s271, 2
      %s275 = sadd.s32 %s273, %s274
      %s276 = smul.addr %s275, 4
      %s277 = scalar_lea.vmem %s3, %s276
      %v280 = vld [vmem:[%s249] sm:$0xf]
      %v281 = vld [vmem:[%s258] sm:$0xf]
      %v282 = vld [vmem:[%s268] sm:$0xf]
      %v283 = vmul.bf16 %v280, 1040203264
      %vm284 = vcmask 523264
      %v286 = vsel %vm284, %v283, 0
      %v289 = vsel %vm284, %v281, 0
      %291 = vmatprep.subr.bf16.mxu0 0
      %292 = vmatpush1.bf16.xpose.msra.mxu0 0
      %293 = vmatprep.subr.bf16.mxu0 0
      %294 = vmatpush1.bf16.xpose.msra.mxu0 0
      %295 = vmatprep.subr.bf16.mxu0 0
      %296 = vmatpush1.bf16.xpose.msra.mxu0 0
      %297 = vmatprep.subr.bf16.mxu0 0
      %298 = vmatpush1.bf16.xpose.msra.mxu0 0
      %299 = vmatprep.subr.bf16.mxu0 0
      %300 = vmatpush1.bf16.xpose.msra.mxu0 0
      %301 = vmatprep.subr.bf16.mxu0 0
      %302 = vmatpush1.bf16.xpose.msra.mxu0 0
      %303 = vmatprep.subr.bf16.mxu0 0
      %304 = vmatpush1.bf16.xpose.msra.mxu0 0
      %305 = vmatprep.subr.bf16.mxu0 0
      %306 = vmatpush1.bf16.xpose.msra.mxu0 %v289
      %307 = vmatprep.subr.bf16.mxu0 0
      %308 = vmatpush2.bf16.xpose.msra.mxu0 0
      %309 = vmatprep.subr.bf16.mxu0 0
      %310 = vmatpush2.bf16.xpose.msra.mxu0 0
      %311 = vmatprep.subr.bf16.mxu0 0
      %312 = vmatpush2.bf16.xpose.msra.mxu0 0
      %313 = vmatprep.subr.bf16.mxu0 0
      %314 = vmatpush2.bf16.xpose.msra.mxu0 0
      %315 = vmatprep.subr.bf16.mxu0 0
      %316 = vmatpush2.bf16.xpose.msra.mxu0 0
      %317 = vmatprep.subr.bf16.mxu0 0
      %318 = vmatpush2.bf16.xpose.msra.mxu0 0
      %319 = vmatprep.subr.bf16.mxu0 0
      %320 = vmatpush2.bf16.xpose.msra.mxu0 0
      %321 = vmatprep.subr.bf16.mxu0 0
      %322 = vmatpush2.bf16.xpose.msra.mxu0 0
      %323 = vmatprep.mubr.bf16.mxu0 0
      %324 = vmatmul.mubr.bf16.gmra.mxu0 %v286
      %v325 = vpop.f32.mrf.mxu0
      %v326 = vadd.f32 0.0, %v325
      %v327 = vpop.f32.mrf.mxu0
      %v328 = vpop.f32.mrf.mxu0
      %v329 = vpop.f32.mrf.mxu0
      %330 = vdwg.mxu0
      %v331 = vlaneseq
      %v332 = vand.u32 %v331, 127
      %vm333 = vcmp.lt.s32.totalorder %v332, 5
      %v334 = vsel %vm333, 1, 0
      %vm335 = vcmp.eq.s32.totalorder %v334, 1
      %v336 = vsel %vm335, %v326, -1e+30
      %vm337 = vcmask 64512
      %v338 = vsel %vm337, %v336, -inf
      %339 = vmax.xlane.f32.xlu0 %v338
      %v340 = vpop.xlane.xlu0 %339
      %v341 = vsub.f32 %v336, %v340
      %v342 = vmul.f32 %v341, 1.442695
      %v343 = vpow.pop %v342
      %v344 = vsel %vm337, %v343, 0.0
      %345 = vadd.xlane.f32.xlu0 %v344
      %v346 = vpop.xlane.xlu0 %345
      %v347 = vpack.c.bf16 %v343, %v343
      %v349 = vsel %vm337, %v347, 0
      %vm351 = vcmask 1043456
      %v353 = vsel %vm351, %v282, 0
      %355 = vmatprep.subr.bf16.mxu0 0
      %356 = vmatpush1.bf16.msra.mxu0 0
      %357 = vmatprep.subr.bf16.mxu0 0
      %358 = vmatpush1.bf16.msra.mxu0 0
      %359 = vmatprep.subr.bf16.mxu0 0
      %360 = vmatpush1.bf16.msra.mxu0 0
      %361 = vmatprep.subr.bf16.mxu0 0
      %362 = vmatpush1.bf16.msra.mxu0 0
      %363 = vmatprep.subr.bf16.mxu0 0
      %364 = vmatpush1.bf16.msra.mxu0 0
      %365 = vmatprep.subr.bf16.mxu0 0
      %366 = vmatpush1.bf16.msra.mxu0 0
      %367 = vmatprep.subr.bf16.mxu0 0
      %368 = vmatpush1.bf16.msra.mxu0 0
      %369 = vmatprep.subr.bf16.mxu0 0
      %370 = vmatpush1.bf16.msra.mxu0 %v353
      %371 = vmatprep.subr.bf16.mxu0 0
      %372 = vmatpush2.bf16.msra.mxu0 0
      %373 = vmatprep.subr.bf16.mxu0 0
      %374 = vmatpush2.bf16.msra.mxu0 0
      %375 = vmatprep.subr.bf16.mxu0 0
      %376 = vmatpush2.bf16.msra.mxu0 0
      %377 = vmatprep.subr.bf16.mxu0 0
      %378 = vmatpush2.bf16.msra.mxu0 0
      %379 = vmatprep.subr.bf16.mxu0 0
      %380 = vmatpush2.bf16.msra.mxu0 0
      %381 = vmatprep.subr.bf16.mxu0 0
      %382 = vmatpush2.bf16.msra.mxu0 0
      %383 = vmatprep.subr.bf16.mxu0 0
      %384 = vmatpush2.bf16.msra.mxu0 0
      %385 = vmatprep.subr.bf16.mxu0 0
      %386 = vmatpush2.bf16.msra.mxu0 0
      %387 = vmatprep.mubr.bf16.mxu0 0
      %388 = vmatmul.mubr.bf16.gmra.mxu0 %v349
      %v389 = vpop.f32.mrf.mxu0
      %v390 = vadd.f32 0.0, %v389
      %v391 = vpop.f32.mrf.mxu0
      %v392 = vpop.f32.mrf.mxu0
      %v393 = vpop.f32.mrf.mxu0
      %394 = vdwg.mxu0
      %v395 = vrcp.pop %v346
      %v396 = vmul.f32 %v390, %v395
      %v397 = vpack.c.bf16 %v396, %v396
      %vm398 = vcmask 519168
      %399 = vst.msk [vmem:[%s277] sm:$0xf] %vm398, %v397
      %v401 = vunpack.c.l.b16 %v283
      %v402 = vpack.c.b16 %v401, %v401
      %403 = vrot.lane.b32.xlu0 %v402, 64
      %v404 = vpop.permute.xlu0 %403
      %v406 = vunpack.c.l.b16 %v281
      %v407 = vpack.c.b16 %v406, %v406
      %408 = vrot.lane.b32.xlu0 %v407, 64
      %v409 = vpop.permute.xlu0 %408
      %v411 = vsel %vm284, %v404, 0
      %v414 = vsel %vm284, %v409, 0
      %416 = vmatprep.subr.bf16.mxu0 0
      %417 = vmatpush1.bf16.xpose.msra.mxu0 0
      %418 = vmatprep.subr.bf16.mxu0 0
      %419 = vmatpush1.bf16.xpose.msra.mxu0 0
      %420 = vmatprep.subr.bf16.mxu0 0
      %421 = vmatpush1.bf16.xpose.msra.mxu0 0
      %422 = vmatprep.subr.bf16.mxu0 0
      %423 = vmatpush1.bf16.xpose.msra.mxu0 0
      %424 = vmatprep.subr.bf16.mxu0 0
      %425 = vmatpush1.bf16.xpose.msra.mxu0 0
      %426 = vmatprep.subr.bf16.mxu0 0
      %427 = vmatpush1.bf16.xpose.msra.mxu0 0
      %428 = vmatprep.subr.bf16.mxu0 0
      %429 = vmatpush1.bf16.xpose.msra.mxu0 0
      %430 = vmatprep.subr.bf16.mxu0 0
      %431 = vmatpush1.bf16.xpose.msra.mxu0 %v414
      %432 = vmatprep.subr.bf16.mxu0 0
      %433 = vmatpush2.bf16.xpose.msra.mxu0 0
      %434 = vmatprep.subr.bf16.mxu0 0
      %435 = vmatpush2.bf16.xpose.msra.mxu0 0
      %436 = vmatprep.subr.bf16.mxu0 0
      %437 = vmatpush2.bf16.xpose.msra.mxu0 0
      %438 = vmatprep.subr.bf16.mxu0 0
      %439 = vmatpush2.bf16.xpose.msra.mxu0 0
      %440 = vmatprep.subr.bf16.mxu0 0
      %441 = vmatpush2.bf16.xpose.msra.mxu0 0
      %442 = vmatprep.subr.bf16.mxu0 0
      %443 = vmatpush2.bf16.xpose.msra.mxu0 0
      %444 = vmatprep.subr.bf16.mxu0 0
      %445 = vmatpush2.bf16.xpose.msra.mxu0 0
      %446 = vmatprep.subr.bf16.mxu0 0
      %447 = vmatpush2.bf16.xpose.msra.mxu0 0
      %448 = vmatprep.mubr.bf16.mxu0 0
      %449 = vmatmul.mubr.bf16.gmra.mxu0 %v411
      %v450 = vpop.f32.mrf.mxu0
      %v451 = vadd.f32 0.0, %v450
      %v452 = vpop.f32.mrf.mxu0
      %v453 = vpop.f32.mrf.mxu0
      %v454 = vpop.f32.mrf.mxu0
      %455 = vdwg.mxu0
      %v456 = vsel %vm335, %v451, -1e+30
      %v457 = vsel %vm337, %v456, -inf
      %458 = vmax.xlane.f32.xlu0 %v457
      %v459 = vpop.xlane.xlu0 %458
      %v460 = vsub.f32 %v456, %v459
      %v461 = vmul.f32 %v460, 1.442695
      %v462 = vpow.pop %v461
      %v463 = vsel %vm337, %v462, 0.0
      %464 = vadd.xlane.f32.xlu0 %v463
      %v465 = vpop.xlane.xlu0 %464
      %v466 = vpack.c.bf16 %v462, %v462
      %v468 = vunpack.c.l.b16 %v282
      %v469 = vpack.c.b16 %v468, %v468
      %470 = vrot.lane.b32.xlu0 %v469, 64
      %v471 = vpop.permute.xlu0 %470
      %v473 = vsel %vm337, %v466, 0
      %v476 = vsel %vm351, %v471, 0
      %478 = vmatprep.subr.bf16.mxu0 0
      %479 = vmatpush1.bf16.msra.mxu0 0
      %480 = vmatprep.subr.bf16.mxu0 0
      %481 = vmatpush1.bf16.msra.mxu0 0
      %482 = vmatprep.subr.bf16.mxu0 0
      %483 = vmatpush1.bf16.msra.mxu0 0
      %484 = vmatprep.subr.bf16.mxu0 0
      %485 = vmatpush1.bf16.msra.mxu0 0
      %486 = vmatprep.subr.bf16.mxu0 0
      %487 = vmatpush1.bf16.msra.mxu0 0
      %488 = vmatprep.subr.bf16.mxu0 0
      %489 = vmatpush1.bf16.msra.mxu0 0
      %490 = vmatprep.subr.bf16.mxu0 0
      %491 = vmatpush1.bf16.msra.mxu0 0
      %492 = vmatprep.subr.bf16.mxu0 0
      %493 = vmatpush1.bf16.msra.mxu0 %v476
      %494 = vmatprep.subr.bf16.mxu0 0
      %495 = vmatpush2.bf16.msra.mxu0 0
      %496 = vmatprep.subr.bf16.mxu0 0
      %497 = vmatpush2.bf16.msra.mxu0 0
      %498 = vmatprep.subr.bf16.mxu0 0
      %499 = vmatpush2.bf16.msra.mxu0 0
      %500 = vmatprep.subr.bf16.mxu0 0
      %501 = vmatpush2.bf16.msra.mxu0 0
      %502 = vmatprep.subr.bf16.mxu0 0
      %503 = vmatpush2.bf16.msra.mxu0 0
      %504 = vmatprep.subr.bf16.mxu0 0
      %505 = vmatpush2.bf16.msra.mxu0 0
      %506 = vmatprep.subr.bf16.mxu0 0
      %507 = vmatpush2.bf16.msra.mxu0 0
      %508 = vmatprep.subr.bf16.mxu0 0
      %509 = vmatpush2.bf16.msra.mxu0 0
      %510 = vmatprep.mubr.bf16.mxu0 0
      %511 = vmatmul.mubr.bf16.gmra.mxu0 %v473
      %v512 = vpop.f32.mrf.mxu0
      %v513 = vadd.f32 0.0, %v512
      %v514 = vpop.f32.mrf.mxu0
      %v515 = vpop.f32.mrf.mxu0
      %v516 = vpop.f32.mrf.mxu0
      %517 = vdwg.mxu0
      %v518 = vrcp.pop %v465
      %v519 = vmul.f32 %v513, %v518
      %v520 = vpack.c.bf16 %v519, %v519
      %v522 = vunpack.c.l.b16 %v520
      %v523 = vpack.c.b16 %v522, %v522
      %524 = vrot.lane.b32.xlu0 %v523, 64
      %v525 = vpop.permute.xlu0 %524
      %vm527 = vcmask 1043968
      %528 = vst.msk [vmem:[%s277] sm:$0xf] %vm527, %v525
      %p529 = scmp.lt.s32.totalorder %s18, 1
      %s530 = scalar_select %p529, %s18, 1
      %p531 = scmp.lt.s32.totalorder %s19, 1
      %s532 = scalar_select %p531, %s19, 1
      %s533 = smul.addr %s530, 2
      %s534 = sadd.s32 %s532, %s533
      %s535 = smul.addr %s534, 4
      %s536 = scalar_lea.vmem %s3, %s535
      // Predicated region
      $region33: #{forward.14} parent=31 // pred_check
        %p537 = pneg %p134
      $region34: #{forward.14} parent=31 // pred_check_branch
        %539 = sbr.rel (%p537) target = $region36
      $region35: #{forward.14} parent=31 // pred_region
        _
      $region36: #{forward.14} parent=31 // pred_fallthru
        _
    $region32: #{forward.14} parent=5 // pred_fallthru
      _
    %p540 = scmp.le.s32.totalorder 2, %s9
    // Predicated region
    $region37: #{forward.14} parent=5 // pred_check
      %p541 = pneg %p540
    $region38: #{forward.14} parent=5 // pred_check_branch
      %543 = sbr.rel (%p541) target = $region40
    $region39: #{forward.14} parent=5 // pred_region
      %s544 = ssub.s32 %s9, 2
      // Predicated region
      $region41: #{forward.14} parent=39 // pred_check
        %p545 = pneg %p140
      $region42: #{forward.14} parent=39 // pred_check_branch
        %547 = sbr.rel (%p545) target = $region44
      $region43: #{forward.14} parent=39 // pred_region
        %p548 = scmp.lt.s32.totalorder %s20, 1
        %s549 = scalar_select %p548, %s20, 1
        %p550 = scmp.lt.s32.totalorder %s21, 1
        %s551 = scalar_select %p550, %s21, 1
        %s552 = smul.addr %s549, 2
        %s553 = sadd.s32 %s551, %s552
        %s554 = smul.addr %s553, 4
        %s555 = scalar_lea.vmem %s3, %s554
      $region44: #{forward.14} parent=39 // pred_fallthru
        _
    $region40: #{forward.14} parent=5 // pred_fallthru
      _
  $region6: #{forward.14} parent=0 // loop_footer
    %s13 = sadd.s32 1, %s9
  $region7: #{forward.14} parent=0 // loop_footer_branch
    %8 = sbr.rel target = $region3
  $region8: #{forward.14} parent=0 // loop_exit
    _

// kernel: forward.15
$region0: #{forward.15}
  #allocation0 [shape = 'u32[]', space=smem, size = 0x4, offset = 0x4, fixed_abs, tag = 'smem constant byte address 0x4 - core index']
  #allocation1 [shape = 'u32[144,128]{1,0:T(1,128)}', space=vmem, size = 0x12000, scoped, tag = 'internal scratch']
  %s0 = inlined_call_operand.vmem [shape: bf16[16,256], index: 0, kind: input, shape index: {}]
  %s1 = inlined_call_operand.vmem [shape: bf16[256,256], index: 1, kind: input, shape index: {}]
  %s2 = inlined_call_operand.vmem [shape: f32[1,256], index: 2, kind: input, shape index: {}]
  %s3 = inlined_call_operand.vmem [shape: bf16[16,256], index: 3, kind: input, shape index: {}]
  %s4 = inlined_call_operand.vmem [shape: bf16[16,256], index: 4, kind: output, shape index: {}]
  %s5 = sld [smem:[#allocation0]]
  $region26: #{forward.15} parent=0
    _
  %s7 = ssub.s32 1, %s5
  %s8 = scalar_select 0, %s7, %s5
  // Predicated region
  $region2: #{forward.15} parent=0 // pred_check
    _
  $region3: #{forward.15} parent=0 // pred_check_branch
    %10 = sbr.rel (0) target = $region5
  $region4: #{forward.15} parent=0 // pred_region
    _
  $region5: #{forward.15} parent=0 // pred_fallthru
    _
  // Predicated region
  $region6: #{forward.15} parent=0 // pred_check
    _
  $region7: #{forward.15} parent=0 // pred_check_branch
    %12 = sbr.rel (0) target = $region9
  $region8: #{forward.15} parent=0 // pred_region
    _
  $region9: #{forward.15} parent=0 // pred_fallthru
    _
  // Predicated region
  $region10: #{forward.15} parent=0 // pred_check
    _
  $region11: #{forward.15} parent=0 // pred_check_branch
    %14 = sbr.rel (0) target = $region13
  $region12: #{forward.15} parent=0 // pred_region
    _
  $region13: #{forward.15} parent=0 // pred_fallthru
    _
  // Predicated region
  $region14: #{forward.15} parent=0 // pred_check
    _
  $region15: #{forward.15} parent=0 // pred_check_branch
    %16 = sbr.rel (0) target = $region17
  $region16: #{forward.15} parent=0 // pred_region
    _
  $region17: #{forward.15} parent=0 // pred_fallthru
    _
  %v17 = vld [vmem:[%s0] sm:$0xff]
  %v18 = vld [vmem:[%s0 + $0x8] sm:$0xff]
  %v19 = vld [vmem:[%s1] sm:$0xff]
  %v20 = vld [vmem:[%s1 + $0x8] sm:$0xff]
  %v21 = vld [vmem:[%s1 + $0x10] sm:$0xff]
  %v22 = vld [vmem:[%s1 + $0x18] sm:$0xff]
  %v23 = vld [vmem:[%s1 + $0x20] sm:$0xff]
  %v24 = vld [vmem:[%s1 + $0x28] sm:$0xff]
  %v25 = vld [vmem:[%s1 + $0x30] sm:$0xff]
  %v26 = vld [vmem:[%s1 + $0x38] sm:$0xff]
  %v27 = vld [vmem:[%s1 + $0x40] sm:$0xff]
  %v28 = vld [vmem:[%s1 + $0x48] sm:$0xff]
  %v29 = vld [vmem:[%s1 + $0x50] sm:$0xff]
  %v30 = vld [vmem:[%s1 + $0x58] sm:$0xff]
  %v31 = vld [vmem:[%s1 + $0x60] sm:$0xff]
  %v32 = vld [vmem:[%s1 + $0x68] sm:$0xff]
  %v33 = vld [vmem:[%s1 + $0x70] sm:$0xff]
  %v34 = vld [vmem:[%s1 + $0x78] sm:$0xff]
  %v35 = vld [vmem:[%s1 + $0x80] sm:$0xff]
  %v36 = vld [vmem:[%s1 + $0x88] sm:$0xff]
  %v37 = vld [vmem:[%s1 + $0x90] sm:$0xff]
  %v38 = vld [vmem:[%s1 + $0x98] sm:$0xff]
  %v39 = vld [vmem:[%s1 + $0xa0] sm:$0xff]
  %v40 = vld [vmem:[%s1 + $0xa8] sm:$0xff]
  %v41 = vld [vmem:[%s1 + $0xb0] sm:$0xff]
  %v42 = vld [vmem:[%s1 + $0xb8] sm:$0xff]
  %v43 = vld [vmem:[%s1 + $0xc0] sm:$0xff]
  %v44 = vld [vmem:[%s1 + $0xc8] sm:$0xff]
  %v45 = vld [vmem:[%s1 + $0xd0] sm:$0xff]
  %v46 = vld [vmem:[%s1 + $0xd8] sm:$0xff]
  %v47 = vld [vmem:[%s1 + $0xe0] sm:$0xff]
  %v48 = vld [vmem:[%s1 + $0xe8] sm:$0xff]
  %v49 = vld [vmem:[%s1 + $0xf0] sm:$0xff]
  %v50 = vld [vmem:[%s1 + $0xf8] sm:$0xff]
  %v51 = vld [vmem:[%s2] sm:$0x3]
  %v53 = vlaneseq
  %v54 = vshrl.u32 %v53, 7
  %v55 = vsub.s32 0, %v54
  %v56 = vrot.slane %v51, %v55
  %v57 = vlaneseq
  %v58 = vshrl.u32 %v57, 7
  %v59 = vsub.s32 1, %v58
  %v60 = vrot.slane %v51, %v59
  %v65 = vunpack.c.l.b16 %v17
  %v66 = vunpack.c.h.b16 %v17
  %v67 = vunpack.c.l.b16 %v18
  %v68 = vunpack.c.h.b16 %v18
  %v69 = vpack.c.b16 %v67, %v65
  %v70 = vpack.c.b16 %v68, %v66
  %v105 = vunpack.c.l.b16 %v19
  %v106 = vunpack.c.h.b16 %v19
  %v107 = vunpack.c.l.b16 %v20
  %v108 = vunpack.c.h.b16 %v20
  %v109 = vunpack.c.l.b16 %v21
  %v110 = vunpack.c.h.b16 %v21
  %v111 = vunpack.c.l.b16 %v22
  %v112 = vunpack.c.h.b16 %v22
  %v113 = vunpack.c.l.b16 %v23
  %v114 = vunpack.c.h.b16 %v23
  %v115 = vunpack.c.l.b16 %v24
  %v116 = vunpack.c.h.b16 %v24
  %v117 = vunpack.c.l.b16 %v25
  %v118 = vunpack.c.h.b16 %v25
  %v119 = vunpack.c.l.b16 %v26
  %v120 = vunpack.c.h.b16 %v26
  %v121 = vunpack.c.l.b16 %v27
  %v122 = vunpack.c.h.b16 %v27
  %v123 = vunpack.c.l.b16 %v28
  %v124 = vunpack.c.h.b16 %v28
  %v125 = vunpack.c.l.b16 %v29
  %v126 = vunpack.c.h.b16 %v29
  %v127 = vunpack.c.l.b16 %v30
  %v128 = vunpack.c.h.b16 %v30
  %v129 = vunpack.c.l.b16 %v31
  %v130 = vunpack.c.h.b16 %v31
  %v131 = vunpack.c.l.b16 %v32
  %v132 = vunpack.c.h.b16 %v32
  %v133 = vunpack.c.l.b16 %v33
  %v134 = vunpack.c.h.b16 %v33
  %v135 = vunpack.c.l.b16 %v34
  %v136 = vunpack.c.h.b16 %v34
  %v137 = vunpack.c.l.b16 %v35
  %v138 = vunpack.c.h.b16 %v35
  %v139 = vunpack.c.l.b16 %v36
  %v140 = vunpack.c.h.b16 %v36
  %v141 = vunpack.c.l.b16 %v37
  %v142 = vunpack.c.h.b16 %v37
  %v143 = vunpack.c.l.b16 %v38
  %v144 = vunpack.c.h.b16 %v38
  %v145 = vunpack.c.l.b16 %v39
  %v146 = vunpack.c.h.b16 %v39
  %v147 = vunpack.c.l.b16 %v40
  %v148 = vunpack.c.h.b16 %v40
  %v149 = vunpack.c.l.b16 %v41
  %v150 = vunpack.c.h.b16 %v41
  %v151 = vunpack.c.l.b16 %v42
  %v152 = vunpack.c.h.b16 %v42
  %v153 = vunpack.c.l.b16 %v43
  %v154 = vunpack.c.h.b16 %v43
  %v155 = vunpack.c.l.b16 %v44
  %v156 = vunpack.c.h.b16 %v44
  %v157 = vunpack.c.l.b16 %v45
  %v158 = vunpack.c.h.b16 %v45
  %v159 = vunpack.c.l.b16 %v46
  %v160 = vunpack.c.h.b16 %v46
  %v161 = vunpack.c.l.b16 %v47
  %v162 = vunpack.c.h.b16 %v47
  %v163 = vunpack.c.l.b16 %v48
  %v164 = vunpack.c.h.b16 %v48
  %v165 = vunpack.c.l.b16 %v49
  %v166 = vunpack.c.h.b16 %v49
  %v167 = vunpack.c.l.b16 %v50
  %v168 = vunpack.c.h.b16 %v50
  %v169 = vpack.c.b16 %v107, %v105
  %v170 = vpack.c.b16 %v108, %v106
  %v171 = vpack.c.b16 %v111, %v109
  %v172 = vpack.c.b16 %v112, %v110
  %v173 = vpack.c.b16 %v115, %v113
  %v174 = vpack.c.b16 %v116, %v114
  %v175 = vpack.c.b16 %v119, %v117
  %v176 = vpack.c.b16 %v120, %v118
  %v177 = vpack.c.b16 %v123, %v121
  %v178 = vpack.c.b16 %v124, %v122
  %v179 = vpack.c.b16 %v127, %v125
  %v180 = vpack.c.b16 %v128, %v126
  %v181 = vpack.c.b16 %v131, %v129
  %v182 = vpack.c.b16 %v132, %v130
  %v183 = vpack.c.b16 %v135, %v133
  %v184 = vpack.c.b16 %v136, %v134
  %v185 = vpack.c.b16 %v139, %v137
  %v186 = vpack.c.b16 %v140, %v138
  %v187 = vpack.c.b16 %v143, %v141
  %v188 = vpack.c.b16 %v144, %v142
  %v189 = vpack.c.b16 %v147, %v145
  %v190 = vpack.c.b16 %v148, %v146
  %v191 = vpack.c.b16 %v151, %v149
  %v192 = vpack.c.b16 %v152, %v150
  %v193 = vpack.c.b16 %v155, %v153
  %v194 = vpack.c.b16 %v156, %v154
  %v195 = vpack.c.b16 %v159, %v157
  %v196 = vpack.c.b16 %v160, %v158
  %v197 = vpack.c.b16 %v163, %v161
  %v198 = vpack.c.b16 %v164, %v162
  %v199 = vpack.c.b16 %v167, %v165
  %v200 = vpack.c.b16 %v168, %v166
  %233 = vmatprep.subr.bf16.mxu0 %v184
  %234 = vmatpush1.bf16.msra.mxu0 %v183
  %235 = vmatprep.subr.bf16.mxu0 %v182
  %236 = vmatpush1.bf16.msra.mxu0 %v181
  %237 = vmatprep.subr.bf16.mxu0 %v180
  %238 = vmatpush1.bf16.msra.mxu0 %v179
  %239 = vmatprep.subr.bf16.mxu0 %v178
  %240 = vmatpush1.bf16.msra.mxu0 %v177
  %241 = vmatprep.subr.bf16.mxu0 %v176
  %242 = vmatpush1.bf16.msra.mxu0 %v175
  %243 = vmatprep.subr.bf16.mxu0 %v174
  %244 = vmatpush1.bf16.msra.mxu0 %v173
  %245 = vmatprep.subr.bf16.mxu0 %v172
  %246 = vmatpush1.bf16.msra.mxu0 %v171
  %247 = vmatprep.subr.bf16.mxu0 %v170
  %248 = vmatpush1.bf16.msra.mxu0 %v169
  %249 = vmatprep.subr.bf16.mxu0 %v200
  %250 = vmatpush2.bf16.msra.mxu0 %v199
  %251 = vmatprep.subr.bf16.mxu0 %v198
  %252 = vmatpush2.bf16.msra.mxu0 %v197
  %253 = vmatprep.subr.bf16.mxu0 %v196
  %254 = vmatpush2.bf16.msra.mxu0 %v195
  %255 = vmatprep.subr.bf16.mxu0 %v194
  %256 = vmatpush2.bf16.msra.mxu0 %v193
  %257 = vmatprep.subr.bf16.mxu0 %v192
  %258 = vmatpush2.bf16.msra.mxu0 %v191
  %259 = vmatprep.subr.bf16.mxu0 %v190
  %260 = vmatpush2.bf16.msra.mxu0 %v189
  %261 = vmatprep.subr.bf16.mxu0 %v188
  %262 = vmatpush2.bf16.msra.mxu0 %v187
  %263 = vmatprep.subr.bf16.mxu0 %v186
  %264 = vmatpush2.bf16.msra.mxu0 %v185
  %265 = vmatprep.mubr.bf16.mxu0 %v70
  %266 = vmatmul.mubr.bf16.gmra.mxu0 %v69
  %v267 = vpop.f32.mrf.mxu0
  %v268 = vadd.f32 %v56, %v267
  %v269 = vpop.f32.mrf.mxu0
  %v270 = vadd.f32 %v60, %v269
  %v271 = vpop.f32.mrf.mxu0
  %v272 = vadd.f32 %v56, %v271
  %v273 = vpop.f32.mrf.mxu0
  %v274 = vadd.f32 %v60, %v273
  %275 = vdwg.mxu0
  %v276 = vld [vmem:[%s3] sm:$0xff]
  %v277 = vld [vmem:[%s3 + $0x8] sm:$0xff]
  %v278 = vunpack.c.l.bf16 %v276
  %v279 = vunpack.c.h.bf16 %v276
  %v280 = vunpack.c.l.bf16 %v277
  %v281 = vunpack.c.h.bf16 %v277
  %v282 = vadd.f32 %v268, %v278
  %v283 = vadd.f32 %v270, %v279
  %v284 = vadd.f32 %v272, %v280
  %v285 = vadd.f32 %v274, %v281
  %v286 = vpack.c.bf16 %v284, %v282
  %v287 = vpack.c.bf16 %v285, %v283
  %v290 = vunpack.c.l.b16 %v286
  %v291 = vunpack.c.l.b16 %v287
  %v292 = vunpack.c.h.b16 %v286
  %v293 = vunpack.c.h.b16 %v287
  %v294 = vpack.c.b16 %v291, %v290
  %v295 = vpack.c.b16 %v293, %v292
  %298 = vst [vmem:[%s4] sm:$0xff] %v294
  %299 = vst [vmem:[%s4 + $0x8] sm:$0xff] %v295
  // Predicated region
  $region18: #{forward.15} parent=0 // pred_check
    _
  $region19: #{forward.15} parent=0 // pred_check_branch
    %301 = sbr.rel (0) target = $region21
  $region20: #{forward.15} parent=0 // pred_region
    _
  $region21: #{forward.15} parent=0 // pred_fallthru
    _
  // Predicated region
  $region22: #{forward.15} parent=0 // pred_check
    _
  $region23: #{forward.15} parent=0 // pred_check_branch
    %303 = sbr.rel (0) target = $region25
  $region24: #{forward.15} parent=0 // pred_region
    _
  $region25: #{forward.15} parent=0 // pred_fallthru
    _

// kernel: forward.13
$region0: #{forward.13}
  #allocation0 [shape = 'u32[]', space=smem, size = 0x4, offset = 0x4, fixed_abs, tag = 'smem constant byte address 0x4 - core index']
  #allocation1 [shape = 'u32[144,128]{1,0:T(1,128)}', space=vmem, size = 0x12000, scoped, tag = 'internal scratch']
  %s0 = inlined_call_operand.vmem [shape: bf16[16,256], index: 0, kind: input, shape index: {}]
  %s1 = inlined_call_operand.vmem [shape: bf16[256,768], index: 1, kind: input, shape index: {}]
  %s2 = inlined_call_operand.vmem [shape: f32[1,768], index: 2, kind: input, shape index: {}]
  %s3 = inlined_call_operand.vmem [shape: f32[1,256], index: 3, kind: input, shape index: {}]
  %s4 = inlined_call_operand.vmem [shape: f32[1,256], index: 4, kind: input, shape index: {}]
  %s5 = inlined_call_operand.vmem [shape: bf16[16,768], index: 5, kind: output, shape index: {}]
  %s6 = sld [smem:[#allocation0]]
  $region125: #{forward.13} parent=0
    _
  %s8 = ssub.s32 1, %s6
  %s9 = scalar_select 0, %s8, %s6
  $region1: #{forward.13} parent=0
    #allocation2 [shape = 'u8[262144]{0}', space=vmem, size = 0x40000, scoped, tag = 'input window, operand 1']
    #allocation3 [shape = 'u8[16384]{0}', space=vmem, size = 0x4000, scoped, tag = 'output window, operand 0']
    loop: start=0, step=1, limit=5
    $region2: #{forward.13} parent=1 // loop_pre_header
      _
    $region3: #{forward.13} parent=1 // loop_header
      %s11 = sphi 0, %s15
      %p12 = scmp.ge.s32.totalorder %s11, 5
      %s18 = sphi 0, %s30
      %s19 = sphi 0, %s26
      %s20 = sphi 0, %s18
      %s21 = sphi 0, %s19
      %s22 = sphi 0, %s20
      %s23 = sphi 0, %s21
      %s33 = sphi 0, %s35
      %s36 = sphi 0, %s33
      %s37 = sphi 0, %s36
      %s53 = sphi 0, %s37
      %s59 = sphi 0, %s61
      %s62 = sphi 0, %s59
      %s63 = sphi 0, %s62
      %s79 = sphi 0, %s63
      %s85 = sphi 0, %s87
      %s88 = sphi 0, %s85
      %s89 = sphi 0, %s88
      %s105 = sphi 0, %s89
      %s109 = sphi 0, %s109
      %s111 = sphi 0, %s109
      %s112 = sphi 0, %s111
      %s126 = sphi 0, %s112
      %s130 = sphi 0, %s130
      %s132 = sphi 0, %s130
      %s133 = sphi 0, %s132
      %s147 = sphi 0, %s133
      %s155 = sphi 0, %s157
      %s158 = sphi 0, %s155
      %s159 = sphi 0, %s158
      %s175 = sphi 0, %s159
    $region4: #{forward.13} parent=1 // loop_header_branch
      %14 = sbr.rel (%p12) target = $region8
    $region5: #{forward.13} parent=1 // loop_body
      %s16 = ssub.s32 %s11, 1
      %s17 = ssub.s32 %s11, 2
      %s24 = sadd.s32 1, %s19
      %p25 = scmp.ge.s32.totalorder %s24, 3
      %s26 = scalar_select %p25, 0, %s24
      %s27 = sadd.s32 1, %s18
      %s28 = scalar_select %p25, %s27, %s18
      %p29 = scmp.ge.s32.totalorder %s28, 1
      %s30 = scalar_select %p29, 0, %s28
      %s31 = ssub.s32 %s18, %s30
      %p32 = scmp.eq.s32.totalorder %s31, 0
      %s34 = sadd.s32 %s33, 1
      %s35 = scalar_select %p32, %s33, %s34
      %p38 = pneg %p32
      %p39 = scmp.eq.s32.totalorder %s11, 2
      %p40 = por %p38, %p39
      %p41 = scmp.ne.s32.totalorder %s33, %s36
      %p42 = scmp.eq.s32.totalorder %s11, 0
      %p43 = por %p41, %p42
      %p44 = scmp.ne.s32.totalorder %s33, %s36
      %p45 = scmp.eq.s32.totalorder %s16, 2
      %p46 = por %p44, %p45
      %p47 = scmp.ne.s32.totalorder %s36, %s37
      %p48 = scmp.eq.s32.totalorder %s16, 0
      %p49 = por %p47, %p48
      %p50 = scmp.ne.s32.totalorder %s36, %s37
      %p51 = scmp.eq.s32.totalorder %s17, 2
      %p52 = por %p50, %p51
      %p54 = scmp.ne.s32.totalorder %s37, %s53
      %p55 = scmp.eq.s32.totalorder %s17, 0
      %p56 = por %p54, %p55
      %s57 = ssub.s32 %s19, %s26
      %p58 = scmp.eq.s32.totalorder %s57, 0
      %s60 = sadd.s32 %s59, 1
      %s61 = scalar_select %p58, %s59, %s60
      %p64 = pneg %p58
      %p65 = scmp.eq.s32.totalorder %s11, 2
      %p66 = por %p64, %p65
      %p67 = scmp.ne.s32.totalorder %s59, %s62
      %p68 = scmp.eq.s32.totalorder %s11, 0
      %p69 = por %p67, %p68
      %p70 = scmp.ne.s32.totalorder %s59, %s62
      %p71 = scmp.eq.s32.totalorder %s16, 2
      %p72 = por %p70, %p71
      %p73 = scmp.ne.s32.totalorder %s62, %s63
      %p74 = scmp.eq.s32.totalorder %s16, 0
      %p75 = por %p73, %p74
      %p76 = scmp.ne.s32.totalorder %s62, %s63
      %p77 = scmp.eq.s32.totalorder %s17, 2
      %p78 = por %p76, %p77
      %p80 = scmp.ne.s32.totalorder %s63, %s79
      %p81 = scmp.eq.s32.totalorder %s17, 0
      %p82 = por %p80, %p81
      %s83 = ssub.s32 %s19, %s26
      %p84 = scmp.eq.s32.totalorder %s83, 0
      %s86 = sadd.s32 %s85, 1
      %s87 = scalar_select %p84, %s85, %s86
      %p90 = pneg %p84
      %p91 = scmp.eq.s32.totalorder %s11, 2
      %p92 = por %p90, %p91
      %p93 = scmp.ne.s32.totalorder %s85, %s88
      %p94 = scmp.eq.s32.totalorder %s11, 0
      %p95 = por %p93, %p94
      %p96 = scmp.ne.s32.totalorder %s85, %s88
      %p97 = scmp.eq.s32.totalorder %s16, 2
      %p98 = por %p96, %p97
      %p99 = scmp.ne.s32.totalorder %s88, %s89
      %p100 = scmp.eq.s32.totalorder %s16, 0
      %p101 = por %p99, %p100
      %p102 = scmp.ne.s32.totalorder %s88, %s89
      %p103 = scmp.eq.s32.totalorder %s17, 2
      %p104 = por %p102, %p103
      %p106 = scmp.ne.s32.totalorder %s89, %s105
      %p107 = scmp.eq.s32.totalorder %s17, 0
      %p108 = por %p106, %p107
      %s110 = sadd.s32 %s109, 1
      %p113 = scmp.eq.s32.totalorder %s11, 2
      %p114 = scmp.ne.s32.totalorder %s109, %s111
      %p115 = scmp.eq.s32.totalorder %s11, 0
      %p116 = por %p114, %p115
      %p117 = scmp.ne.s32.totalorder %s109, %s111
      %p118 = scmp.eq.s32.totalorder %s16, 2
      %p119 = por %p117, %p118
      %p120 = scmp.ne.s32.totalorder %s111, %s112
      %p121 = scmp.eq.s32.totalorder %s16, 0
      %p122 = por %p120, %p121
      %p123 = scmp.ne.s32.totalorder %s111, %s112
      %p124 = scmp.eq.s32.totalorder %s17, 2
      %p125 = por %p123, %p124
      %p127 = scmp.ne.s32.totalorder %s112, %s126
      %p128 = scmp.eq.s32.totalorder %s17, 0
      %p129 = por %p127, %p128
      %s131 = sadd.s32 %s130, 1
      %p134 = scmp.eq.s32.totalorder %s11, 2
      %p135 = scmp.ne.s32.totalorder %s130, %s132
      %p136 = scmp.eq.s32.totalorder %s11, 0
      %p137 = por %p135, %p136
      %p138 = scmp.ne.s32.totalorder %s130, %s132
      %p139 = scmp.eq.s32.totalorder %s16, 2
      %p140 = por %p138, %p139
      %p141 = scmp.ne.s32.totalorder %s132, %s133
      %p142 = scmp.eq.s32.totalorder %s16, 0
      %p143 = por %p141, %p142
      %p144 = scmp.ne.s32.totalorder %s132, %s133
      %p145 = scmp.eq.s32.totalorder %s17, 2
      %p146 = por %p144, %p145
      %p148 = scmp.ne.s32.totalorder %s133, %s147
      %p149 = scmp.eq.s32.totalorder %s17, 0
      %p150 = por %p148, %p149
      %s151 = ssub.s32 %s18, %s30
      %s152 = ssub.s32 %s19, %s26
      %s153 = sor.u32 %s151, %s152
      %p154 = scmp.eq.s32.totalorder %s153, 0
      %s156 = sadd.s32 %s155, 1
      %s157 = scalar_select %p154, %s155, %s156
      %p160 = pneg %p154
      %p161 = scmp.eq.s32.totalorder %s11, 2
      %p162 = por %p160, %p161
      %p163 = scmp.ne.s32.totalorder %s155, %s158
      %p164 = scmp.eq.s32.totalorder %s11, 0
      %p165 = por %p163, %p164
      %p166 = scmp.ne.s32.totalorder %s155, %s158
      %p167 = scmp.eq.s32.totalorder %s16, 2
      %p168 = por %p166, %p167
      %p169 = scmp.ne.s32.totalorder %s158, %s159
      %p170 = scmp.eq.s32.totalorder %s16, 0
      %p171 = por %p169, %p170
      %p172 = scmp.ne.s32.totalorder %s158, %s159
      %p173 = scmp.eq.s32.totalorder %s17, 2
      %p174 = por %p172, %p173
      %p176 = scmp.ne.s32.totalorder %s159, %s175
      %p177 = scmp.eq.s32.totalorder %s17, 0
      %p178 = por %p176, %p177
      %p179 = scmp.le.s32.totalorder 1, %s11
      %p180 = scmp.lt.s32.totalorder %s11, 4
      %p181 = pnand %p179, %p180
      %p182 = pneg %p181
      // Predicated region
      $region9: #{forward.13} parent=5 // pred_check
        _
      $region10: #{forward.13} parent=5 // pred_check_branch
        %184 = sbr.rel (%p181) target = $region12
      $region11: #{forward.13} parent=5 // pred_region
        %s185 = ssub.s32 %s11, 1
        // Predicated region
        $region13: #{forward.13} parent=11 // pred_check
          %p186 = pneg %p49
        $region14: #{forward.13} parent=11 // pred_check_branch
          %188 = sbr.rel (%p186) target = $region16
        $region15: #{forward.13} parent=11 // pred_region
          %s189 = smul.u32 2, %s20
          %p190 = scmp.lt.s32.totalorder %s189, 1
          %s191 = scalar_select %p190, %s189, 1
          %s192 = smul.addr %s191, 2
          %s193 = smul.addr %s192, 4
          %s194 = scalar_lea.vmem %s0, %s193
          %s195 = smul.u32 2, %s20
        $region16: #{forward.13} parent=11 // pred_fallthru
          _
        // Predicated region
        $region17: #{forward.13} parent=11 // pred_check
          %p196 = pneg %p122
        $region18: #{forward.13} parent=11 // pred_check_branch
          %198 = sbr.rel (%p196) target = $region20
        $region19: #{forward.13} parent=11 // pred_region
          _
        $region20: #{forward.13} parent=11 // pred_fallthru
          _
        // Predicated region
        $region21: #{forward.13} parent=11 // pred_check
          %p199 = pneg %p143
        $region22: #{forward.13} parent=11 // pred_check_branch
          %201 = sbr.rel (%p199) target = $region24
        $region23: #{forward.13} parent=11 // pred_region
          _
        $region24: #{forward.13} parent=11 // pred_fallthru
          _
      $region12: #{forward.13} parent=5 // pred_fallthru
        _
      %p202 = scmp.lt.s32.totalorder %s11, 3
      // Predicated region
      $region25: #{forward.13} parent=5 // pred_check
        %p203 = pneg %p202
      $region26: #{forward.13} parent=5 // pred_check_branch
        %205 = sbr.rel (%p203) target = $region28
      $region27: #{forward.13} parent=5 // pred_region
        // Predicated region
        $region29: #{forward.13} parent=27 // pred_check
          %p206 = pneg %p69
        $region30: #{forward.13} parent=27 // pred_check_branch
          %208 = sbr.rel (%p206) target = $region32
        $region31: #{forward.13} parent=27 // pred_region
          %s209 = sand.u32 %s59, 1
          %s210 = sand.u32 %s59, 1
          %s211 = smul.addr %s210, 256
          %s212 = scalar_lea.vmem [#allocation2], %s211
          %s213 = smul.u32 2, %s19
          %s214 = smul.addr %s213, 4
          %s215 = scalar_lea.vmem %s1, %s214
          // Predicated region
          $region33: #{forward.13} parent=31 // pred_check
            _
          $region34: #{forward.13} parent=31 // pred_check_branch
            %217 = sbr.rel (0) target = $region36
          $region35: #{forward.13} parent=31 // pred_region
            // Predicated region
            $region37: #{forward.13} parent=35 // pred_check
              _
            $region38: #{forward.13} parent=35 // pred_check_branch
              %219 = sbr.rel (0) target = $region40
            $region39: #{forward.13} parent=35 // pred_region
              // Predicated region
              $region52: #{forward.13} parent=39 // pred_check
                _
              $region53: #{forward.13} parent=39 // pred_check_branch
                %297 = sbr.rel (0) target = $region55
              $region54: #{forward.13} parent=39 // pred_region
                loop: start=0, step=1, limit=1
                $region56: #{forward.13} parent=54 // loop_pre_header
                  _
                $region57: #{forward.13} parent=54 // loop_header
                  %s299 = sphi 0, %s303
                  %p300 = scmp.ge.s32.totalorder %s299, 1
                  %s304 = sphi %s215, %s215
                  %s305 = sphi %s212, %s212
                $region58: #{forward.13} parent=54 // loop_header_branch
                  %302 = sbr.rel (%p300) target = $region62
                $region59: #{forward.13} parent=54 // loop_body
                  %v306 = vld [vmem:[%s304] sm:$0xff]
                  %307 = vst [vmem:[%s305] sm:$0xff] %v306
                  %v308 = vld [vmem:[%s304 + $0x18] sm:$0xff]
                  %309 = vst [vmem:[%s305 + $0x8] sm:$0xff] %v308
                  %v310 = vld [vmem:[%s304 + $0x30] sm:$0xff]
                  %311 = vst [vmem:[%s305 + $0x10] sm:$0xff] %v310
                  %v312 = vld [vmem:[%s304 + $0x48] sm:$0xff]
                  %313 = vst [vmem:[%s305 + $0x18] sm:$0xff] %v312
                  %v314 = vld [vmem:[%s304 + $0x60] sm:$0xff]
                  %315 = vst [vmem:[%s305 + $0x20] sm:$0xff] %v314
                  %v316 = vld [vmem:[%s304 + $0x78] sm:$0xff]
                  %317 = vst [vmem:[%s305 + $0x28] sm:$0xff] %v316
                  %v318 = vld [vmem:[%s304 + $0x90] sm:$0xff]
                  %319 = vst [vmem:[%s305 + $0x30] sm:$0xff] %v318
                  %v320 = vld [vmem:[%s304 + $0xa8] sm:$0xff]
                  %321 = vst [vmem:[%s305 + $0x38] sm:$0xff] %v320
                  %v322 = vld [vmem:[%s304 + $0xc0] sm:$0xff]
                  %323 = vst [vmem:[%s305 + $0x40] sm:$0xff] %v322
                  %v324 = vld [vmem:[%s304 + $0xd8] sm:$0xff]
                  %325 = vst [vmem:[%s305 + $0x48] sm:$0xff] %v324
                  %v326 = vld [vmem:[%s304 + $0xf0] sm:$0xff]
                  %327 = vst [vmem:[%s305 + $0x50] sm:$0xff] %v326
                  %v328 = vld [vmem:[%s304 + $0x108] sm:$0xff]
                  %329 = vst [vmem:[%s305 + $0x58] sm:$0xff] %v328
                  %v330 = vld [vmem:[%s304 + $0x120] sm:$0xff]
                  %331 = vst [vmem:[%s305 + $0x60] sm:$0xff] %v330
                  %v332 = vld [vmem:[%s304 + $0x138] sm:$0xff]
                  %333 = vst [vmem:[%s305 + $0x68] sm:$0xff] %v332
                  %v334 = vld [vmem:[%s304 + $0x150] sm:$0xff]
                  %335 = vst [vmem:[%s305 + $0x70] sm:$0xff] %v334
                  %v336 = vld [vmem:[%s304 + $0x168] sm:$0xff]
                  %337 = vst [vmem:[%s305 + $0x78] sm:$0xff] %v336
                  %v338 = vld [vmem:[%s304 + $0x180] sm:$0xff]
                  %339 = vst [vmem:[%s305 + $0x80] sm:$0xff] %v338
                  %v340 = vld [vmem:[%s304 + $0x198] sm:$0xff]
                  %341 = vst [vmem:[%s305 + $0x88] sm:$0xff] %v340
                  %v342 = vld [vmem:[%s304 + $0x1b0] sm:$0xff]
                  %343 = vst [vmem:[%s305 + $0x90] sm:$0xff] %v342
                  %v344 = vld [vmem:[%s304 + $0x1c8] sm:$0xff]
                  %345 = vst [vmem:[%s305 + $0x98] sm:$0xff] %v344
                  %v346 = vld [vmem:[%s304 + $0x1e0] sm:$0xff]
                  %347 = vst [vmem:[%s305 + $0xa0] sm:$0xff] %v346
                  %v348 = vld [vmem:[%s304 + $0x1f8] sm:$0xff]
                  %349 = vst [vmem:[%s305 + $0xa8] sm:$0xff] %v348
                  %v350 = vld [vmem:[%s304 + $0x210] sm:$0xff]
                  %351 = vst [vmem:[%s305 + $0xb0] sm:$0xff] %v350
                  %v352 = vld [vmem:[%s304 + $0x228] sm:$0xff]
                  %353 = vst [vmem:[%s305 + $0xb8] sm:$0xff] %v352
                  %v354 = vld [vmem:[%s304 + $0x240] sm:$0xff]
                  %355 = vst [vmem:[%s305 + $0xc0] sm:$0xff] %v354
                  %v356 = vld [vmem:[%s304 + $0x258] sm:$0xff]
                  %357 = vst [vmem:[%s305 + $0xc8] sm:$0xff] %v356
                  %v358 = vld [vmem:[%s304 + $0x270] sm:$0xff]
                  %359 = vst [vmem:[%s305 + $0xd0] sm:$0xff] %v358
                  %v360 = vld [vmem:[%s304 + $0x288] sm:$0xff]
                  %361 = vst [vmem:[%s305 + $0xd8] sm:$0xff] %v360
                  %v362 = vld [vmem:[%s304 + $0x2a0] sm:$0xff]
                  %363 = vst [vmem:[%s305 + $0xe0] sm:$0xff] %v362
                  %v364 = vld [vmem:[%s304 + $0x2b8] sm:$0xff]
                  %365 = vst [vmem:[%s305 + $0xe8] sm:$0xff] %v364
                  %v366 = vld [vmem:[%s304 + $0x2d0] sm:$0xff]
                  %367 = vst [vmem:[%s305 + $0xf0] sm:$0xff] %v366
                  %v368 = vld [vmem:[%s304 + $0x2e8] sm:$0xff]
                  %369 = vst [vmem:[%s305 + $0xf8] sm:$0xff] %v368
                $region60: #{forward.13} parent=54 // loop_footer
                  %s303 = sadd.s32 1, %s299
                $region61: #{forward.13} parent=54 // loop_footer_branch
                  %298 = sbr.rel target = $region57
                $region62: #{forward.13} parent=54 // loop_exit
                  _
              $region55: #{forward.13} parent=39 // pred_fallthru
                _
              // Predicated region
              $region63: #{forward.13} parent=39 // pred_check
                _
              $region64: #{forward.13} parent=39 // pred_check_branch
                %371 = sbr.rel target = $region66
              $region65: #{forward.13} parent=39 // pred_region
                _
              $region66: #{forward.13} parent=39 // pred_fallthru
                _
            $region40: #{forward.13} parent=35 // pred_fallthru
              _
            // Predicated region
            $region41: #{forward.13} parent=35 // pred_check
              _
            $region42: #{forward.13} parent=35 // pred_check_branch
              %221 = sbr.rel target = $region44
            $region43: #{forward.13} parent=35 // pred_region
              %s223 = ssub.s32 256, 1
              loop: start=0, step=1, limit=1
              $region45: #{forward.13} parent=43 // loop_pre_header
                _
              $region46: #{forward.13} parent=43 // loop_header
                %s225 = sphi 0, %s229
                %p226 = scmp.ge.s32.totalorder %s225, 1
                %s230 = sphi %s215, %s215
                %s231 = sphi %s212, %s212
              $region47: #{forward.13} parent=43 // loop_header_branch
                %228 = sbr.rel (%p226) target = $region51
              $region48: #{forward.13} parent=43 // loop_body
                %v232 = vld [vmem:[%s230] sm:%s223]
                %233 = vst [vmem:[%s231] sm:%s223] %v232
                %v234 = vld [vmem:[%s230 + $0x18] sm:%s223]
                %235 = vst [vmem:[%s231 + $0x8] sm:%s223] %v234
                %v236 = vld [vmem:[%s230 + $0x30] sm:%s223]
                %237 = vst [vmem:[%s231 + $0x10] sm:%s223] %v236
                %v238 = vld [vmem:[%s230 + $0x48] sm:%s223]
                %239 = vst [vmem:[%s231 + $0x18] sm:%s223] %v238
                %v240 = vld [vmem:[%s230 + $0x60] sm:%s223]
                %241 = vst [vmem:[%s231 + $0x20] sm:%s223] %v240
                %v242 = vld [vmem:[%s230 + $0x78] sm:%s223]
                %243 = vst [vmem:[%s231 + $0x28] sm:%s223] %v242
                %v244 = vld [vmem:[%s230 + $0x90] sm:%s223]
                %245 = vst [vmem:[%s231 + $0x30] sm:%s223] %v244
                %v246 = vld [vmem:[%s230 + $0xa8] sm:%s223]
                %247 = vst [vmem:[%s231 + $0x38] sm:%s223] %v246
                %v248 = vld [vmem:[%s230 + $0xc0] sm:%s223]
                %249 = vst [vmem:[%s231 + $0x40] sm:%s223] %v248
                %v250 = vld [vmem:[%s230 + $0xd8] sm:%s223]
                %251 = vst [vmem:[%s231 + $0x48] sm:%s223] %v250
                %v252 = vld [vmem:[%s230 + $0xf0] sm:%s223]
                %253 = vst [vmem:[%s231 + $0x50] sm:%s223] %v252
                %v254 = vld [vmem:[%s230 + $0x108] sm:%s223]
                %255 = vst [vmem:[%s231 + $0x58] sm:%s223] %v254
                %v256 = vld [vmem:[%s230 + $0x120] sm:%s223]
                %257 = vst [vmem:[%s231 + $0x60] sm:%s223] %v256
                %v258 = vld [vmem:[%s230 + $0x138] sm:%s223]
                %259 = vst [vmem:[%s231 + $0x68] sm:%s223] %v258
                %v260 = vld [vmem:[%s230 + $0x150] sm:%s223]
                %261 = vst [vmem:[%s231 + $0x70] sm:%s223] %v260
                %v262 = vld [vmem:[%s230 + $0x168] sm:%s223]
                %263 = vst [vmem:[%s231 + $0x78] sm:%s223] %v262
                %v264 = vld [vmem:[%s230 + $0x180] sm:%s223]
                %265 = vst [vmem:[%s231 + $0x80] sm:%s223] %v264
                %v266 = vld [vmem:[%s230 + $0x198] sm:%s223]
                %267 = vst [vmem:[%s231 + $0x88] sm:%s223] %v266
                %v268 = vld [vmem:[%s230 + $0x1b0] sm:%s223]
                %269 = vst [vmem:[%s231 + $0x90] sm:%s223] %v268
                %v270 = vld [vmem:[%s230 + $0x1c8] sm:%s223]
                %271 = vst [vmem:[%s231 + $0x98] sm:%s223] %v270
                %v272 = vld [vmem:[%s230 + $0x1e0] sm:%s223]
                %273 = vst [vmem:[%s231 + $0xa0] sm:%s223] %v272
                %v274 = vld [vmem:[%s230 + $0x1f8] sm:%s223]
                %275 = vst [vmem:[%s231 + $0xa8] sm:%s223] %v274
                %v276 = vld [vmem:[%s230 + $0x210] sm:%s223]
                %277 = vst [vmem:[%s231 + $0xb0] sm:%s223] %v276
                %v278 = vld [vmem:[%s230 + $0x228] sm:%s223]
                %279 = vst [vmem:[%s231 + $0xb8] sm:%s223] %v278
                %v280 = vld [vmem:[%s230 + $0x240] sm:%s223]
                %281 = vst [vmem:[%s231 + $0xc0] sm:%s223] %v280
                %v282 = vld [vmem:[%s230 + $0x258] sm:%s223]
                %283 = vst [vmem:[%s231 + $0xc8] sm:%s223] %v282
                %v284 = vld [vmem:[%s230 + $0x270] sm:%s223]
                %285 = vst [vmem:[%s231 + $0xd0] sm:%s223] %v284
                %v286 = vld [vmem:[%s230 + $0x288] sm:%s223]
                %287 = vst [vmem:[%s231 + $0xd8] sm:%s223] %v286
                %v288 = vld [vmem:[%s230 + $0x2a0] sm:%s223]
                %289 = vst [vmem:[%s231 + $0xe0] sm:%s223] %v288
                %v290 = vld [vmem:[%s230 + $0x2b8] sm:%s223]
                %291 = vst [vmem:[%s231 + $0xe8] sm:%s223] %v290
                %v292 = vld [vmem:[%s230 + $0x2d0] sm:%s223]
                %293 = vst [vmem:[%s231 + $0xf0] sm:%s223] %v292
                %v294 = vld [vmem:[%s230 + $0x2e8] sm:%s223]
                %295 = vst [vmem:[%s231 + $0xf8] sm:%s223] %v294
              $region49: #{forward.13} parent=43 // loop_footer
                %s229 = sadd.s32 1, %s225
              $region50: #{forward.13} parent=43 // loop_footer_branch
                %224 = sbr.rel target = $region46
              $region51: #{forward.13} parent=43 // loop_exit
                _
            $region44: #{forward.13} parent=35 // pred_fallthru
              _
          $region36: #{forward.13} parent=31 // pred_fallthru
            _
          %372 = vnop
        $region32: #{forward.13} parent=27 // pred_fallthru
          _
        // Predicated region
        $region67: #{forward.13} parent=27 // pred_check
          %p373 = pneg %p95
        $region68: #{forward.13} parent=27 // pred_check_branch
          %375 = sbr.rel (%p373) target = $region70
        $region69: #{forward.13} parent=27 // pred_region
          %s376 = smul.u32 2, %s19
          %p377 = scmp.lt.s32.totalorder %s376, 5
          %s378 = scalar_select %p377, %s376, 5
          %s379 = scalar_lea.vmem %s2, %s378
          %s380 = smul.u32 2, %s19
        $region70: #{forward.13} parent=27 // pred_fallthru
          _
      $region28: #{forward.13} parent=5 // pred_fallthru
        _
      %p381 = scmp.le.s32.totalorder 1, %s11
      %p382 = scmp.lt.s32.totalorder %s11, 4
      %p383 = pnand %p381, %p382
      %p384 = pneg %p383
      // Predicated region
      $region71: #{forward.13} parent=5 // pred_check
        _
      $region72: #{forward.13} parent=5 // pred_check_branch
        %386 = sbr.rel (%p383) target = $region74
      $region73: #{forward.13} parent=5 // pred_region
        %s387 = ssub.s32 %s11, 1
        %s388 = sand.u32 %s62, 1
        %s389 = sand.u32 %s62, 1
        %s390 = smul.addr %s389, 256
        %s391 = scalar_lea.vmem [#allocation2], %s390
        // Predicated region
        $region75: #{forward.13} parent=73 // pred_check
          %p392 = pneg %p75
        $region76: #{forward.13} parent=73 // pred_check_branch
          %394 = sbr.rel (%p392) target = $region78
        $region77: #{forward.13} parent=73 // pred_region
          _
        $region78: #{forward.13} parent=73 // pred_fallthru
          _
        %s395 = smul.u32 2, %s20
        %p396 = scmp.lt.s32.totalorder %s395, 1
        %s397 = scalar_select %p396, %s395, 1
        %s398 = smul.addr %s397, 2
        %s399 = smul.addr %s398, 4
        %s400 = scalar_lea.vmem %s0, %s399
        %p401 = pneg %p49
        %p402 = pneg %p46
        %s403 = sand.u32 %s62, 1
        %s404 = sand.u32 %s62, 1
        %s405 = smul.addr %s404, 256
        %s406 = scalar_lea.vmem [#allocation2], %s405
        %p407 = pneg %p75
        %p408 = pneg %p72
        %s409 = smul.u32 2, %s21
        %p410 = scmp.lt.s32.totalorder %s409, 5
        %s411 = scalar_select %p410, %s409, 5
        %s412 = scalar_lea.vmem %s2, %s411
        %p413 = pneg %p101
        %p414 = pneg %p98
        %p415 = pneg %p122
        %p416 = pneg %p119
        %p417 = pneg %p143
        %p418 = pneg %p140
        %p419 = pneg %p171
        %p420 = pneg %p168
        %s421 = sand.u32 %s158, 1
        %s422 = sand.u32 %s158, 1
        %s423 = smul.addr %s422, 16
        %s424 = scalar_lea.vmem [#allocation3], %s423
        %s425 = smul.u32 2, %s20
        %p426 = scmp.lt.s32.totalorder %s425, 1
        %s427 = scalar_select %p426, %s425, 1
        %s428 = smul.addr %s427, 2
        %s429 = smul.addr %s428, 4
        %s430 = scalar_lea.vmem %s0, %s429
        %s431 = smul.u32 2, %s20
        %s432 = smul.u32 2, %s21
        %s433 = smul.u32 2, %s21
        %p434 = scmp.lt.s32.totalorder %s433, 5
        %s435 = scalar_select %p434, %s433, 5
        %s436 = scalar_lea.vmem %s2, %s435
        %s437 = smul.u32 2, %s21
        %s438 = smul.u32 2, %s20
        %s439 = smul.u32 2, %s21
        %v440 = vld [vmem:[%s430] sm:$0xff]
        %v441 = vld [vmem:[%s430 + $0x8] sm:$0xff]
        %v442 = vunpack.c.l.bf16 %v440
        %v443 = vunpack.c.h.bf16 %v440
        %v444 = vunpack.c.l.bf16 %v441
        %v445 = vunpack.c.h.bf16 %v441
        %v446 = vadd.f32 %v442, %v443
        %447 = vadd.xlane.f32.xlu0 %v446
        %v448 = vpop.xlane.xlu0 %447
        %v449 = vadd.f32 %v444, %v445
        %450 = vadd.xlane.f32.xlu0 %v449
        %v451 = vpop.xlane.xlu0 %450
        %v452 = vrcp.pop 256.0
        %v453 = vmul.f32 %v448, %v452
        %v454 = vmul.f32 %v451, %v452
        %v455 = vsub.f32 %v442, %v453
        %v456 = vsub.f32 %v443, %v453
        %v457 = vsub.f32 %v444, %v454
        %v458 = vsub.f32 %v445, %v454
        %v459 = vmul.f32 %v455, %v455
        %v460 = vmul.f32 %v456, %v456
        %v461 = vmul.f32 %v457, %v457
        %v462 = vmul.f32 %v458, %v458
        %v463 = vadd.f32 %v459, %v460
        %464 = vadd.xlane.f32.xlu0 %v463
        %v465 = vpop.xlane.xlu0 %464
        %v466 = vadd.f32 %v461, %v462
        %467 = vadd.xlane.f32.xlu0 %v466
        %v468 = vpop.xlane.xlu0 %467
        %v469 = vmul.f32 %v465, %v452
        %v470 = vmul.f32 %v468, %v452
        %v471 = vadd.f32 %v469, 1e-06
        %v472 = vadd.f32 %v470, 1e-06
        %v473 = vrsqrt.pop %v471
        %v474 = vrsqrt.pop %v472
        %v475 = vmul.f32 %v455, %v473
        %v476 = vmul.f32 %v456, %v473
        %v477 = vmul.f32 %v457, %v474
        %v478 = vmul.f32 %v458, %v474
        %v479 = vld [vmem:[%s3] sm:$0x3]
        %v481 = vlaneseq
        %v482 = vshrl.u32 %v481, 7
        %v483 = vsub.s32 0, %v482
        %v484 = vrot.slane %v479, %v483
        %v485 = vlaneseq
        %v486 = vshrl.u32 %v485, 7
        %v487 = vsub.s32 1, %v486
        %v488 = vrot.slane %v479, %v487
        %v491 = vmul.f32 %v475, %v484
        %v492 = vmul.f32 %v476, %v488
        %v493 = vmul.f32 %v477, %v484
        %v494 = vmul.f32 %v478, %v488
        %v495 = vld [vmem:[%s4] sm:$0x3]
        %v497 = vlaneseq
        %v498 = vshrl.u32 %v497, 7
        %v499 = vsub.s32 0, %v498
        %v500 = vrot.slane %v495, %v499
        %v501 = vlaneseq
        %v502 = vshrl.u32 %v501, 7
        %v503 = vsub.s32 1, %v502
        %v504 = vrot.slane %v495, %v503
        %v507 = vadd.f32 %v491, %v500
        %v508 = vadd.f32 %v492, %v504
        %v509 = vadd.f32 %v493, %v500
        %v510 = vadd.f32 %v494, %v504
        %v511 = vpack.c.bf16 %v509, %v507
        %v512 = vpack.c.bf16 %v510, %v508
        %v513 = vld [vmem:[%s391] sm:$0xff]
        %v514 = vld [vmem:[%s391 + $0x8] sm:$0xff]
        %v515 = vld [vmem:[%s391 + $0x10] sm:$0xff]
        %v516 = vld [vmem:[%s391 + $0x18] sm:$0xff]
        %v517 = vld [vmem:[%s391 + $0x20] sm:$0xff]
        %v518 = vld [vmem:[%s391 + $0x28] sm:$0xff]
        %v519 = vld [vmem:[%s391 + $0x30] sm:$0xff]
        %v520 = vld [vmem:[%s391 + $0x38] sm:$0xff]
        %v521 = vld [vmem:[%s391 + $0x40] sm:$0xff]
        %v522 = vld [vmem:[%s391 + $0x48] sm:$0xff]
        %v523 = vld [vmem:[%s391 + $0x50] sm:$0xff]
        %v524 = vld [vmem:[%s391 + $0x58] sm:$0xff]
        %v525 = vld [vmem:[%s391 + $0x60] sm:$0xff]
        %v526 = vld [vmem:[%s391 + $0x68] sm:$0xff]
        %v527 = vld [vmem:[%s391 + $0x70] sm:$0xff]
        %v528 = vld [vmem:[%s391 + $0x78] sm:$0xff]
        %v529 = vld [vmem:[%s391 + $0x80] sm:$0xff]
        %v530 = vld [vmem:[%s391 + $0x88] sm:$0xff]
        %v531 = vld [vmem:[%s391 + $0x90] sm:$0xff]
        %v532 = vld [vmem:[%s391 + $0x98] sm:$0xff]
        %v533 = vld [vmem:[%s391 + $0xa0] sm:$0xff]
        %v534 = vld [vmem:[%s391 + $0xa8] sm:$0xff]
        %v535 = vld [vmem:[%s391 + $0xb0] sm:$0xff]
        %v536 = vld [vmem:[%s391 + $0xb8] sm:$0xff]
        %v537 = vld [vmem:[%s391 + $0xc0] sm:$0xff]
        %v538 = vld [vmem:[%s391 + $0xc8] sm:$0xff]
        %v539 = vld [vmem:[%s391 + $0xd0] sm:$0xff]
        %v540 = vld [vmem:[%s391 + $0xd8] sm:$0xff]
        %v541 = vld [vmem:[%s391 + $0xe0] sm:$0xff]
        %v542 = vld [vmem:[%s391 + $0xe8] sm:$0xff]
        %v543 = vld [vmem:[%s391 + $0xf0] sm:$0xff]
        %v544 = vld [vmem:[%s391 + $0xf8] sm:$0xff]
        %v545 = vld [vmem:[%s436] sm:$0x3]
        %v547 = vlaneseq
        %v548 = vshrl.u32 %v547, 7
        %v549 = vsub.s32 0, %v548
        %v550 = vrot.slane %v545, %v549
        %v551 = vlaneseq
        %v552 = vshrl.u32 %v551, 7
        %v553 = vsub.s32 1, %v552
        %v554 = vrot.slane %v545, %v553
        %v589 = vunpack.c.l.b16 %v513
        %v590 = vunpack.c.h.b16 %v513
        %v591 = vunpack.c.l.b16 %v514
        %v592 = vunpack.c.h.b16 %v514
        %v593 = vunpack.c.l.b16 %v515
        %v594 = vunpack.c.h.b16 %v515
        %v595 = vunpack.c.l.b16 %v516
        %v596 = vunpack.c.h.b16 %v516
        %v597 = vunpack.c.l.b16 %v517
        %v598 = vunpack.c.h.b16 %v517
        %v599 = vunpack.c.l.b16 %v518
        %v600 = vunpack.c.h.b16 %v518
        %v601 = vunpack.c.l.b16 %v519
        %v602 = vunpack.c.h.b16 %v519
        %v603 = vunpack.c.l.b16 %v520
        %v604 = vunpack.c.h.b16 %v520
        %v605 = vunpack.c.l.b16 %v521
        %v606 = vunpack.c.h.b16 %v521
        %v607 = vunpack.c.l.b16 %v522
        %v608 = vunpack.c.h.b16 %v522
        %v609 = vunpack.c.l.b16 %v523
        %v610 = vunpack.c.h.b16 %v523
        %v611 = vunpack.c.l.b16 %v524
        %v612 = vunpack.c.h.b16 %v524
        %v613 = vunpack.c.l.b16 %v525
        %v614 = vunpack.c.h.b16 %v525
        %v615 = vunpack.c.l.b16 %v526
        %v616 = vunpack.c.h.b16 %v526
        %v617 = vunpack.c.l.b16 %v527
        %v618 = vunpack.c.h.b16 %v527
        %v619 = vunpack.c.l.b16 %v528
        %v620 = vunpack.c.h.b16 %v528
        %v621 = vunpack.c.l.b16 %v529
        %v622 = vunpack.c.h.b16 %v529
        %v623 = vunpack.c.l.b16 %v530
        %v624 = vunpack.c.h.b16 %v530
        %v625 = vunpack.c.l.b16 %v531
        %v626 = vunpack.c.h.b16 %v531
        %v627 = vunpack.c.l.b16 %v532
        %v628 = vunpack.c.h.b16 %v532
        %v629 = vunpack.c.l.b16 %v533
        %v630 = vunpack.c.h.b16 %v533
        %v631 = vunpack.c.l.b16 %v534
        %v632 = vunpack.c.h.b16 %v534
        %v633 = vunpack.c.l.b16 %v535
        %v634 = vunpack.c.h.b16 %v535
        %v635 = vunpack.c.l.b16 %v536
        %v636 = vunpack.c.h.b16 %v536
        %v637 = vunpack.c.l.b16 %v537
        %v638 = vunpack.c.h.b16 %v537
        %v639 = vunpack.c.l.b16 %v538
        %v640 = vunpack.c.h.b16 %v538
        %v641 = vunpack.c.l.b16 %v539
        %v642 = vunpack.c.h.b16 %v539
        %v643 = vunpack.c.l.b16 %v540
        %v644 = vunpack.c.h.b16 %v540
        %v645 = vunpack.c.l.b16 %v541
        %v646 = vunpack.c.h.b16 %v541
        %v647 = vunpack.c.l.b16 %v542
        %v648 = vunpack.c.h.b16 %v542
        %v649 = vunpack.c.l.b16 %v543
        %v650 = vunpack.c.h.b16 %v543
        %v651 = vunpack.c.l.b16 %v544
        %v652 = vunpack.c.h.b16 %v544
        %v653 = vpack.c.b16 %v591, %v589
        %v654 = vpack.c.b16 %v592, %v590
        %v655 = vpack.c.b16 %v595, %v593
        %v656 = vpack.c.b16 %v596, %v594
        %v657 = vpack.c.b16 %v599, %v597
        %v658 = vpack.c.b16 %v600, %v598
        %v659 = vpack.c.b16 %v603, %v601
        %v660 = vpack.c.b16 %v604, %v602
        %v661 = vpack.c.b16 %v607, %v605
        %v662 = vpack.c.b16 %v608, %v606
        %v663 = vpack.c.b16 %v611, %v609
        %v664 = vpack.c.b16 %v612, %v610
        %v665 = vpack.c.b16 %v615, %v613
        %v666 = vpack.c.b16 %v616, %v614
        %v667 = vpack.c.b16 %v619, %v617
        %v668 = vpack.c.b16 %v620, %v618
        %v669 = vpack.c.b16 %v623, %v621
        %v670 = vpack.c.b16 %v624, %v622
        %v671 = vpack.c.b16 %v627, %v625
        %v672 = vpack.c.b16 %v628, %v626
        %v673 = vpack.c.b16 %v631, %v629
        %v674 = vpack.c.b16 %v632, %v630
        %v675 = vpack.c.b16 %v635, %v633
        %v676 = vpack.c.b16 %v636, %v634
        %v677 = vpack.c.b16 %v639, %v637
        %v678 = vpack.c.b16 %v640, %v638
        %v679 = vpack.c.b16 %v643, %v641
        %v680 = vpack.c.b16 %v644, %v642
        %v681 = vpack.c.b16 %v647, %v645
        %v682 = vpack.c.b16 %v648, %v646
        %v683 = vpack.c.b16 %v651, %v649
        %v684 = vpack.c.b16 %v652, %v650
        %717 = vmatprep.subr.bf16.mxu0 %v668
        %718 = vmatpush1.bf16.msra.mxu0 %v667
        %719 = vmatprep.subr.bf16.mxu0 %v666
        %720 = vmatpush1.bf16.msra.mxu0 %v665
        %721 = vmatprep.subr.bf16.mxu0 %v664
        %722 = vmatpush1.bf16.msra.mxu0 %v663
        %723 = vmatprep.subr.bf16.mxu0 %v662
        %724 = vmatpush1.bf16.msra.mxu0 %v661
        %725 = vmatprep.subr.bf16.mxu0 %v660
        %726 = vmatpush1.bf16.msra.mxu0 %v659
        %727 = vmatprep.subr.bf16.mxu0 %v658
        %728 = vmatpush1.bf16.msra.mxu0 %v657
        %729 = vmatprep.subr.bf16.mxu0 %v656
        %730 = vmatpush1.bf16.msra.mxu0 %v655
        %731 = vmatprep.subr.bf16.mxu0 %v654
        %732 = vmatpush1.bf16.msra.mxu0 %v653
        %733 = vmatprep.subr.bf16.mxu0 %v684
        %734 = vmatpush2.bf16.msra.mxu0 %v683
        %735 = vmatprep.subr.bf16.mxu0 %v682
        %736 = vmatpush2.bf16.msra.mxu0 %v681
        %737 = vmatprep.subr.bf16.mxu0 %v680
        %738 = vmatpush2.bf16.msra.mxu0 %v679
        %739 = vmatprep.subr.bf16.mxu0 %v678
        %740 = vmatpush2.bf16.msra.mxu0 %v677
        %741 = vmatprep.subr.bf16.mxu0 %v676
        %742 = vmatpush2.bf16.msra.mxu0 %v675
        %743 = vmatprep.subr.bf16.mxu0 %v674
        %744 = vmatpush2.bf16.msra.mxu0 %v673
        %745 = vmatprep.subr.bf16.mxu0 %v672
        %746 = vmatpush2.bf16.msra.mxu0 %v671
        %747 = vmatprep.subr.bf16.mxu0 %v670
        %748 = vmatpush2.bf16.msra.mxu0 %v669
        %749 = vmatprep.mubr.bf16.mxu0 %v512
        %750 = vmatmul.mubr.bf16.gmra.mxu0 %v511
        %v751 = vpop.f32.mrf.mxu0
        %v752 = vadd.f32 %v550, %v751
        %v753 = vpop.f32.mrf.mxu0
        %v754 = vadd.f32 %v554, %v753
        %v755 = vpop.f32.mrf.mxu0
        %v756 = vadd.f32 %v550, %v755
        %v757 = vpop.f32.mrf.mxu0
        %v758 = vadd.f32 %v554, %v757
        %759 = vdwg.mxu0
        %v760 = vpack.c.bf16 %v756, %v752
        %v761 = vpack.c.bf16 %v758, %v754
        %v764 = vunpack.c.l.b16 %v760
        %v765 = vunpack.c.l.b16 %v761
        %v766 = vunpack.c.h.b16 %v760
        %v767 = vunpack.c.h.b16 %v761
        %v768 = vpack.c.b16 %v765, %v764
        %v769 = vpack.c.b16 %v767, %v766
        %772 = vst [vmem:[%s424] sm:$0xff] %v768
        %773 = vst [vmem:[%s424 + $0x8] sm:$0xff] %v769
        %s774 = sand.u32 %s158, 1
        %s775 = sand.u32 %s158, 1
        %s776 = smul.addr %s775, 16
        %s777 = scalar_lea.vmem [#allocation3], %s776
        // Predicated region
        $region79: #{forward.13} parent=73 // pred_check
          %p778 = pneg %p168
        $region80: #{forward.13} parent=73 // pred_check_branch
          %780 = sbr.rel (%p778) target = $region82
        $region81: #{forward.13} parent=73 // pred_region
          %s781 = smul.u32 2, %s20
          %s782 = smul.u32 2, %s21
          %s783 = smul.addr %s781, 6
          %s784 = sadd.s32 %s782, %s783
          %s785 = smul.addr %s784, 4
          %s786 = scalar_lea.vmem %s5, %s785
          // Predicated region
          $region83: #{forward.13} parent=81 // pred_check
            _
          $region84: #{forward.13} parent=81 // pred_check_branch
            %788 = sbr.rel (0) target = $region86
          $region85: #{forward.13} parent=81 // pred_region
            // Predicated region
            $region87: #{forward.13} parent=85 // pred_check
              _
            $region88: #{forward.13} parent=85 // pred_check_branch
              %790 = sbr.rel (0) target = $region90
            $region89: #{forward.13} parent=85 // pred_region
              // Predicated region
              $region102: #{forward.13} parent=89 // pred_check
                _
              $region103: #{forward.13} parent=89 // pred_check_branch
                %808 = sbr.rel (0) target = $region105
              $region104: #{forward.13} parent=89 // pred_region
                loop: start=0, step=1, limit=1
                $region106: #{forward.13} parent=104 // loop_pre_header
                  _
                $region107: #{forward.13} parent=104 // loop_header
                  %s810 = sphi 0, %s814
                  %p811 = scmp.ge.s32.totalorder %s810, 1
                  %s815 = sphi %s777, %s777
                  %s816 = sphi %s786, %s786
                $region108: #{forward.13} parent=104 // loop_header_branch
                  %813 = sbr.rel (%p811) target = $region112
                $region109: #{forward.13} parent=104 // loop_body
                  %v817 = vld [vmem:[%s815] sm:$0xff]
                  %818 = vst [vmem:[%s816] sm:$0xff] %v817
                  %v819 = vld [vmem:[%s815 + $0x8] sm:$0xff]
                  %820 = vst [vmem:[%s816 + $0x18] sm:$0xff] %v819
                $region110: #{forward.13} parent=104 // loop_footer
                  %s814 = sadd.s32 1, %s810
                $region111: #{forward.13} parent=104 // loop_footer_branch
                  %809 = sbr.rel target = $region107
                $region112: #{forward.13} parent=104 // loop_exit
                  _
              $region105: #{forward.13} parent=89 // pred_fallthru
                _
              // Predicated region
              $region113: #{forward.13} parent=89 // pred_check
                _
              $region114: #{forward.13} parent=89 // pred_check_branch
                %822 = sbr.rel target = $region116
              $region115: #{forward.13} parent=89 // pred_region
                _
              $region116: #{forward.13} parent=89 // pred_fallthru
                _
            $region90: #{forward.13} parent=85 // pred_fallthru
              _
            // Predicated region
            $region91: #{forward.13} parent=85 // pred_check
              _
            $region92: #{forward.13} parent=85 // pred_check_branch
              %792 = sbr.rel target = $region94
            $region93: #{forward.13} parent=85 // pred_region
              %s794 = ssub.s32 256, 1
              loop: start=0, step=1, limit=1
              $region95: #{forward.13} parent=93 // loop_pre_header
                _
              $region96: #{forward.13} parent=93 // loop_header
                %s796 = sphi 0, %s800
                %p797 = scmp.ge.s32.totalorder %s796, 1
                %s801 = sphi %s777, %s777
                %s802 = sphi %s786, %s786
              $region97: #{forward.13} parent=93 // loop_header_branch
                %799 = sbr.rel (%p797) target = $region101
              $region98: #{forward.13} parent=93 // loop_body
                %v803 = vld [vmem:[%s801] sm:%s794]
                %804 = vst [vmem:[%s802] sm:%s794] %v803
                %v805 = vld [vmem:[%s801 + $0x8] sm:%s794]
                %806 = vst [vmem:[%s802 + $0x18] sm:%s794] %v805
              $region99: #{forward.13} parent=93 // loop_footer
                %s800 = sadd.s32 1, %s796
              $region100: #{forward.13} parent=93 // loop_footer_branch
                %795 = sbr.rel target = $region96
              $region101: #{forward.13} parent=93 // loop_exit
                _
            $region94: #{forward.13} parent=85 // pred_fallthru
              _
          $region86: #{forward.13} parent=81 // pred_fallthru
            _
          %823 = vnop
        $region82: #{forward.13} parent=73 // pred_fallthru
          _
      $region74: #{forward.13} parent=5 // pred_fallthru
        _
      %p824 = scmp.le.s32.totalorder 2, %s11
      // Predicated region
      $region117: #{forward.13} parent=5 // pred_check
        %p825 = pneg %p824
      $region118: #{forward.13} parent=5 // pred_check_branch
        %827 = sbr.rel (%p825) target = $region120
      $region119: #{forward.13} parent=5 // pred_region
        %s828 = ssub.s32 %s11, 2
        // Predicated region
        $region121: #{forward.13} parent=119 // pred_check
          %p829 = pneg %p174
        $region122: #{forward.13} parent=119 // pred_check_branch
          %831 = sbr.rel (%p829) target = $region124
        $region123: #{forward.13} parent=119 // pred_region
          %s832 = sand.u32 %s159, 1
          %s833 = sand.u32 %s159, 1
          %s834 = smul.addr %s833, 16
          %s835 = scalar_lea.vmem [#allocation3], %s834
        $region124: #{forward.13} parent=119 // pred_fallthru
          _
      $region120: #{forward.13} parent=5 // pred_fallthru
        _
    $region6: #{forward.13} parent=1 // loop_footer
      %s15 = sadd.s32 1, %s11
    $region7: #{forward.13} parent=1 // loop_footer_branch
      %10 = sbr.rel target = $region3
    $region8: #{forward.13} parent=1 // loop_exit
      _

// kernel: forward.12
$region0: #{forward.12}
  #allocation0 [shape = 'u32[]', space=smem, size = 0x4, offset = 0x4, fixed_abs, tag = 'smem constant byte address 0x4 - core index']
  #allocation1 [shape = 'u32[144,128]{1,0:T(1,128)}', space=vmem, size = 0x12000, scoped, tag = 'internal scratch']
  %s0 = inlined_call_operand.vmem [shape: bf16[8,768], index: 0, kind: input, shape index: {}]
  %s1 = inlined_call_operand.vmem [shape: bf16[768,256], index: 1, kind: input, shape index: {}]
  %s2 = inlined_call_operand.vmem [shape: f32[1,256], index: 2, kind: input, shape index: {}]
  %s3 = inlined_call_operand.vmem [shape: bf16[8,256], index: 3, kind: output, shape index: {}]
  %s4 = sld [smem:[#allocation0]]
  $region22: #{forward.12} parent=0
    _
  %s6 = ssub.s32 1, %s4
  %s7 = scalar_select 0, %s6, %s4
  // Predicated region
  $region2: #{forward.12} parent=0 // pred_check
    _
  $region3: #{forward.12} parent=0 // pred_check_branch
    %9 = sbr.rel (0) target = $region5
  $region4: #{forward.12} parent=0 // pred_region
    _
  $region5: #{forward.12} parent=0 // pred_fallthru
    _
  // Predicated region
  $region6: #{forward.12} parent=0 // pred_check
    _
  $region7: #{forward.12} parent=0 // pred_check_branch
    %11 = sbr.rel (0) target = $region9
  $region8: #{forward.12} parent=0 // pred_region
    _
  $region9: #{forward.12} parent=0 // pred_fallthru
    _
  // Predicated region
  $region10: #{forward.12} parent=0 // pred_check
    _
  $region11: #{forward.12} parent=0 // pred_check_branch
    %13 = sbr.rel (0) target = $region13
  $region12: #{forward.12} parent=0 // pred_region
    _
  $region13: #{forward.12} parent=0 // pred_fallthru
    _
  %v14 = vld [vmem:[%s0] sm:$0xff]
  %v15 = vld [vmem:[%s0 + $0x8] sm:$0xff]
  %v16 = vld [vmem:[%s0 + $0x10] sm:$0xff]
  %v17 = vld [vmem:[%s1] sm:$0xff]
  %v18 = vld [vmem:[%s1 + $0x8] sm:$0xff]
  %v19 = vld [vmem:[%s1 + $0x10] sm:$0xff]
  %v20 = vld [vmem:[%s1 + $0x18] sm:$0xff]
  %v21 = vld [vmem:[%s1 + $0x20] sm:$0xff]
  %v22 = vld [vmem:[%s1 + $0x28] sm:$0xff]
  %v23 = vld [vmem:[%s1 + $0x30] sm:$0xff]
  %v24 = vld [vmem:[%s1 + $0x38] sm:$0xff]
  %v25 = vld [vmem:[%s1 + $0x40] sm:$0xff]
  %v26 = vld [vmem:[%s1 + $0x48] sm:$0xff]
  %v27 = vld [vmem:[%s1 + $0x50] sm:$0xff]
  %v28 = vld [vmem:[%s1 + $0x58] sm:$0xff]
  %v29 = vld [vmem:[%s1 + $0x60] sm:$0xff]
  %v30 = vld [vmem:[%s1 + $0x68] sm:$0xff]
  %v31 = vld [vmem:[%s1 + $0x70] sm:$0xff]
  %v32 = vld [vmem:[%s1 + $0x78] sm:$0xff]
  %v33 = vld [vmem:[%s1 + $0x80] sm:$0xff]
  %v34 = vld [vmem:[%s1 + $0x88] sm:$0xff]
  %v35 = vld [vmem:[%s1 + $0x90] sm:$0xff]
  %v36 = vld [vmem:[%s1 + $0x98] sm:$0xff]
  %v37 = vld [vmem:[%s1 + $0xa0] sm:$0xff]
  %v38 = vld [vmem:[%s1 + $0xa8] sm:$0xff]
  %v39 = vld [vmem:[%s1 + $0xb0] sm:$0xff]
  %v40 = vld [vmem:[%s1 + $0xb8] sm:$0xff]
  %v41 = vld [vmem:[%s1 + $0xc0] sm:$0xff]
  %v42 = vld [vmem:[%s1 + $0xc8] sm:$0xff]
  %v43 = vld [vmem:[%s1 + $0xd0] sm:$0xff]
  %v44 = vld [vmem:[%s1 + $0xd8] sm:$0xff]
  %v45 = vld [vmem:[%s1 + $0xe0] sm:$0xff]
  %v46 = vld [vmem:[%s1 + $0xe8] sm:$0xff]
  %v47 = vld [vmem:[%s1 + $0xf0] sm:$0xff]
  %v48 = vld [vmem:[%s1 + $0xf8] sm:$0xff]
  %v49 = vld [vmem:[%s1 + $0x100] sm:$0xff]
  %v50 = vld [vmem:[%s1 + $0x108] sm:$0xff]
  %v51 = vld [vmem:[%s1 + $0x110] sm:$0xff]
  %v52 = vld [vmem:[%s1 + $0x118] sm:$0xff]
  %v53 = vld [vmem:[%s1 + $0x120] sm:$0xff]
  %v54 = vld [vmem:[%s1 + $0x128] sm:$0xff]
  %v55 = vld [vmem:[%s1 + $0x130] sm:$0xff]
  %v56 = vld [vmem:[%s1 + $0x138] sm:$0xff]
  %v57 = vld [vmem:[%s1 + $0x140] sm:$0xff]
  %v58 = vld [vmem:[%s1 + $0x148] sm:$0xff]
  %v59 = vld [vmem:[%s1 + $0x150] sm:$0xff]
  %v60 = vld [vmem:[%s1 + $0x158] sm:$0xff]
  %v61 = vld [vmem:[%s1 + $0x160] sm:$0xff]
  %v62 = vld [vmem:[%s1 + $0x168] sm:$0xff]
  %v63 = vld [vmem:[%s1 + $0x170] sm:$0xff]
  %v64 = vld [vmem:[%s1 + $0x178] sm:$0xff]
  %v65 = vld [vmem:[%s1 + $0x180] sm:$0xff]
  %v66 = vld [vmem:[%s1 + $0x188] sm:$0xff]
  %v67 = vld [vmem:[%s1 + $0x190] sm:$0xff]
  %v68 = vld [vmem:[%s1 + $0x198] sm:$0xff]
  %v69 = vld [vmem:[%s1 + $0x1a0] sm:$0xff]
  %v70 = vld [vmem:[%s1 + $0x1a8] sm:$0xff]
  %v71 = vld [vmem:[%s1 + $0x1b0] sm:$0xff]
  %v72 = vld [vmem:[%s1 + $0x1b8] sm:$0xff]
  %v73 = vld [vmem:[%s1 + $0x1c0] sm:$0xff]
  %v74 = vld [vmem:[%s1 + $0x1c8] sm:$0xff]
  %v75 = vld [vmem:[%s1 + $0x1d0] sm:$0xff]
  %v76 = vld [vmem:[%s1 + $0x1d8] sm:$0xff]
  %v77 = vld [vmem:[%s1 + $0x1e0] sm:$0xff]
  %v78 = vld [vmem:[%s1 + $0x1e8] sm:$0xff]
  %v79 = vld [vmem:[%s1 + $0x1f0] sm:$0xff]
  %v80 = vld [vmem:[%s1 + $0x1f8] sm:$0xff]
  %v81 = vld [vmem:[%s1 + $0x200] sm:$0xff]
  %v82 = vld [vmem:[%s1 + $0x208] sm:$0xff]
  %v83 = vld [vmem:[%s1 + $0x210] sm:$0xff]
  %v84 = vld [vmem:[%s1 + $0x218] sm:$0xff]
  %v85 = vld [vmem:[%s1 + $0x220] sm:$0xff]
  %v86 = vld [vmem:[%s1 + $0x228] sm:$0xff]
  %v87 = vld [vmem:[%s1 + $0x230] sm:$0xff]
  %v88 = vld [vmem:[%s1 + $0x238] sm:$0xff]
  %v89 = vld [vmem:[%s1 + $0x240] sm:$0xff]
  %v90 = vld [vmem:[%s1 + $0x248] sm:$0xff]
  %v91 = vld [vmem:[%s1 + $0x250] sm:$0xff]
  %v92 = vld [vmem:[%s1 + $0x258] sm:$0xff]
  %v93 = vld [vmem:[%s1 + $0x260] sm:$0xff]
  %v94 = vld [vmem:[%s1 + $0x268] sm:$0xff]
  %v95 = vld [vmem:[%s1 + $0x270] sm:$0xff]
  %v96 = vld [vmem:[%s1 + $0x278] sm:$0xff]
  %v97 = vld [vmem:[%s1 + $0x280] sm:$0xff]
  %v98 = vld [vmem:[%s1 + $0x288] sm:$0xff]
  %v99 = vld [vmem:[%s1 + $0x290] sm:$0xff]
  %v100 = vld [vmem:[%s1 + $0x298] sm:$0xff]
  %v101 = vld [vmem:[%s1 + $0x2a0] sm:$0xff]
  %v102 = vld [vmem:[%s1 + $0x2a8] sm:$0xff]
  %v103 = vld [vmem:[%s1 + $0x2b0] sm:$0xff]
  %v104 = vld [vmem:[%s1 + $0x2b8] sm:$0xff]
  %v105 = vld [vmem:[%s1 + $0x2c0] sm:$0xff]
  %v106 = vld [vmem:[%s1 + $0x2c8] sm:$0xff]
  %v107 = vld [vmem:[%s1 + $0x2d0] sm:$0xff]
  %v108 = vld [vmem:[%s1 + $0x2d8] sm:$0xff]
  %v109 = vld [vmem:[%s1 + $0x2e0] sm:$0xff]
  %v110 = vld [vmem:[%s1 + $0x2e8] sm:$0xff]
  %v111 = vld [vmem:[%s1 + $0x2f0] sm:$0xff]
  %v112 = vld [vmem:[%s1 + $0x2f8] sm:$0xff]
  %v113 = vld [vmem:[%s2] sm:$0x3]
  %v115 = vlaneseq
  %v116 = vshrl.u32 %v115, 7
  %v117 = vsub.s32 0, %v116
  %v118 = vrot.slane %v113, %v117
  %v119 = vlaneseq
  %v120 = vshrl.u32 %v119, 7
  %v121 = vsub.s32 1, %v120
  %v122 = vrot.slane %v113, %v121
  %v128 = vunpack.c.l.b16 %v14
  %v129 = vunpack.c.h.b16 %v14
  %v130 = vunpack.c.l.b16 %v15
  %v131 = vunpack.c.h.b16 %v15
  %v132 = vunpack.c.l.b16 %v16
  %v133 = vunpack.c.h.b16 %v16
  %v134 = vpack.c.b16 %v128, %v128
  %v135 = vpack.c.b16 %v129, %v129
  %v136 = vpack.c.b16 %v130, %v130
  %v137 = vpack.c.b16 %v131, %v131
  %v138 = vpack.c.b16 %v132, %v132
  %v139 = vpack.c.b16 %v133, %v133
  %v242 = vunpack.c.l.b16 %v17
  %v243 = vunpack.c.h.b16 %v17
  %v244 = vunpack.c.l.b16 %v18
  %v245 = vunpack.c.h.b16 %v18
  %v246 = vunpack.c.l.b16 %v19
  %v247 = vunpack.c.h.b16 %v19
  %v248 = vunpack.c.l.b16 %v20
  %v249 = vunpack.c.h.b16 %v20
  %v250 = vunpack.c.l.b16 %v21
  %v251 = vunpack.c.h.b16 %v21
  %v252 = vunpack.c.l.b16 %v22
  %v253 = vunpack.c.h.b16 %v22
  %v254 = vunpack.c.l.b16 %v23
  %v255 = vunpack.c.h.b16 %v23
  %v256 = vunpack.c.l.b16 %v24
  %v257 = vunpack.c.h.b16 %v24
  %v258 = vunpack.c.l.b16 %v25
  %v259 = vunpack.c.h.b16 %v25
  %v260 = vunpack.c.l.b16 %v26
  %v261 = vunpack.c.h.b16 %v26
  %v262 = vunpack.c.l.b16 %v27
  %v263 = vunpack.c.h.b16 %v27
  %v264 = vunpack.c.l.b16 %v28
  %v265 = vunpack.c.h.b16 %v28
  %v266 = vunpack.c.l.b16 %v29
  %v267 = vunpack.c.h.b16 %v29
  %v268 = vunpack.c.l.b16 %v30
  %v269 = vunpack.c.h.b16 %v30
  %v270 = vunpack.c.l.b16 %v31
  %v271 = vunpack.c.h.b16 %v31
  %v272 = vunpack.c.l.b16 %v32
  %v273 = vunpack.c.h.b16 %v32
  %v274 = vunpack.c.l.b16 %v33
  %v275 = vunpack.c.h.b16 %v33
  %v276 = vunpack.c.l.b16 %v34
  %v277 = vunpack.c.h.b16 %v34
  %v278 = vunpack.c.l.b16 %v35
  %v279 = vunpack.c.h.b16 %v35
  %v280 = vunpack.c.l.b16 %v36
  %v281 = vunpack.c.h.b16 %v36
  %v282 = vunpack.c.l.b16 %v37
  %v283 = vunpack.c.h.b16 %v37
  %v284 = vunpack.c.l.b16 %v38
  %v285 = vunpack.c.h.b16 %v38
  %v286 = vunpack.c.l.b16 %v39
  %v287 = vunpack.c.h.b16 %v39
  %v288 = vunpack.c.l.b16 %v40
  %v289 = vunpack.c.h.b16 %v40
  %v290 = vunpack.c.l.b16 %v41
  %v291 = vunpack.c.h.b16 %v41
  %v292 = vunpack.c.l.b16 %v42
  %v293 = vunpack.c.h.b16 %v42
  %v294 = vunpack.c.l.b16 %v43
  %v295 = vunpack.c.h.b16 %v43
  %v296 = vunpack.c.l.b16 %v44
  %v297 = vunpack.c.h.b16 %v44
  %v298 = vunpack.c.l.b16 %v45
  %v299 = vunpack.c.h.b16 %v45
  %v300 = vunpack.c.l.b16 %v46
  %v301 = vunpack.c.h.b16 %v46
  %v302 = vunpack.c.l.b16 %v47
  %v303 = vunpack.c.h.b16 %v47
  %v304 = vunpack.c.l.b16 %v48
  %v305 = vunpack.c.h.b16 %v48
  %v306 = vunpack.c.l.b16 %v49
  %v307 = vunpack.c.h.b16 %v49
  %v308 = vunpack.c.l.b16 %v50
  %v309 = vunpack.c.h.b16 %v50
  %v310 = vunpack.c.l.b16 %v51
  %v311 = vunpack.c.h.b16 %v51
  %v312 = vunpack.c.l.b16 %v52
  %v313 = vunpack.c.h.b16 %v52
  %v314 = vunpack.c.l.b16 %v53
  %v315 = vunpack.c.h.b16 %v53
  %v316 = vunpack.c.l.b16 %v54
  %v317 = vunpack.c.h.b16 %v54
  %v318 = vunpack.c.l.b16 %v55
  %v319 = vunpack.c.h.b16 %v55
  %v320 = vunpack.c.l.b16 %v56
  %v321 = vunpack.c.h.b16 %v56
  %v322 = vunpack.c.l.b16 %v57
  %v323 = vunpack.c.h.b16 %v57
  %v324 = vunpack.c.l.b16 %v58
  %v325 = vunpack.c.h.b16 %v58
  %v326 = vunpack.c.l.b16 %v59
  %v327 = vunpack.c.h.b16 %v59
  %v328 = vunpack.c.l.b16 %v60
  %v329 = vunpack.c.h.b16 %v60
  %v330 = vunpack.c.l.b16 %v61
  %v331 = vunpack.c.h.b16 %v61
  %v332 = vunpack.c.l.b16 %v62
  %v333 = vunpack.c.h.b16 %v62
  %v334 = vunpack.c.l.b16 %v63
  %v335 = vunpack.c.h.b16 %v63
  %v336 = vunpack.c.l.b16 %v64
  %v337 = vunpack.c.h.b16 %v64
  %v338 = vunpack.c.l.b16 %v65
  %v339 = vunpack.c.h.b16 %v65
  %v340 = vunpack.c.l.b16 %v66
  %v341 = vunpack.c.h.b16 %v66
  %v342 = vunpack.c.l.b16 %v67
  %v343 = vunpack.c.h.b16 %v67
  %v344 = vunpack.c.l.b16 %v68
  %v345 = vunpack.c.h.b16 %v68
  %v346 = vunpack.c.l.b16 %v69
  %v347 = vunpack.c.h.b16 %v69
  %v348 = vunpack.c.l.b16 %v70
  %v349 = vunpack.c.h.b16 %v70
  %v350 = vunpack.c.l.b16 %v71
  %v351 = vunpack.c.h.b16 %v71
  %v352 = vunpack.c.l.b16 %v72
  %v353 = vunpack.c.h.b16 %v72
  %v354 = vunpack.c.l.b16 %v73
  %v355 = vunpack.c.h.b16 %v73
  %v356 = vunpack.c.l.b16 %v74
  %v357 = vunpack.c.h.b16 %v74
  %v358 = vunpack.c.l.b16 %v75
  %v359 = vunpack.c.h.b16 %v75
  %v360 = vunpack.c.l.b16 %v76
  %v361 = vunpack.c.h.b16 %v76
  %v362 = vunpack.c.l.b16 %v77
  %v363 = vunpack.c.h.b16 %v77
  %v364 = vunpack.c.l.b16 %v78
  %v365 = vunpack.c.h.b16 %v78
  %v366 = vunpack.c.l.b16 %v79
  %v367 = vunpack.c.h.b16 %v79
  %v368 = vunpack.c.l.b16 %v80
  %v369 = vunpack.c.h.b16 %v80
  %v370 = vunpack.c.l.b16 %v81
  %v371 = vunpack.c.h.b16 %v81
  %v372 = vunpack.c.l.b16 %v82
  %v373 = vunpack.c.h.b16 %v82
  %v374 = vunpack.c.l.b16 %v83
  %v375 = vunpack.c.h.b16 %v83
  %v376 = vunpack.c.l.b16 %v84
  %v377 = vunpack.c.h.b16 %v84
  %v378 = vunpack.c.l.b16 %v85
  %v379 = vunpack.c.h.b16 %v85
  %v380 = vunpack.c.l.b16 %v86
  %v381 = vunpack.c.h.b16 %v86
  %v382 = vunpack.c.l.b16 %v87
  %v383 = vunpack.c.h.b16 %v87
  %v384 = vunpack.c.l.b16 %v88
  %v385 = vunpack.c.h.b16 %v88
  %v386 = vunpack.c.l.b16 %v89
  %v387 = vunpack.c.h.b16 %v89
  %v388 = vunpack.c.l.b16 %v90
  %v389 = vunpack.c.h.b16 %v90
  %v390 = vunpack.c.l.b16 %v91
  %v391 = vunpack.c.h.b16 %v91
  %v392 = vunpack.c.l.b16 %v92
  %v393 = vunpack.c.h.b16 %v92
  %v394 = vunpack.c.l.b16 %v93
  %v395 = vunpack.c.h.b16 %v93
  %v396 = vunpack.c.l.b16 %v94
  %v397 = vunpack.c.h.b16 %v94
  %v398 = vunpack.c.l.b16 %v95
  %v399 = vunpack.c.h.b16 %v95
  %v400 = vunpack.c.l.b16 %v96
  %v401 = vunpack.c.h.b16 %v96
  %v402 = vunpack.c.l.b16 %v97
  %v403 = vunpack.c.h.b16 %v97
  %v404 = vunpack.c.l.b16 %v98
  %v405 = vunpack.c.h.b16 %v98
  %v406 = vunpack.c.l.b16 %v99
  %v407 = vunpack.c.h.b16 %v99
  %v408 = vunpack.c.l.b16 %v100
  %v409 = vunpack.c.h.b16 %v100
  %v410 = vunpack.c.l.b16 %v101
  %v411 = vunpack.c.h.b16 %v101
  %v412 = vunpack.c.l.b16 %v102
  %v413 = vunpack.c.h.b16 %v102
  %v414 = vunpack.c.l.b16 %v103
  %v415 = vunpack.c.h.b16 %v103
  %v416 = vunpack.c.l.b16 %v104
  %v417 = vunpack.c.h.b16 %v104
  %v418 = vunpack.c.l.b16 %v105
  %v419 = vunpack.c.h.b16 %v105
  %v420 = vunpack.c.l.b16 %v106
  %v421 = vunpack.c.h.b16 %v106
  %v422 = vunpack.c.l.b16 %v107
  %v423 = vunpack.c.h.b16 %v107
  %v424 = vunpack.c.l.b16 %v108
  %v425 = vunpack.c.h.b16 %v108
  %v426 = vunpack.c.l.b16 %v109
  %v427 = vunpack.c.h.b16 %v109
  %v428 = vunpack.c.l.b16 %v110
  %v429 = vunpack.c.h.b16 %v110
  %v430 = vunpack.c.l.b16 %v111
  %v431 = vunpack.c.h.b16 %v111
  %v432 = vunpack.c.l.b16 %v112
  %v433 = vunpack.c.h.b16 %v112
  %v434 = vpack.c.b16 %v244, %v242
  %v435 = vpack.c.b16 %v245, %v243
  %v436 = vpack.c.b16 %v248, %v246
  %v437 = vpack.c.b16 %v249, %v247
  %v438 = vpack.c.b16 %v252, %v250
  %v439 = vpack.c.b16 %v253, %v251
  %v440 = vpack.c.b16 %v256, %v254
  %v441 = vpack.c.b16 %v257, %v255
  %v442 = vpack.c.b16 %v260, %v258
  %v443 = vpack.c.b16 %v261, %v259
  %v444 = vpack.c.b16 %v264, %v262
  %v445 = vpack.c.b16 %v265, %v263
  %v446 = vpack.c.b16 %v268, %v266
  %v447 = vpack.c.b16 %v269, %v267
  %v448 = vpack.c.b16 %v272, %v270
  %v449 = vpack.c.b16 %v273, %v271
  %v450 = vpack.c.b16 %v276, %v274
  %v451 = vpack.c.b16 %v277, %v275
  %v452 = vpack.c.b16 %v280, %v278
  %v453 = vpack.c.b16 %v281, %v279
  %v454 = vpack.c.b16 %v284, %v282
  %v455 = vpack.c.b16 %v285, %v283
  %v456 = vpack.c.b16 %v288, %v286
  %v457 = vpack.c.b16 %v289, %v287
  %v458 = vpack.c.b16 %v292, %v290
  %v459 = vpack.c.b16 %v293, %v291
  %v460 = vpack.c.b16 %v296, %v294
  %v461 = vpack.c.b16 %v297, %v295
  %v462 = vpack.c.b16 %v300, %v298
  %v463 = vpack.c.b16 %v301, %v299
  %v464 = vpack.c.b16 %v304, %v302
  %v465 = vpack.c.b16 %v305, %v303
  %v466 = vpack.c.b16 %v308, %v306
  %v467 = vpack.c.b16 %v309, %v307
  %v468 = vpack.c.b16 %v312, %v310
  %v469 = vpack.c.b16 %v313, %v311
  %v470 = vpack.c.b16 %v316, %v314
  %v471 = vpack.c.b16 %v317, %v315
  %v472 = vpack.c.b16 %v320, %v318
  %v473 = vpack.c.b16 %v321, %v319
  %v474 = vpack.c.b16 %v324, %v322
  %v475 = vpack.c.b16 %v325, %v323
  %v476 = vpack.c.b16 %v328, %v326
  %v477 = vpack.c.b16 %v329, %v327
  %v478 = vpack.c.b16 %v332, %v330
  %v479 = vpack.c.b16 %v333, %v331
  %v480 = vpack.c.b16 %v336, %v334
  %v481 = vpack.c.b16 %v337, %v335
  %v482 = vpack.c.b16 %v340, %v338
  %v483 = vpack.c.b16 %v341, %v339
  %v484 = vpack.c.b16 %v344, %v342
  %v485 = vpack.c.b16 %v345, %v343
  %v486 = vpack.c.b16 %v348, %v346
  %v487 = vpack.c.b16 %v349, %v347
  %v488 = vpack.c.b16 %v352, %v350
  %v489 = vpack.c.b16 %v353, %v351
  %v490 = vpack.c.b16 %v356, %v354
  %v491 = vpack.c.b16 %v357, %v355
  %v492 = vpack.c.b16 %v360, %v358
  %v493 = vpack.c.b16 %v361, %v359
  %v494 = vpack.c.b16 %v364, %v362
  %v495 = vpack.c.b16 %v365, %v363
  %v496 = vpack.c.b16 %v368, %v366
  %v497 = vpack.c.b16 %v369, %v367
  %v498 = vpack.c.b16 %v372, %v370
  %v499 = vpack.c.b16 %v373, %v371
  %v500 = vpack.c.b16 %v376, %v374
  %v501 = vpack.c.b16 %v377, %v375
  %v502 = vpack.c.b16 %v380, %v378
  %v503 = vpack.c.b16 %v381, %v379
  %v504 = vpack.c.b16 %v384, %v382
  %v505 = vpack.c.b16 %v385, %v383
  %v506 = vpack.c.b16 %v388, %v386
  %v507 = vpack.c.b16 %v389, %v387
  %v508 = vpack.c.b16 %v392, %v390
  %v509 = vpack.c.b16 %v393, %v391
  %v510 = vpack.c.b16 %v396, %v394
  %v511 = vpack.c.b16 %v397, %v395
  %v512 = vpack.c.b16 %v400, %v398
  %v513 = vpack.c.b16 %v401, %v399
  %v514 = vpack.c.b16 %v404, %v402
  %v515 = vpack.c.b16 %v405, %v403
  %v516 = vpack.c.b16 %v408, %v406
  %v517 = vpack.c.b16 %v409, %v407
  %v518 = vpack.c.b16 %v412, %v410
  %v519 = vpack.c.b16 %v413, %v411
  %v520 = vpack.c.b16 %v416, %v414
  %v521 = vpack.c.b16 %v417, %v415
  %v522 = vpack.c.b16 %v420, %v418
  %v523 = vpack.c.b16 %v421, %v419
  %v524 = vpack.c.b16 %v424, %v422
  %v525 = vpack.c.b16 %v425, %v423
  %v526 = vpack.c.b16 %v428, %v426
  %v527 = vpack.c.b16 %v429, %v427
  %v528 = vpack.c.b16 %v432, %v430
  %v529 = vpack.c.b16 %v433, %v431
  %626 = vmatprep.subr.bf16.mxu0 %v449
  %627 = vmatpush1.bf16.msra.mxu0 %v448
  %628 = vmatprep.subr.bf16.mxu0 %v447
  %629 = vmatpush1.bf16.msra.mxu0 %v446
  %630 = vmatprep.subr.bf16.mxu0 %v445
  %631 = vmatpush1.bf16.msra.mxu0 %v444
  %632 = vmatprep.subr.bf16.mxu0 %v443
  %633 = vmatpush1.bf16.msra.mxu0 %v442
  %634 = vmatprep.subr.bf16.mxu0 %v441
  %635 = vmatpush1.bf16.msra.mxu0 %v440
  %636 = vmatprep.subr.bf16.mxu0 %v439
  %637 = vmatpush1.bf16.msra.mxu0 %v438
  %638 = vmatprep.subr.bf16.mxu0 %v437
  %639 = vmatpush1.bf16.msra.mxu0 %v436
  %640 = vmatprep.subr.bf16.mxu0 %v435
  %641 = vmatpush1.bf16.msra.mxu0 %v434
  %642 = vmatprep.subr.bf16.mxu0 %v465
  %643 = vmatpush2.bf16.msra.mxu0 %v464
  %644 = vmatprep.subr.bf16.mxu0 %v463
  %645 = vmatpush2.bf16.msra.mxu0 %v462
  %646 = vmatprep.subr.bf16.mxu0 %v461
  %647 = vmatpush2.bf16.msra.mxu0 %v460
  %648 = vmatprep.subr.bf16.mxu0 %v459
  %649 = vmatpush2.bf16.msra.mxu0 %v458
  %650 = vmatprep.subr.bf16.mxu0 %v457
  %651 = vmatpush2.bf16.msra.mxu0 %v456
  %652 = vmatprep.subr.bf16.mxu0 %v455
  %653 = vmatpush2.bf16.msra.mxu0 %v454
  %654 = vmatprep.subr.bf16.mxu0 %v453
  %655 = vmatpush2.bf16.msra.mxu0 %v452
  %656 = vmatprep.subr.bf16.mxu0 %v451
  %657 = vmatpush2.bf16.msra.mxu0 %v450
  %658 = vmatprep.mubr.bf16.mxu0 %v135
  %659 = vmatmul.mubr.bf16.gmra.mxu0 %v134
  %v660 = vpop.f32.mrf.mxu0
  %v661 = vadd.f32 %v118, %v660
  %v662 = vpop.f32.mrf.mxu0
  %v663 = vadd.f32 %v122, %v662
  %v664 = vpop.f32.mrf.mxu0
  %v665 = vpop.f32.mrf.mxu0
  %666 = vdwg.mxu0
  %667 = vmatprep.subr.bf16.mxu0 %v481
  %668 = vmatpush1.bf16.msra.mxu0 %v480
  %669 = vmatprep.subr.bf16.mxu0 %v479
  %670 = vmatpush1.bf16.msra.mxu0 %v478
  %671 = vmatprep.subr.bf16.mxu0 %v477
  %672 = vmatpush1.bf16.msra.mxu0 %v476
  %673 = vmatprep.subr.bf16.mxu0 %v475
  %674 = vmatpush1.bf16.msra.mxu0 %v474
  %675 = vmatprep.subr.bf16.mxu0 %v473
  %676 = vmatpush1.bf16.msra.mxu0 %v472
  %677 = vmatprep.subr.bf16.mxu0 %v471
  %678 = vmatpush1.bf16.msra.mxu0 %v470
  %679 = vmatprep.subr.bf16.mxu0 %v469
  %680 = vmatpush1.bf16.msra.mxu0 %v468
  %681 = vmatprep.subr.bf16.mxu0 %v467
  %682 = vmatpush1.bf16.msra.mxu0 %v466
  %683 = vmatprep.subr.bf16.mxu0 %v497
  %684 = vmatpush2.bf16.msra.mxu0 %v496
  %685 = vmatprep.subr.bf16.mxu0 %v495
  %686 = vmatpush2.bf16.msra.mxu0 %v494
  %687 = vmatprep.subr.bf16.mxu0 %v493
  %688 = vmatpush2.bf16.msra.mxu0 %v492
  %689 = vmatprep.subr.bf16.mxu0 %v491
  %690 = vmatpush2.bf16.msra.mxu0 %v490
  %691 = vmatprep.subr.bf16.mxu0 %v489
  %692 = vmatpush2.bf16.msra.mxu0 %v488
  %693 = vmatprep.subr.bf16.mxu0 %v487
  %694 = vmatpush2.bf16.msra.mxu0 %v486
  %695 = vmatprep.subr.bf16.mxu0 %v485
  %696 = vmatpush2.bf16.msra.mxu0 %v484
  %697 = vmatprep.subr.bf16.mxu0 %v483
  %698 = vmatpush2.bf16.msra.mxu0 %v482
  %699 = vmatprep.mubr.bf16.mxu0 %v137
  %700 = vmatmul.mubr.bf16.gmra.mxu0 %v136
  %v701 = vpop.f32.mrf.mxu0
  %v702 = vadd.f32 %v661, %v701
  %v703 = vpop.f32.mrf.mxu0
  %v704 = vadd.f32 %v663, %v703
  %v705 = vpop.f32.mrf.mxu0
  %v706 = vpop.f32.mrf.mxu0
  %707 = vdwg.mxu0
  %708 = vmatprep.subr.bf16.mxu0 %v513
  %709 = vmatpush1.bf16.msra.mxu0 %v512
  %710 = vmatprep.subr.bf16.mxu0 %v511
  %711 = vmatpush1.bf16.msra.mxu0 %v510
  %712 = vmatprep.subr.bf16.mxu0 %v509
  %713 = vmatpush1.bf16.msra.mxu0 %v508
  %714 = vmatprep.subr.bf16.mxu0 %v507
  %715 = vmatpush1.bf16.msra.mxu0 %v506
  %716 = vmatprep.subr.bf16.mxu0 %v505
  %717 = vmatpush1.bf16.msra.mxu0 %v504
  %718 = vmatprep.subr.bf16.mxu0 %v503
  %719 = vmatpush1.bf16.msra.mxu0 %v502
  %720 = vmatprep.subr.bf16.mxu0 %v501
  %721 = vmatpush1.bf16.msra.mxu0 %v500
  %722 = vmatprep.subr.bf16.mxu0 %v499
  %723 = vmatpush1.bf16.msra.mxu0 %v498
  %724 = vmatprep.subr.bf16.mxu0 %v529
  %725 = vmatpush2.bf16.msra.mxu0 %v528
  %726 = vmatprep.subr.bf16.mxu0 %v527
  %727 = vmatpush2.bf16.msra.mxu0 %v526
  %728 = vmatprep.subr.bf16.mxu0 %v525
  %729 = vmatpush2.bf16.msra.mxu0 %v524
  %730 = vmatprep.subr.bf16.mxu0 %v523
  %731 = vmatpush2.bf16.msra.mxu0 %v522
  %732 = vmatprep.subr.bf16.mxu0 %v521
  %733 = vmatpush2.bf16.msra.mxu0 %v520
  %734 = vmatprep.subr.bf16.mxu0 %v519
  %735 = vmatpush2.bf16.msra.mxu0 %v518
  %736 = vmatprep.subr.bf16.mxu0 %v517
  %737 = vmatpush2.bf16.msra.mxu0 %v516
  %738 = vmatprep.subr.bf16.mxu0 %v515
  %739 = vmatpush2.bf16.msra.mxu0 %v514
  %740 = vmatprep.mubr.bf16.mxu0 %v139
  %741 = vmatmul.mubr.bf16.gmra.mxu0 %v138
  %v742 = vpop.f32.mrf.mxu0
  %v743 = vadd.f32 %v702, %v742
  %v744 = vpop.f32.mrf.mxu0
  %v745 = vadd.f32 %v704, %v744
  %v746 = vpop.f32.mrf.mxu0
  %v747 = vpop.f32.mrf.mxu0
  %748 = vdwg.mxu0
  %v749 = vpack.c.bf16 %v743, %v743
  %v750 = vpack.c.bf16 %v745, %v745
  %v753 = vunpack.c.l.b16 %v749
  %v754 = vunpack.c.l.b16 %v750
  %v755 = vpack.c.b16 %v754, %v753
  %757 = vst [vmem:[%s3] sm:$0xff] %v755
  // Predicated region
  $region14: #{forward.12} parent=0 // pred_check
    _
  $region15: #{forward.12} parent=0 // pred_check_branch
    %759 = sbr.rel (0) target = $region17
  $region16: #{forward.12} parent=0 // pred_region
    _
  $region17: #{forward.12} parent=0 // pred_fallthru
    _
  // Predicated region
  $region18: #{forward.12} parent=0 // pred_check
    _
  $region19: #{forward.12} parent=0 // pred_check_branch
    %761 = sbr.rel (0) target = $region21
  $region20: #{forward.12} parent=0 // pred_region
    _
  $region21: #{forward.12} parent=0 // pred_fallthru
    _

// kernel: forward.17
$region0: #{forward.17}
  #allocation0 [shape = 'u32[]', space=smem, size = 0x4, offset = 0x4, fixed_abs, tag = 'smem constant byte address 0x4 - core index']
  #allocation1 [shape = 'u32[144,128]{1,0:T(1,128)}', space=vmem, size = 0x12000, scoped, tag = 'internal scratch']
  %s0 = inlined_call_operand.vmem [shape: bf16[16,512], index: 0, kind: input, shape index: {}]
  %s1 = inlined_call_operand.vmem [shape: bf16[512,256], index: 1, kind: input, shape index: {}]
  %s2 = inlined_call_operand.vmem [shape: f32[1,256], index: 2, kind: input, shape index: {}]
  %s3 = inlined_call_operand.vmem [shape: bf16[16,256], index: 3, kind: input, shape index: {}]
  %s4 = inlined_call_operand.vmem [shape: bf16[16,256], index: 4, kind: output, shape index: {}]
  %s5 = sld [smem:[#allocation0]]
  $region26: #{forward.17} parent=0
    _
  %s7 = ssub.s32 1, %s5
  %s8 = scalar_select 0, %s7, %s5
  // Predicated region
  $region2: #{forward.17} parent=0 // pred_check
    _
  $region3: #{forward.17} parent=0 // pred_check_branch
    %10 = sbr.rel (0) target = $region5
  $region4: #{forward.17} parent=0 // pred_region
    _
  $region5: #{forward.17} parent=0 // pred_fallthru
    _
  // Predicated region
  $region6: #{forward.17} parent=0 // pred_check
    _
  $region7: #{forward.17} parent=0 // pred_check_branch
    %12 = sbr.rel (0) target = $region9
  $region8: #{forward.17} parent=0 // pred_region
    _
  $region9: #{forward.17} parent=0 // pred_fallthru
    _
  // Predicated region
  $region10: #{forward.17} parent=0 // pred_check
    _
  $region11: #{forward.17} parent=0 // pred_check_branch
    %14 = sbr.rel (0) target = $region13
  $region12: #{forward.17} parent=0 // pred_region
    _
  $region13: #{forward.17} parent=0 // pred_fallthru
    _
  // Predicated region
  $region14: #{forward.17} parent=0 // pred_check
    _
  $region15: #{forward.17} parent=0 // pred_check_branch
    %16 = sbr.rel (0) target = $region17
  $region16: #{forward.17} parent=0 // pred_region
    _
  $region17: #{forward.17} parent=0 // pred_fallthru
    _
  %v17 = vld [vmem:[%s0] sm:$0xff]
  %v18 = vld [vmem:[%s0 + $0x8] sm:$0xff]
  %v19 = vld [vmem:[%s0 + $0x10] sm:$0xff]
  %v20 = vld [vmem:[%s0 + $0x18] sm:$0xff]
  %v21 = vld [vmem:[%s1] sm:$0xff]
  %v22 = vld [vmem:[%s1 + $0x8] sm:$0xff]
  %v23 = vld [vmem:[%s1 + $0x10] sm:$0xff]
  %v24 = vld [vmem:[%s1 + $0x18] sm:$0xff]
  %v25 = vld [vmem:[%s1 + $0x20] sm:$0xff]
  %v26 = vld [vmem:[%s1 + $0x28] sm:$0xff]
  %v27 = vld [vmem:[%s1 + $0x30] sm:$0xff]
  %v28 = vld [vmem:[%s1 + $0x38] sm:$0xff]
  %v29 = vld [vmem:[%s1 + $0x40] sm:$0xff]
  %v30 = vld [vmem:[%s1 + $0x48] sm:$0xff]
  %v31 = vld [vmem:[%s1 + $0x50] sm:$0xff]
  %v32 = vld [vmem:[%s1 + $0x58] sm:$0xff]
  %v33 = vld [vmem:[%s1 + $0x60] sm:$0xff]
  %v34 = vld [vmem:[%s1 + $0x68] sm:$0xff]
  %v35 = vld [vmem:[%s1 + $0x70] sm:$0xff]
  %v36 = vld [vmem:[%s1 + $0x78] sm:$0xff]
  %v37 = vld [vmem:[%s1 + $0x80] sm:$0xff]
  %v38 = vld [vmem:[%s1 + $0x88] sm:$0xff]
  %v39 = vld [vmem:[%s1 + $0x90] sm:$0xff]
  %v40 = vld [vmem:[%s1 + $0x98] sm:$0xff]
  %v41 = vld [vmem:[%s1 + $0xa0] sm:$0xff]
  %v42 = vld [vmem:[%s1 + $0xa8] sm:$0xff]
  %v43 = vld [vmem:[%s1 + $0xb0] sm:$0xff]
  %v44 = vld [vmem:[%s1 + $0xb8] sm:$0xff]
  %v45 = vld [vmem:[%s1 + $0xc0] sm:$0xff]
  %v46 = vld [vmem:[%s1 + $0xc8] sm:$0xff]
  %v47 = vld [vmem:[%s1 + $0xd0] sm:$0xff]
  %v48 = vld [vmem:[%s1 + $0xd8] sm:$0xff]
  %v49 = vld [vmem:[%s1 + $0xe0] sm:$0xff]
  %v50 = vld [vmem:[%s1 + $0xe8] sm:$0xff]
  %v51 = vld [vmem:[%s1 + $0xf0] sm:$0xff]
  %v52 = vld [vmem:[%s1 + $0xf8] sm:$0xff]
  %v53 = vld [vmem:[%s1 + $0x100] sm:$0xff]
  %v54 = vld [vmem:[%s1 + $0x108] sm:$0xff]
  %v55 = vld [vmem:[%s1 + $0x110] sm:$0xff]
  %v56 = vld [vmem:[%s1 + $0x118] sm:$0xff]
  %v57 = vld [vmem:[%s1 + $0x120] sm:$0xff]
  %v58 = vld [vmem:[%s1 + $0x128] sm:$0xff]
  %v59 = vld [vmem:[%s1 + $0x130] sm:$0xff]
  %v60 = vld [vmem:[%s1 + $0x138] sm:$0xff]
  %v61 = vld [vmem:[%s1 + $0x140] sm:$0xff]
  %v62 = vld [vmem:[%s1 + $0x148] sm:$0xff]
  %v63 = vld [vmem:[%s1 + $0x150] sm:$0xff]
  %v64 = vld [vmem:[%s1 + $0x158] sm:$0xff]
  %v65 = vld [vmem:[%s1 + $0x160] sm:$0xff]
  %v66 = vld [vmem:[%s1 + $0x168] sm:$0xff]
  %v67 = vld [vmem:[%s1 + $0x170] sm:$0xff]
  %v68 = vld [vmem:[%s1 + $0x178] sm:$0xff]
  %v69 = vld [vmem:[%s1 + $0x180] sm:$0xff]
  %v70 = vld [vmem:[%s1 + $0x188] sm:$0xff]
  %v71 = vld [vmem:[%s1 + $0x190] sm:$0xff]
  %v72 = vld [vmem:[%s1 + $0x198] sm:$0xff]
  %v73 = vld [vmem:[%s1 + $0x1a0] sm:$0xff]
  %v74 = vld [vmem:[%s1 + $0x1a8] sm:$0xff]
  %v75 = vld [vmem:[%s1 + $0x1b0] sm:$0xff]
  %v76 = vld [vmem:[%s1 + $0x1b8] sm:$0xff]
  %v77 = vld [vmem:[%s1 + $0x1c0] sm:$0xff]
  %v78 = vld [vmem:[%s1 + $0x1c8] sm:$0xff]
  %v79 = vld [vmem:[%s1 + $0x1d0] sm:$0xff]
  %v80 = vld [vmem:[%s1 + $0x1d8] sm:$0xff]
  %v81 = vld [vmem:[%s1 + $0x1e0] sm:$0xff]
  %v82 = vld [vmem:[%s1 + $0x1e8] sm:$0xff]
  %v83 = vld [vmem:[%s1 + $0x1f0] sm:$0xff]
  %v84 = vld [vmem:[%s1 + $0x1f8] sm:$0xff]
  %v85 = vld [vmem:[%s2] sm:$0x3]
  %v87 = vlaneseq
  %v88 = vshrl.u32 %v87, 7
  %v89 = vsub.s32 0, %v88
  %v90 = vrot.slane %v85, %v89
  %v91 = vlaneseq
  %v92 = vshrl.u32 %v91, 7
  %v93 = vsub.s32 1, %v92
  %v94 = vrot.slane %v85, %v93
  %v101 = vunpack.c.l.b16 %v17
  %v102 = vunpack.c.h.b16 %v17
  %v103 = vunpack.c.l.b16 %v18
  %v104 = vunpack.c.h.b16 %v18
  %v105 = vunpack.c.l.b16 %v19
  %v106 = vunpack.c.h.b16 %v19
  %v107 = vunpack.c.l.b16 %v20
  %v108 = vunpack.c.h.b16 %v20
  %v109 = vpack.c.b16 %v105, %v101
  %v110 = vpack.c.b16 %v106, %v102
  %v111 = vpack.c.b16 %v107, %v103
  %v112 = vpack.c.b16 %v108, %v104
  %v181 = vunpack.c.l.b16 %v21
  %v182 = vunpack.c.h.b16 %v21
  %v183 = vunpack.c.l.b16 %v22
  %v184 = vunpack.c.h.b16 %v22
  %v185 = vunpack.c.l.b16 %v23
  %v186 = vunpack.c.h.b16 %v23
  %v187 = vunpack.c.l.b16 %v24
  %v188 = vunpack.c.h.b16 %v24
  %v189 = vunpack.c.l.b16 %v25
  %v190 = vunpack.c.h.b16 %v25
  %v191 = vunpack.c.l.b16 %v26
  %v192 = vunpack.c.h.b16 %v26
  %v193 = vunpack.c.l.b16 %v27
  %v194 = vunpack.c.h.b16 %v27
  %v195 = vunpack.c.l.b16 %v28
  %v196 = vunpack.c.h.b16 %v28
  %v197 = vunpack.c.l.b16 %v29
  %v198 = vunpack.c.h.b16 %v29
  %v199 = vunpack.c.l.b16 %v30
  %v200 = vunpack.c.h.b16 %v30
  %v201 = vunpack.c.l.b16 %v31
  %v202 = vunpack.c.h.b16 %v31
  %v203 = vunpack.c.l.b16 %v32
  %v204 = vunpack.c.h.b16 %v32
  %v205 = vunpack.c.l.b16 %v33
  %v206 = vunpack.c.h.b16 %v33
  %v207 = vunpack.c.l.b16 %v34
  %v208 = vunpack.c.h.b16 %v34
  %v209 = vunpack.c.l.b16 %v35
  %v210 = vunpack.c.h.b16 %v35
  %v211 = vunpack.c.l.b16 %v36
  %v212 = vunpack.c.h.b16 %v36
  %v213 = vunpack.c.l.b16 %v37
  %v214 = vunpack.c.h.b16 %v37
  %v215 = vunpack.c.l.b16 %v38
  %v216 = vunpack.c.h.b16 %v38
  %v217 = vunpack.c.l.b16 %v39
  %v218 = vunpack.c.h.b16 %v39
  %v219 = vunpack.c.l.b16 %v40
  %v220 = vunpack.c.h.b16 %v40
  %v221 = vunpack.c.l.b16 %v41
  %v222 = vunpack.c.h.b16 %v41
  %v223 = vunpack.c.l.b16 %v42
  %v224 = vunpack.c.h.b16 %v42
  %v225 = vunpack.c.l.b16 %v43
  %v226 = vunpack.c.h.b16 %v43
  %v227 = vunpack.c.l.b16 %v44
  %v228 = vunpack.c.h.b16 %v44
  %v229 = vunpack.c.l.b16 %v45
  %v230 = vunpack.c.h.b16 %v45
  %v231 = vunpack.c.l.b16 %v46
  %v232 = vunpack.c.h.b16 %v46
  %v233 = vunpack.c.l.b16 %v47
  %v234 = vunpack.c.h.b16 %v47
  %v235 = vunpack.c.l.b16 %v48
  %v236 = vunpack.c.h.b16 %v48
  %v237 = vunpack.c.l.b16 %v49
  %v238 = vunpack.c.h.b16 %v49
  %v239 = vunpack.c.l.b16 %v50
  %v240 = vunpack.c.h.b16 %v50
  %v241 = vunpack.c.l.b16 %v51
  %v242 = vunpack.c.h.b16 %v51
  %v243 = vunpack.c.l.b16 %v52
  %v244 = vunpack.c.h.b16 %v52
  %v245 = vunpack.c.l.b16 %v53
  %v246 = vunpack.c.h.b16 %v53
  %v247 = vunpack.c.l.b16 %v54
  %v248 = vunpack.c.h.b16 %v54
  %v249 = vunpack.c.l.b16 %v55
  %v250 = vunpack.c.h.b16 %v55
  %v251 = vunpack.c.l.b16 %v56
  %v252 = vunpack.c.h.b16 %v56
  %v253 = vunpack.c.l.b16 %v57
  %v254 = vunpack.c.h.b16 %v57
  %v255 = vunpack.c.l.b16 %v58
  %v256 = vunpack.c.h.b16 %v58
  %v257 = vunpack.c.l.b16 %v59
  %v258 = vunpack.c.h.b16 %v59
  %v259 = vunpack.c.l.b16 %v60
  %v260 = vunpack.c.h.b16 %v60
  %v261 = vunpack.c.l.b16 %v61
  %v262 = vunpack.c.h.b16 %v61
  %v263 = vunpack.c.l.b16 %v62
  %v264 = vunpack.c.h.b16 %v62
  %v265 = vunpack.c.l.b16 %v63
  %v266 = vunpack.c.h.b16 %v63
  %v267 = vunpack.c.l.b16 %v64
  %v268 = vunpack.c.h.b16 %v64
  %v269 = vunpack.c.l.b16 %v65
  %v270 = vunpack.c.h.b16 %v65
  %v271 = vunpack.c.l.b16 %v66
  %v272 = vunpack.c.h.b16 %v66
  %v273 = vunpack.c.l.b16 %v67
  %v274 = vunpack.c.h.b16 %v67
  %v275 = vunpack.c.l.b16 %v68
  %v276 = vunpack.c.h.b16 %v68
  %v277 = vunpack.c.l.b16 %v69
  %v278 = vunpack.c.h.b16 %v69
  %v279 = vunpack.c.l.b16 %v70
  %v280 = vunpack.c.h.b16 %v70
  %v281 = vunpack.c.l.b16 %v71
  %v282 = vunpack.c.h.b16 %v71
  %v283 = vunpack.c.l.b16 %v72
  %v284 = vunpack.c.h.b16 %v72
  %v285 = vunpack.c.l.b16 %v73
  %v286 = vunpack.c.h.b16 %v73
  %v287 = vunpack.c.l.b16 %v74
  %v288 = vunpack.c.h.b16 %v74
  %v289 = vunpack.c.l.b16 %v75
  %v290 = vunpack.c.h.b16 %v75
  %v291 = vunpack.c.l.b16 %v76
  %v292 = vunpack.c.h.b16 %v76
  %v293 = vunpack.c.l.b16 %v77
  %v294 = vunpack.c.h.b16 %v77
  %v295 = vunpack.c.l.b16 %v78
  %v296 = vunpack.c.h.b16 %v78
  %v297 = vunpack.c.l.b16 %v79
  %v298 = vunpack.c.h.b16 %v79
  %v299 = vunpack.c.l.b16 %v80
  %v300 = vunpack.c.h.b16 %v80
  %v301 = vunpack.c.l.b16 %v81
  %v302 = vunpack.c.h.b16 %v81
  %v303 = vunpack.c.l.b16 %v82
  %v304 = vunpack.c.h.b16 %v82
  %v305 = vunpack.c.l.b16 %v83
  %v306 = vunpack.c.h.b16 %v83
  %v307 = vunpack.c.l.b16 %v84
  %v308 = vunpack.c.h.b16 %v84
  %v309 = vpack.c.b16 %v183, %v181
  %v310 = vpack.c.b16 %v184, %v182
  %v311 = vpack.c.b16 %v187, %v185
  %v312 = vpack.c.b16 %v188, %v186
  %v313 = vpack.c.b16 %v191, %v189
  %v314 = vpack.c.b16 %v192, %v190
  %v315 = vpack.c.b16 %v195, %v193
  %v316 = vpack.c.b16 %v196, %v194
  %v317 = vpack.c.b16 %v199, %v197
  %v318 = vpack.c.b16 %v200, %v198
  %v319 = vpack.c.b16 %v203, %v201
  %v320 = vpack.c.b16 %v204, %v202
  %v321 = vpack.c.b16 %v207, %v205
  %v322 = vpack.c.b16 %v208, %v206
  %v323 = vpack.c.b16 %v211, %v209
  %v324 = vpack.c.b16 %v212, %v210
  %v325 = vpack.c.b16 %v215, %v213
  %v326 = vpack.c.b16 %v216, %v214
  %v327 = vpack.c.b16 %v219, %v217
  %v328 = vpack.c.b16 %v220, %v218
  %v329 = vpack.c.b16 %v223, %v221
  %v330 = vpack.c.b16 %v224, %v222
  %v331 = vpack.c.b16 %v227, %v225
  %v332 = vpack.c.b16 %v228, %v226
  %v333 = vpack.c.b16 %v231, %v229
  %v334 = vpack.c.b16 %v232, %v230
  %v335 = vpack.c.b16 %v235, %v233
  %v336 = vpack.c.b16 %v236, %v234
  %v337 = vpack.c.b16 %v239, %v237
  %v338 = vpack.c.b16 %v240, %v238
  %v339 = vpack.c.b16 %v243, %v241
  %v340 = vpack.c.b16 %v244, %v242
  %v341 = vpack.c.b16 %v247, %v245
  %v342 = vpack.c.b16 %v248, %v246
  %v343 = vpack.c.b16 %v251, %v249
  %v344 = vpack.c.b16 %v252, %v250
  %v345 = vpack.c.b16 %v255, %v253
  %v346 = vpack.c.b16 %v256, %v254
  %v347 = vpack.c.b16 %v259, %v257
  %v348 = vpack.c.b16 %v260, %v258
  %v349 = vpack.c.b16 %v263, %v261
  %v350 = vpack.c.b16 %v264, %v262
  %v351 = vpack.c.b16 %v267, %v265
  %v352 = vpack.c.b16 %v268, %v266
  %v353 = vpack.c.b16 %v271, %v269
  %v354 = vpack.c.b16 %v272, %v270
  %v355 = vpack.c.b16 %v275, %v273
  %v356 = vpack.c.b16 %v276, %v274
  %v357 = vpack.c.b16 %v279, %v277
  %v358 = vpack.c.b16 %v280, %v278
  %v359 = vpack.c.b16 %v283, %v281
  %v360 = vpack.c.b16 %v284, %v282
  %v361 = vpack.c.b16 %v287, %v285
  %v362 = vpack.c.b16 %v288, %v286
  %v363 = vpack.c.b16 %v291, %v289
  %v364 = vpack.c.b16 %v292, %v290
  %v365 = vpack.c.b16 %v295, %v293
  %v366 = vpack.c.b16 %v296, %v294
  %v367 = vpack.c.b16 %v299, %v297
  %v368 = vpack.c.b16 %v300, %v298
  %v369 = vpack.c.b16 %v303, %v301
  %v370 = vpack.c.b16 %v304, %v302
  %v371 = vpack.c.b16 %v307, %v305
  %v372 = vpack.c.b16 %v308, %v306
  %437 = vmatprep.subr.bf16.mxu0 %v324
  %438 = vmatpush1.bf16.msra.mxu0 %v323
  %439 = vmatprep.subr.bf16.mxu0 %v322
  %440 = vmatpush1.bf16.msra.mxu0 %v321
  %441 = vmatprep.subr.bf16.mxu0 %v320
  %442 = vmatpush1.bf16.msra.mxu0 %v319
  %443 = vmatprep.subr.bf16.mxu0 %v318
  %444 = vmatpush1.bf16.msra.mxu0 %v317
  %445 = vmatprep.subr.bf16.mxu0 %v316
  %446 = vmatpush1.bf16.msra.mxu0 %v315
  %447 = vmatprep.subr.bf16.mxu0 %v314
  %448 = vmatpush1.bf16.msra.mxu0 %v313
  %449 = vmatprep.subr.bf16.mxu0 %v312
  %450 = vmatpush1.bf16.msra.mxu0 %v311
  %451 = vmatprep.subr.bf16.mxu0 %v310
  %452 = vmatpush1.bf16.msra.mxu0 %v309
  %453 = vmatprep.subr.bf16.mxu0 %v340
  %454 = vmatpush2.bf16.msra.mxu0 %v339
  %455 = vmatprep.subr.bf16.mxu0 %v338
  %456 = vmatpush2.bf16.msra.mxu0 %v337
  %457 = vmatprep.subr.bf16.mxu0 %v336
  %458 = vmatpush2.bf16.msra.mxu0 %v335
  %459 = vmatprep.subr.bf16.mxu0 %v334
  %460 = vmatpush2.bf16.msra.mxu0 %v333
  %461 = vmatprep.subr.bf16.mxu0 %v332
  %462 = vmatpush2.bf16.msra.mxu0 %v331
  %463 = vmatprep.subr.bf16.mxu0 %v330
  %464 = vmatpush2.bf16.msra.mxu0 %v329
  %465 = vmatprep.subr.bf16.mxu0 %v328
  %466 = vmatpush2.bf16.msra.mxu0 %v327
  %467 = vmatprep.subr.bf16.mxu0 %v326
  %468 = vmatpush2.bf16.msra.mxu0 %v325
  %469 = vmatprep.mubr.bf16.mxu0 %v110
  %470 = vmatmul.mubr.bf16.gmra.mxu0 %v109
  %v471 = vpop.f32.mrf.mxu0
  %v472 = vadd.f32 %v90, %v471
  %v473 = vpop.f32.mrf.mxu0
  %v474 = vadd.f32 %v94, %v473
  %v475 = vpop.f32.mrf.mxu0
  %v476 = vadd.f32 %v90, %v475
  %v477 = vpop.f32.mrf.mxu0
  %v478 = vadd.f32 %v94, %v477
  %479 = vdwg.mxu0
  %480 = vmatprep.subr.bf16.mxu0 %v356
  %481 = vmatpush1.bf16.msra.mxu0 %v355
  %482 = vmatprep.subr.bf16.mxu0 %v354
  %483 = vmatpush1.bf16.msra.mxu0 %v353
  %484 = vmatprep.subr.bf16.mxu0 %v352
  %485 = vmatpush1.bf16.msra.mxu0 %v351
  %486 = vmatprep.subr.bf16.mxu0 %v350
  %487 = vmatpush1.bf16.msra.mxu0 %v349
  %488 = vmatprep.subr.bf16.mxu0 %v348
  %489 = vmatpush1.bf16.msra.mxu0 %v347
  %490 = vmatprep.subr.bf16.mxu0 %v346
  %491 = vmatpush1.bf16.msra.mxu0 %v345
  %492 = vmatprep.subr.bf16.mxu0 %v344
  %493 = vmatpush1.bf16.msra.mxu0 %v343
  %494 = vmatprep.subr.bf16.mxu0 %v342
  %495 = vmatpush1.bf16.msra.mxu0 %v341
  %496 = vmatprep.subr.bf16.mxu0 %v372
  %497 = vmatpush2.bf16.msra.mxu0 %v371
  %498 = vmatprep.subr.bf16.mxu0 %v370
  %499 = vmatpush2.bf16.msra.mxu0 %v369
  %500 = vmatprep.subr.bf16.mxu0 %v368
  %501 = vmatpush2.bf16.msra.mxu0 %v367
  %502 = vmatprep.subr.bf16.mxu0 %v366
  %503 = vmatpush2.bf16.msra.mxu0 %v365
  %504 = vmatprep.subr.bf16.mxu0 %v364
  %505 = vmatpush2.bf16.msra.mxu0 %v363
  %506 = vmatprep.subr.bf16.mxu0 %v362
  %507 = vmatpush2.bf16.msra.mxu0 %v361
  %508 = vmatprep.subr.bf16.mxu0 %v360
  %509 = vmatpush2.bf16.msra.mxu0 %v359
  %510 = vmatprep.subr.bf16.mxu0 %v358
  %511 = vmatpush2.bf16.msra.mxu0 %v357
  %512 = vmatprep.mubr.bf16.mxu0 %v112
  %513 = vmatmul.mubr.bf16.gmra.mxu0 %v111
  %v514 = vpop.f32.mrf.mxu0
  %v515 = vadd.f32 %v472, %v514
  %v516 = vpop.f32.mrf.mxu0
  %v517 = vadd.f32 %v474, %v516
  %v518 = vpop.f32.mrf.mxu0
  %v519 = vadd.f32 %v476, %v518
  %v520 = vpop.f32.mrf.mxu0
  %v521 = vadd.f32 %v478, %v520
  %522 = vdwg.mxu0
  %v523 = vld [vmem:[%s3] sm:$0xff]
  %v524 = vld [vmem:[%s3 + $0x8] sm:$0xff]
  %v525 = vunpack.c.l.bf16 %v523
  %v526 = vunpack.c.h.bf16 %v523
  %v527 = vunpack.c.l.bf16 %v524
  %v528 = vunpack.c.h.bf16 %v524
  %v529 = vadd.f32 %v515, %v525
  %v530 = vadd.f32 %v517, %v526
  %v531 = vadd.f32 %v519, %v527
  %v532 = vadd.f32 %v521, %v528
  %v533 = vpack.c.bf16 %v531, %v529
  %v534 = vpack.c.bf16 %v532, %v530
  %v537 = vunpack.c.l.b16 %v533
  %v538 = vunpack.c.l.b16 %v534
  %v539 = vunpack.c.h.b16 %v533
  %v540 = vunpack.c.h.b16 %v534
  %v541 = vpack.c.b16 %v538, %v537
  %v542 = vpack.c.b16 %v540, %v539
  %545 = vst [vmem:[%s4] sm:$0xff] %v541
  %546 = vst [vmem:[%s4 + $0x8] sm:$0xff] %v542
  // Predicated region
  $region18: #{forward.17} parent=0 // pred_check
    _
  $region19: #{forward.17} parent=0 // pred_check_branch
    %548 = sbr.rel (0) target = $region21
  $region20: #{forward.17} parent=0 // pred_region
    _
  $region21: #{forward.17} parent=0 // pred_fallthru
    _
  // Predicated region
  $region22: #{forward.17} parent=0 // pred_check
    _
  $region23: #{forward.17} parent=0 // pred_check_branch
    %550 = sbr.rel (0) target = $region25
  $region24: #{forward.17} parent=0 // pred_region
    _
  $region25: #{forward.17} parent=0 // pred_fallthru
    _

// kernel: forward.16
$region0: #{forward.16}
  #allocation0 [shape = 'u32[]', space=smem, size = 0x4, offset = 0x4, fixed_abs, tag = 'smem constant byte address 0x4 - core index']
  #allocation1 [shape = 'u32[144,128]{1,0:T(1,128)}', space=vmem, size = 0x12000, scoped, tag = 'internal scratch']
  %s0 = inlined_call_operand.vmem [shape: bf16[16,256], index: 0, kind: input, shape index: {}]
  %s1 = inlined_call_operand.vmem [shape: bf16[256,512], index: 1, kind: input, shape index: {}]
  %s2 = inlined_call_operand.vmem [shape: f32[1,512], index: 2, kind: input, shape index: {}]
  %s3 = inlined_call_operand.vmem [shape: f32[1,256], index: 3, kind: input, shape index: {}]
  %s4 = inlined_call_operand.vmem [shape: f32[1,256], index: 4, kind: input, shape index: {}]
  %s5 = inlined_call_operand.vmem [shape: bf16[16,512], index: 5, kind: output, shape index: {}]
  %s6 = sld [smem:[#allocation0]]
  $region30: #{forward.16} parent=0
    _
  %s8 = ssub.s32 1, %s6
  %s9 = scalar_select 0, %s8, %s6
  // Predicated region
  $region2: #{forward.16} parent=0 // pred_check
    _
  $region3: #{forward.16} parent=0 // pred_check_branch
    %11 = sbr.rel (0) target = $region5
  $region4: #{forward.16} parent=0 // pred_region
    _
  $region5: #{forward.16} parent=0 // pred_fallthru
    _
  // Predicated region
  $region6: #{forward.16} parent=0 // pred_check
    _
  $region7: #{forward.16} parent=0 // pred_check_branch
    %13 = sbr.rel (0) target = $region9
  $region8: #{forward.16} parent=0 // pred_region
    _
  $region9: #{forward.16} parent=0 // pred_fallthru
    _
  // Predicated region
  $region10: #{forward.16} parent=0 // pred_check
    _
  $region11: #{forward.16} parent=0 // pred_check_branch
    %15 = sbr.rel (0) target = $region13
  $region12: #{forward.16} parent=0 // pred_region
    _
  $region13: #{forward.16} parent=0 // pred_fallthru
    _
  // Predicated region
  $region14: #{forward.16} parent=0 // pred_check
    _
  $region15: #{forward.16} parent=0 // pred_check_branch
    %17 = sbr.rel (0) target = $region17
  $region16: #{forward.16} parent=0 // pred_region
    _
  $region17: #{forward.16} parent=0 // pred_fallthru
    _
  // Predicated region
  $region18: #{forward.16} parent=0 // pred_check
    _
  $region19: #{forward.16} parent=0 // pred_check_branch
    %19 = sbr.rel (0) target = $region21
  $region20: #{forward.16} parent=0 // pred_region
    _
  $region21: #{forward.16} parent=0 // pred_fallthru
    _
  %v20 = vld [vmem:[%s0] sm:$0xff]
  %v21 = vld [vmem:[%s0 + $0x8] sm:$0xff]
  %v22 = vunpack.c.l.bf16 %v20
  %v23 = vunpack.c.h.bf16 %v20
  %v24 = vunpack.c.l.bf16 %v21
  %v25 = vunpack.c.h.bf16 %v21
  %v26 = vadd.f32 %v22, %v23
  %27 = vadd.xlane.f32.xlu0 %v26
  %v28 = vpop.xlane.xlu0 %27
  %v29 = vadd.f32 %v24, %v25
  %30 = vadd.xlane.f32.xlu0 %v29
  %v31 = vpop.xlane.xlu0 %30
  %v32 = vrcp.pop 256.0
  %v33 = vmul.f32 %v28, %v32
  %v34 = vmul.f32 %v31, %v32
  %v35 = vsub.f32 %v22, %v33
  %v36 = vsub.f32 %v23, %v33
  %v37 = vsub.f32 %v24, %v34
  %v38 = vsub.f32 %v25, %v34
  %v39 = vmul.f32 %v35, %v35
  %v40 = vmul.f32 %v36, %v36
  %v41 = vmul.f32 %v37, %v37
  %v42 = vmul.f32 %v38, %v38
  %v43 = vadd.f32 %v39, %v40
  %44 = vadd.xlane.f32.xlu0 %v43
  %v45 = vpop.xlane.xlu0 %44
  %v46 = vadd.f32 %v41, %v42
  %47 = vadd.xlane.f32.xlu0 %v46
  %v48 = vpop.xlane.xlu0 %47
  %v49 = vmul.f32 %v45, %v32
  %v50 = vmul.f32 %v48, %v32
  %v51 = vadd.f32 %v49, 1e-06
  %v52 = vadd.f32 %v50, 1e-06
  %v53 = vrsqrt.pop %v51
  %v54 = vrsqrt.pop %v52
  %v55 = vmul.f32 %v35, %v53
  %v56 = vmul.f32 %v36, %v53
  %v57 = vmul.f32 %v37, %v54
  %v58 = vmul.f32 %v38, %v54
  %v59 = vld [vmem:[%s3] sm:$0x3]
  %v61 = vlaneseq
  %v62 = vshrl.u32 %v61, 7
  %v63 = vsub.s32 0, %v62
  %v64 = vrot.slane %v59, %v63
  %v65 = vlaneseq
  %v66 = vshrl.u32 %v65, 7
  %v67 = vsub.s32 1, %v66
  %v68 = vrot.slane %v59, %v67
  %v71 = vmul.f32 %v55, %v64
  %v72 = vmul.f32 %v56, %v68
  %v73 = vmul.f32 %v57, %v64
  %v74 = vmul.f32 %v58, %v68
  %v75 = vld [vmem:[%s4] sm:$0x3]
  %v77 = vlaneseq
  %v78 = vshrl.u32 %v77, 7
  %v79 = vsub.s32 0, %v78
  %v80 = vrot.slane %v75, %v79
  %v81 = vlaneseq
  %v82 = vshrl.u32 %v81, 7
  %v83 = vsub.s32 1, %v82
  %v84 = vrot.slane %v75, %v83
  %v87 = vadd.f32 %v71, %v80
  %v88 = vadd.f32 %v72, %v84
  %v89 = vadd.f32 %v73, %v80
  %v90 = vadd.f32 %v74, %v84
  %v91 = vpack.c.bf16 %v89, %v87
  %v92 = vpack.c.bf16 %v90, %v88
  %v93 = vld [vmem:[%s1] sm:$0xff]
  %v94 = vld [vmem:[%s1 + $0x8] sm:$0xff]
  %v95 = vld [vmem:[%s1 + $0x10] sm:$0xff]
  %v96 = vld [vmem:[%s1 + $0x18] sm:$0xff]
  %v97 = vld [vmem:[%s1 + $0x20] sm:$0xff]
  %v98 = vld [vmem:[%s1 + $0x28] sm:$0xff]
  %v99 = vld [vmem:[%s1 + $0x30] sm:$0xff]
  %v100 = vld [vmem:[%s1 + $0x38] sm:$0xff]
  %v101 = vld [vmem:[%s1 + $0x40] sm:$0xff]
  %v102 = vld [vmem:[%s1 + $0x48] sm:$0xff]
  %v103 = vld [vmem:[%s1 + $0x50] sm:$0xff]
  %v104 = vld [vmem:[%s1 + $0x58] sm:$0xff]
  %v105 = vld [vmem:[%s1 + $0x60] sm:$0xff]
  %v106 = vld [vmem:[%s1 + $0x68] sm:$0xff]
  %v107 = vld [vmem:[%s1 + $0x70] sm:$0xff]
  %v108 = vld [vmem:[%s1 + $0x78] sm:$0xff]
  %v109 = vld [vmem:[%s1 + $0x80] sm:$0xff]
  %v110 = vld [vmem:[%s1 + $0x88] sm:$0xff]
  %v111 = vld [vmem:[%s1 + $0x90] sm:$0xff]
  %v112 = vld [vmem:[%s1 + $0x98] sm:$0xff]
  %v113 = vld [vmem:[%s1 + $0xa0] sm:$0xff]
  %v114 = vld [vmem:[%s1 + $0xa8] sm:$0xff]
  %v115 = vld [vmem:[%s1 + $0xb0] sm:$0xff]
  %v116 = vld [vmem:[%s1 + $0xb8] sm:$0xff]
  %v117 = vld [vmem:[%s1 + $0xc0] sm:$0xff]
  %v118 = vld [vmem:[%s1 + $0xc8] sm:$0xff]
  %v119 = vld [vmem:[%s1 + $0xd0] sm:$0xff]
  %v120 = vld [vmem:[%s1 + $0xd8] sm:$0xff]
  %v121 = vld [vmem:[%s1 + $0xe0] sm:$0xff]
  %v122 = vld [vmem:[%s1 + $0xe8] sm:$0xff]
  %v123 = vld [vmem:[%s1 + $0xf0] sm:$0xff]
  %v124 = vld [vmem:[%s1 + $0xf8] sm:$0xff]
  %v125 = vld [vmem:[%s1 + $0x100] sm:$0xff]
  %v126 = vld [vmem:[%s1 + $0x108] sm:$0xff]
  %v127 = vld [vmem:[%s1 + $0x110] sm:$0xff]
  %v128 = vld [vmem:[%s1 + $0x118] sm:$0xff]
  %v129 = vld [vmem:[%s1 + $0x120] sm:$0xff]
  %v130 = vld [vmem:[%s1 + $0x128] sm:$0xff]
  %v131 = vld [vmem:[%s1 + $0x130] sm:$0xff]
  %v132 = vld [vmem:[%s1 + $0x138] sm:$0xff]
  %v133 = vld [vmem:[%s1 + $0x140] sm:$0xff]
  %v134 = vld [vmem:[%s1 + $0x148] sm:$0xff]
  %v135 = vld [vmem:[%s1 + $0x150] sm:$0xff]
  %v136 = vld [vmem:[%s1 + $0x158] sm:$0xff]
  %v137 = vld [vmem:[%s1 + $0x160] sm:$0xff]
  %v138 = vld [vmem:[%s1 + $0x168] sm:$0xff]
  %v139 = vld [vmem:[%s1 + $0x170] sm:$0xff]
  %v140 = vld [vmem:[%s1 + $0x178] sm:$0xff]
  %v141 = vld [vmem:[%s1 + $0x180] sm:$0xff]
  %v142 = vld [vmem:[%s1 + $0x188] sm:$0xff]
  %v143 = vld [vmem:[%s1 + $0x190] sm:$0xff]
  %v144 = vld [vmem:[%s1 + $0x198] sm:$0xff]
  %v145 = vld [vmem:[%s1 + $0x1a0] sm:$0xff]
  %v146 = vld [vmem:[%s1 + $0x1a8] sm:$0xff]
  %v147 = vld [vmem:[%s1 + $0x1b0] sm:$0xff]
  %v148 = vld [vmem:[%s1 + $0x1b8] sm:$0xff]
  %v149 = vld [vmem:[%s1 + $0x1c0] sm:$0xff]
  %v150 = vld [vmem:[%s1 + $0x1c8] sm:$0xff]
  %v151 = vld [vmem:[%s1 + $0x1d0] sm:$0xff]
  %v152 = vld [vmem:[%s1 + $0x1d8] sm:$0xff]
  %v153 = vld [vmem:[%s1 + $0x1e0] sm:$0xff]
  %v154 = vld [vmem:[%s1 + $0x1e8] sm:$0xff]
  %v155 = vld [vmem:[%s1 + $0x1f0] sm:$0xff]
  %v156 = vld [vmem:[%s1 + $0x1f8] sm:$0xff]
  %v157 = vld [vmem:[%s2] sm:$0xf]
  %v159 = vlaneseq
  %v160 = vshrl.u32 %v159, 7
  %v161 = vsub.s32 0, %v160
  %v162 = vrot.slane %v157, %v161
  %v163 = vlaneseq
  %v164 = vshrl.u32 %v163, 7
  %v165 = vsub.s32 1, %v164
  %v166 = vrot.slane %v157, %v165
  %v167 = vlaneseq
  %v168 = vshrl.u32 %v167, 7
  %v169 = vsub.s32 2, %v168
  %v170 = vrot.slane %v157, %v169
  %v171 = vlaneseq
  %v172 = vshrl.u32 %v171, 7
  %v173 = vsub.s32 3, %v172
  %v174 = vrot.slane %v157, %v173
  %v243 = vunpack.c.l.b16 %v93
  %v244 = vunpack.c.h.b16 %v93
  %v245 = vunpack.c.l.b16 %v94
  %v246 = vunpack.c.h.b16 %v94
  %v247 = vunpack.c.l.b16 %v95
  %v248 = vunpack.c.h.b16 %v95
  %v249 = vunpack.c.l.b16 %v96
  %v250 = vunpack.c.h.b16 %v96
  %v251 = vunpack.c.l.b16 %v97
  %v252 = vunpack.c.h.b16 %v97
  %v253 = vunpack.c.l.b16 %v98
  %v254 = vunpack.c.h.b16 %v98
  %v255 = vunpack.c.l.b16 %v99
  %v256 = vunpack.c.h.b16 %v99
  %v257 = vunpack.c.l.b16 %v100
  %v258 = vunpack.c.h.b16 %v100
  %v259 = vunpack.c.l.b16 %v101
  %v260 = vunpack.c.h.b16 %v101
  %v261 = vunpack.c.l.b16 %v102
  %v262 = vunpack.c.h.b16 %v102
  %v263 = vunpack.c.l.b16 %v103
  %v264 = vunpack.c.h.b16 %v103
  %v265 = vunpack.c.l.b16 %v104
  %v266 = vunpack.c.h.b16 %v104
  %v267 = vunpack.c.l.b16 %v105
  %v268 = vunpack.c.h.b16 %v105
  %v269 = vunpack.c.l.b16 %v106
  %v270 = vunpack.c.h.b16 %v106
  %v271 = vunpack.c.l.b16 %v107
  %v272 = vunpack.c.h.b16 %v107
  %v273 = vunpack.c.l.b16 %v108
  %v274 = vunpack.c.h.b16 %v108
  %v275 = vunpack.c.l.b16 %v109
  %v276 = vunpack.c.h.b16 %v109
  %v277 = vunpack.c.l.b16 %v110
  %v278 = vunpack.c.h.b16 %v110
  %v279 = vunpack.c.l.b16 %v111
  %v280 = vunpack.c.h.b16 %v111
  %v281 = vunpack.c.l.b16 %v112
  %v282 = vunpack.c.h.b16 %v112
  %v283 = vunpack.c.l.b16 %v113
  %v284 = vunpack.c.h.b16 %v113
  %v285 = vunpack.c.l.b16 %v114
  %v286 = vunpack.c.h.b16 %v114
  %v287 = vunpack.c.l.b16 %v115
  %v288 = vunpack.c.h.b16 %v115
  %v289 = vunpack.c.l.b16 %v116
  %v290 = vunpack.c.h.b16 %v116
  %v291 = vunpack.c.l.b16 %v117
  %v292 = vunpack.c.h.b16 %v117
  %v293 = vunpack.c.l.b16 %v118
  %v294 = vunpack.c.h.b16 %v118
  %v295 = vunpack.c.l.b16 %v119
  %v296 = vunpack.c.h.b16 %v119
  %v297 = vunpack.c.l.b16 %v120
  %v298 = vunpack.c.h.b16 %v120
  %v299 = vunpack.c.l.b16 %v121
  %v300 = vunpack.c.h.b16 %v121
  %v301 = vunpack.c.l.b16 %v122
  %v302 = vunpack.c.h.b16 %v122
  %v303 = vunpack.c.l.b16 %v123
  %v304 = vunpack.c.h.b16 %v123
  %v305 = vunpack.c.l.b16 %v124
  %v306 = vunpack.c.h.b16 %v124
  %v307 = vunpack.c.l.b16 %v125
  %v308 = vunpack.c.h.b16 %v125
  %v309 = vunpack.c.l.b16 %v126
  %v310 = vunpack.c.h.b16 %v126
  %v311 = vunpack.c.l.b16 %v127
  %v312 = vunpack.c.h.b16 %v127
  %v313 = vunpack.c.l.b16 %v128
  %v314 = vunpack.c.h.b16 %v128
  %v315 = vunpack.c.l.b16 %v129
  %v316 = vunpack.c.h.b16 %v129
  %v317 = vunpack.c.l.b16 %v130
  %v318 = vunpack.c.h.b16 %v130
  %v319 = vunpack.c.l.b16 %v131
  %v320 = vunpack.c.h.b16 %v131
  %v321 = vunpack.c.l.b16 %v132
  %v322 = vunpack.c.h.b16 %v132
  %v323 = vunpack.c.l.b16 %v133
  %v324 = vunpack.c.h.b16 %v133
  %v325 = vunpack.c.l.b16 %v134
  %v326 = vunpack.c.h.b16 %v134
  %v327 = vunpack.c.l.b16 %v135
  %v328 = vunpack.c.h.b16 %v135
  %v329 = vunpack.c.l.b16 %v136
  %v330 = vunpack.c.h.b16 %v136
  %v331 = vunpack.c.l.b16 %v137
  %v332 = vunpack.c.h.b16 %v137
  %v333 = vunpack.c.l.b16 %v138
  %v334 = vunpack.c.h.b16 %v138
  %v335 = vunpack.c.l.b16 %v139
  %v336 = vunpack.c.h.b16 %v139
  %v337 = vunpack.c.l.b16 %v140
  %v338 = vunpack.c.h.b16 %v140
  %v339 = vunpack.c.l.b16 %v141
  %v340 = vunpack.c.h.b16 %v141
  %v341 = vunpack.c.l.b16 %v142
  %v342 = vunpack.c.h.b16 %v142
  %v343 = vunpack.c.l.b16 %v143
  %v344 = vunpack.c.h.b16 %v143
  %v345 = vunpack.c.l.b16 %v144
  %v346 = vunpack.c.h.b16 %v144
  %v347 = vunpack.c.l.b16 %v145
  %v348 = vunpack.c.h.b16 %v145
  %v349 = vunpack.c.l.b16 %v146
  %v350 = vunpack.c.h.b16 %v146
  %v351 = vunpack.c.l.b16 %v147
  %v352 = vunpack.c.h.b16 %v147
  %v353 = vunpack.c.l.b16 %v148
  %v354 = vunpack.c.h.b16 %v148
  %v355 = vunpack.c.l.b16 %v149
  %v356 = vunpack.c.h.b16 %v149
  %v357 = vunpack.c.l.b16 %v150
  %v358 = vunpack.c.h.b16 %v150
  %v359 = vunpack.c.l.b16 %v151
  %v360 = vunpack.c.h.b16 %v151
  %v361 = vunpack.c.l.b16 %v152
  %v362 = vunpack.c.h.b16 %v152
  %v363 = vunpack.c.l.b16 %v153
  %v364 = vunpack.c.h.b16 %v153
  %v365 = vunpack.c.l.b16 %v154
  %v366 = vunpack.c.h.b16 %v154
  %v367 = vunpack.c.l.b16 %v155
  %v368 = vunpack.c.h.b16 %v155
  %v369 = vunpack.c.l.b16 %v156
  %v370 = vunpack.c.h.b16 %v156
  %v371 = vpack.c.b16 %v247, %v243
  %v372 = vpack.c.b16 %v248, %v244
  %v373 = vpack.c.b16 %v249, %v245
  %v374 = vpack.c.b16 %v250, %v246
  %v375 = vpack.c.b16 %v255, %v251
  %v376 = vpack.c.b16 %v256, %v252
  %v377 = vpack.c.b16 %v257, %v253
  %v378 = vpack.c.b16 %v258, %v254
  %v379 = vpack.c.b16 %v263, %v259
  %v380 = vpack.c.b16 %v264, %v260
  %v381 = vpack.c.b16 %v265, %v261
  %v382 = vpack.c.b16 %v266, %v262
  %v383 = vpack.c.b16 %v271, %v267
  %v384 = vpack.c.b16 %v272, %v268
  %v385 = vpack.c.b16 %v273, %v269
  %v386 = vpack.c.b16 %v274, %v270
  %v387 = vpack.c.b16 %v279, %v275
  %v388 = vpack.c.b16 %v280, %v276
  %v389 = vpack.c.b16 %v281, %v277
  %v390 = vpack.c.b16 %v282, %v278
  %v391 = vpack.c.b16 %v287, %v283
  %v392 = vpack.c.b16 %v288, %v284
  %v393 = vpack.c.b16 %v289, %v285
  %v394 = vpack.c.b16 %v290, %v286
  %v395 = vpack.c.b16 %v295, %v291
  %v396 = vpack.c.b16 %v296, %v292
  %v397 = vpack.c.b16 %v297, %v293
  %v398 = vpack.c.b16 %v298, %v294
  %v399 = vpack.c.b16 %v303, %v299
  %v400 = vpack.c.b16 %v304, %v300
  %v401 = vpack.c.b16 %v305, %v301
  %v402 = vpack.c.b16 %v306, %v302
  %v403 = vpack.c.b16 %v311, %v307
  %v404 = vpack.c.b16 %v312, %v308
  %v405 = vpack.c.b16 %v313, %v309
  %v406 = vpack.c.b16 %v314, %v310
  %v407 = vpack.c.b16 %v319, %v315
  %v408 = vpack.c.b16 %v320, %v316
  %v409 = vpack.c.b16 %v321, %v317
  %v410 = vpack.c.b16 %v322, %v318
  %v411 = vpack.c.b16 %v327, %v323
  %v412 = vpack.c.b16 %v328, %v324
  %v413 = vpack.c.b16 %v329, %v325
  %v414 = vpack.c.b16 %v330, %v326
  %v415 = vpack.c.b16 %v335, %v331
  %v416 = vpack.c.b16 %v336, %v332
  %v417 = vpack.c.b16 %v337, %v333
  %v418 = vpack.c.b16 %v338, %v334
  %v419 = vpack.c.b16 %v343, %v339
  %v420 = vpack.c.b16 %v344, %v340
  %v421 = vpack.c.b16 %v345, %v341
  %v422 = vpack.c.b16 %v346, %v342
  %v423 = vpack.c.b16 %v351, %v347
  %v424 = vpack.c.b16 %v352, %v348
  %v425 = vpack.c.b16 %v353, %v349
  %v426 = vpack.c.b16 %v354, %v350
  %v427 = vpack.c.b16 %v359, %v355
  %v428 = vpack.c.b16 %v360, %v356
  %v429 = vpack.c.b16 %v361, %v357
  %v430 = vpack.c.b16 %v362, %v358
  %v431 = vpack.c.b16 %v367, %v363
  %v432 = vpack.c.b16 %v368, %v364
  %v433 = vpack.c.b16 %v369, %v365
  %v434 = vpack.c.b16 %v370, %v366
  %499 = vmatprep.subr.bf16.mxu0 %v400
  %500 = vmatpush1.bf16.msra.mxu0 %v399
  %501 = vmatprep.subr.bf16.mxu0 %v396
  %502 = vmatpush1.bf16.msra.mxu0 %v395
  %503 = vmatprep.subr.bf16.mxu0 %v392
  %504 = vmatpush1.bf16.msra.mxu0 %v391
  %505 = vmatprep.subr.bf16.mxu0 %v388
  %506 = vmatpush1.bf16.msra.mxu0 %v387
  %507 = vmatprep.subr.bf16.mxu0 %v384
  %508 = vmatpush1.bf16.msra.mxu0 %v383
  %509 = vmatprep.subr.bf16.mxu0 %v380
  %510 = vmatpush1.bf16.msra.mxu0 %v379
  %511 = vmatprep.subr.bf16.mxu0 %v376
  %512 = vmatpush1.bf16.msra.mxu0 %v375
  %513 = vmatprep.subr.bf16.mxu0 %v372
  %514 = vmatpush1.bf16.msra.mxu0 %v371
  %515 = vmatprep.subr.bf16.mxu0 %v432
  %516 = vmatpush2.bf16.msra.mxu0 %v431
  %517 = vmatprep.subr.bf16.mxu0 %v428
  %518 = vmatpush2.bf16.msra.mxu0 %v427
  %519 = vmatprep.subr.bf16.mxu0 %v424
  %520 = vmatpush2.bf16.msra.mxu0 %v423
  %521 = vmatprep.subr.bf16.mxu0 %v420
  %522 = vmatpush2.bf16.msra.mxu0 %v419
  %523 = vmatprep.subr.bf16.mxu0 %v416
  %524 = vmatpush2.bf16.msra.mxu0 %v415
  %525 = vmatprep.subr.bf16.mxu0 %v412
  %526 = vmatpush2.bf16.msra.mxu0 %v411
  %527 = vmatprep.subr.bf16.mxu0 %v408
  %528 = vmatpush2.bf16.msra.mxu0 %v407
  %529 = vmatprep.subr.bf16.mxu0 %v404
  %530 = vmatpush2.bf16.msra.mxu0 %v403
  %531 = vmatprep.mubr.bf16.mxu0 %v92
  %532 = vmatmul.mubr.bf16.gmra.mxu0 %v91
  %v533 = vpop.f32.mrf.mxu0
  %v534 = vadd.f32 %v162, %v533
  %v535 = vpop.f32.mrf.mxu0
  %v536 = vadd.f32 %v166, %v535
  %v537 = vpop.f32.mrf.mxu0
  %v538 = vadd.f32 %v162, %v537
  %v539 = vpop.f32.mrf.mxu0
  %v540 = vadd.f32 %v166, %v539
  %541 = vdwg.mxu0
  %542 = vmatprep.subr.bf16.mxu0 %v402
  %543 = vmatpush1.bf16.msra.mxu0 %v401
  %544 = vmatprep.subr.bf16.mxu0 %v398
  %545 = vmatpush1.bf16.msra.mxu0 %v397
  %546 = vmatprep.subr.bf16.mxu0 %v394
  %547 = vmatpush1.bf16.msra.mxu0 %v393
  %548 = vmatprep.subr.bf16.mxu0 %v390
  %549 = vmatpush1.bf16.msra.mxu0 %v389
  %550 = vmatprep.subr.bf16.mxu0 %v386
  %551 = vmatpush1.bf16.msra.mxu0 %v385
  %552 = vmatprep.subr.bf16.mxu0 %v382
  %553 = vmatpush1.bf16.msra.mxu0 %v381
  %554 = vmatprep.subr.bf16.mxu0 %v378
  %555 = vmatpush1.bf16.msra.mxu0 %v377
  %556 = vmatprep.subr.bf16.mxu0 %v374
  %557 = vmatpush1.bf16.msra.mxu0 %v373
  %558 = vmatprep.subr.bf16.mxu0 %v434
  %559 = vmatpush2.bf16.msra.mxu0 %v433
  %560 = vmatprep.subr.bf16.mxu0 %v430
  %561 = vmatpush2.bf16.msra.mxu0 %v429
  %562 = vmatprep.subr.bf16.mxu0 %v426
  %563 = vmatpush2.bf16.msra.mxu0 %v425
  %564 = vmatprep.subr.bf16.mxu0 %v422
  %565 = vmatpush2.bf16.msra.mxu0 %v421
  %566 = vmatprep.subr.bf16.mxu0 %v418
  %567 = vmatpush2.bf16.msra.mxu0 %v417
  %568 = vmatprep.subr.bf16.mxu0 %v414
  %569 = vmatpush2.bf16.msra.mxu0 %v413
  %570 = vmatprep.subr.bf16.mxu0 %v410
  %571 = vmatpush2.bf16.msra.mxu0 %v409
  %572 = vmatprep.subr.bf16.mxu0 %v406
  %573 = vmatpush2.bf16.msra.mxu0 %v405
  %574 = vmatprep.mubr.bf16.mxu0 %v92
  %575 = vmatmul.mubr.bf16.gmra.mxu0 %v91
  %v576 = vpop.f32.mrf.mxu0
  %v577 = vadd.f32 %v170, %v576
  %v578 = vpop.f32.mrf.mxu0
  %v579 = vadd.f32 %v174, %v578
  %v580 = vpop.f32.mrf.mxu0
  %v581 = vadd.f32 %v170, %v580
  %v582 = vpop.f32.mrf.mxu0
  %v583 = vadd.f32 %v174, %v582
  %584 = vdwg.mxu0
  %v585 = vmul.f32 %v534, 0.5
  %v586 = vmul.f32 %v536, 0.5
  %v587 = vmul.f32 %v577, 0.5
  %v588 = vmul.f32 %v579, 0.5
  %v589 = vmul.f32 %v538, 0.5
  %v590 = vmul.f32 %v540, 0.5
  %v591 = vmul.f32 %v581, 0.5
  %v592 = vmul.f32 %v583, 0.5
  %v593 = vmul.f32 %v534, 0.70710677
  %v594 = vmul.f32 %v536, 0.70710677
  %v595 = vmul.f32 %v577, 0.70710677
  %v596 = vmul.f32 %v579, 0.70710677
  %v597 = vmul.f32 %v538, 0.70710677
  %v598 = vmul.f32 %v540, 0.70710677
  %v599 = vmul.f32 %v581, 0.70710677
  %v600 = vmul.f32 %v583, 0.70710677
  %v601 = verf.f32.pop %v593
  %v602 = verf.f32.pop %v594
  %v603 = verf.f32.pop %v595
  %v604 = verf.f32.pop %v596
  %v605 = verf.f32.pop %v597
  %v606 = verf.f32.pop %v598
  %v607 = verf.f32.pop %v599
  %v608 = verf.f32.pop %v600
  %v609 = vadd.f32 %v601, 1.0
  %v610 = vadd.f32 %v602, 1.0
  %v611 = vadd.f32 %v603, 1.0
  %v612 = vadd.f32 %v604, 1.0
  %v613 = vadd.f32 %v605, 1.0
  %v614 = vadd.f32 %v606, 1.0
  %v615 = vadd.f32 %v607, 1.0
  %v616 = vadd.f32 %v608, 1.0
  %v617 = vmul.f32 %v585, %v609
  %v618 = vmul.f32 %v586, %v610
  %v619 = vmul.f32 %v587, %v611
  %v620 = vmul.f32 %v588, %v612
  %v621 = vmul.f32 %v589, %v613
  %v622 = vmul.f32 %v590, %v614
  %v623 = vmul.f32 %v591, %v615
  %v624 = vmul.f32 %v592, %v616
  %v625 = vpack.c.bf16 %v621, %v617
  %v626 = vpack.c.bf16 %v622, %v618
  %v627 = vpack.c.bf16 %v623, %v619
  %v628 = vpack.c.bf16 %v624, %v620
  %v633 = vunpack.c.l.b16 %v625
  %v634 = vunpack.c.l.b16 %v626
  %v635 = vunpack.c.l.b16 %v627
  %v636 = vunpack.c.l.b16 %v628
  %v637 = vunpack.c.h.b16 %v625
  %v638 = vunpack.c.h.b16 %v626
  %v639 = vunpack.c.h.b16 %v627
  %v640 = vunpack.c.h.b16 %v628
  %v641 = vpack.c.b16 %v634, %v633
  %v642 = vpack.c.b16 %v636, %v635
  %v643 = vpack.c.b16 %v638, %v637
  %v644 = vpack.c.b16 %v640, %v639
  %649 = vst [vmem:[%s5] sm:$0xff] %v641
  %650 = vst [vmem:[%s5 + $0x8] sm:$0xff] %v642
  %651 = vst [vmem:[%s5 + $0x10] sm:$0xff] %v643
  %652 = vst [vmem:[%s5 + $0x18] sm:$0xff] %v644
  // Predicated region
  $region22: #{forward.16} parent=0 // pred_check
    _
  $region23: #{forward.16} parent=0 // pred_check_branch
    %654 = sbr.rel (0) target = $region25
  $region24: #{forward.16} parent=0 // pred_region
    _
  $region25: #{forward.16} parent=0 // pred_fallthru
    _
  // Predicated region
  $region26: #{forward.16} parent=0 // pred_check
    _
  $region27: #{forward.16} parent=0 // pred_check_branch
    %656 = sbr.rel (0) target = $region29
  $region28: #{forward.16} parent=0 // pred_region
    _
  $region29: #{forward.16} parent=0 // pred_fallthru
    _

// kernel: forward.23
$region0: #{forward.23}
  #allocation0 [shape = 'u32[]', space=smem, size = 0x4, offset = 0x4, fixed_abs, tag = 'smem constant byte address 0x4 - core index']
  #allocation1 [shape = 'u32[144,128]{1,0:T(1,128)}', space=vmem, size = 0x12000, scoped, tag = 'internal scratch']
  %s0 = inlined_call_operand.vmem [shape: bf16[2,256], index: 0, kind: input, shape index: {}]
  %s1 = inlined_call_operand.vmem [shape: bf16[256,128], index: 1, kind: input, shape index: {}]
  %s2 = inlined_call_operand.vmem [shape: f32[1,128], index: 2, kind: input, shape index: {}]
  %s3 = inlined_call_operand.vmem [shape: f32[1,256], index: 3, kind: input, shape index: {}]
  %s4 = inlined_call_operand.vmem [shape: f32[1,256], index: 4, kind: input, shape index: {}]
  %s5 = inlined_call_operand.hbm [shape: f32[2,128], index: 5, kind: output, shape index: {}]
  %s6 = sld [smem:[#allocation0]]
  $region30: #{forward.23} parent=0
    _
  %s8 = ssub.s32 1, %s6
  %s9 = scalar_select 0, %s8, %s6
  $region1: #{forward.23} parent=0
    #allocation2 [shape = 'u8[1024]{0}', space=vmem, size = 0x400, scoped, tag = 'output window, operand 0, single buffered']
    #allocation3 [shape = 's32[1]{0}', space=sflag, size = 0x4, scoped, tag = 'scoped memory for forward.23']
    %10 = vsyncpa [#allocation3], 0
    // Predicated region
    $region2: #{forward.23} parent=1 // pred_check
      _
    $region3: #{forward.23} parent=1 // pred_check_branch
      %12 = sbr.rel (0) target = $region5
    $region4: #{forward.23} parent=1 // pred_region
      _
    $region5: #{forward.23} parent=1 // pred_fallthru
      _
    // Predicated region
    $region6: #{forward.23} parent=1 // pred_check
      _
    $region7: #{forward.23} parent=1 // pred_check_branch
      %14 = sbr.rel (0) target = $region9
    $region8: #{forward.23} parent=1 // pred_region
      _
    $region9: #{forward.23} parent=1 // pred_fallthru
      _
    // Predicated region
    $region10: #{forward.23} parent=1 // pred_check
      _
    $region11: #{forward.23} parent=1 // pred_check_branch
      %16 = sbr.rel (0) target = $region13
    $region12: #{forward.23} parent=1 // pred_region
      _
    $region13: #{forward.23} parent=1 // pred_fallthru
      _
    // Predicated region
    $region14: #{forward.23} parent=1 // pred_check
      _
    $region15: #{forward.23} parent=1 // pred_check_branch
      %18 = sbr.rel (0) target = $region17
    $region16: #{forward.23} parent=1 // pred_region
      _
    $region17: #{forward.23} parent=1 // pred_fallthru
      _
    // Predicated region
    $region18: #{forward.23} parent=1 // pred_check
      _
    $region19: #{forward.23} parent=1 // pred_check_branch
      %20 = sbr.rel (0) target = $region21
    $region20: #{forward.23} parent=1 // pred_region
      _
    $region21: #{forward.23} parent=1 // pred_fallthru
      _
    %v22 = vld [vmem:[%s0] sm:$0x3]
    %v23 = vunpack.c.l.bf16 %v22
    %v26 = vunpack.c.l.s4 1983009808
    %v27 = vunpack.c.0.s8 %v26
    %v28 = vlaneseq
    %v29 = vshrl.u32 %v28, 7
    %v30 = vsub.s32 %v27, %v29
    %v31 = vrot.slane %v23, %v30
    %v32 = vcombine.high %v31, %v31
    %vm35 = vcmask 1041408
    %v36 = vsel %vm35, %v31, 0.0
    %v37 = vsel %vm35, %v32, 0.0
    %v38 = vadd.f32 %v36, %v37
    %39 = vadd.xlane.f32.xlu0 %v38
    %v40 = vpop.xlane.xlu0 %39
    %v41 = vrcp.pop 256.0
    %v42 = vmul.f32 %v40, %v41
    %v45 = vunpack.c.l.s4 269488144
    %v46 = vunpack.c.0.s8 %v45
    %v47 = vlaneseq
    %v48 = vshrl.u32 %v47, 7
    %v49 = vsub.s32 %v46, %v48
    %v50 = vrot.slane %v42, %v49
    %v52 = vsub.f32 %v23, %v50
    %v53 = vmul.f32 %v52, %v52
    %v56 = vunpack.c.l.s4 1983009808
    %v57 = vunpack.c.0.s8 %v56
    %v58 = vlaneseq
    %v59 = vshrl.u32 %v58, 7
    %v60 = vsub.s32 %v57, %v59
    %v61 = vrot.slane %v53, %v60
    %v62 = vcombine.high %v61, %v61
    %v65 = vsel %vm35, %v61, 0.0
    %v66 = vsel %vm35, %v62, 0.0
    %v67 = vadd.f32 %v65, %v66
    %68 = vadd.xlane.f32.xlu0 %v67
    %v69 = vpop.xlane.xlu0 %68
    %v70 = vmul.f32 %v69, %v41
    %v71 = vadd.f32 %v70, 1e-06
    %v72 = vrsqrt.pop %v71
    %v75 = vunpack.c.l.s4 269488144
    %v76 = vunpack.c.0.s8 %v75
    %v77 = vlaneseq
    %v78 = vshrl.u32 %v77, 7
    %v79 = vsub.s32 %v76, %v78
    %v80 = vrot.slane %v72, %v79
    %v82 = vmul.f32 %v52, %v80
    %v83 = vld [vmem:[%s3] sm:$0x3]
    %v85 = vlaneseq
    %v86 = vshrl.u32 %v85, 7
    %v87 = vsub.s32 0, %v86
    %v88 = vrot.slane %v83, %v87
    %v89 = vlaneseq
    %v90 = vshrl.u32 %v89, 7
    %v91 = vsub.s32 1, %v90
    %v92 = vrot.slane %v83, %v91
    %v93 = vcombine.low %v88, %v92
    %v95 = vunpack.c.l.s4 1983009808
    %v96 = vunpack.c.0.s8 %v95
    %v97 = vlaneseq
    %v98 = vshrl.u32 %v97, 7
    %v99 = vsub.s32 %v96, %v98
    %v100 = vrot.slane %v93, %v99
    %v102 = vmul.f32 %v82, %v100
    %v103 = vld [vmem:[%s4] sm:$0x3]
    %v105 = vlaneseq
    %v106 = vshrl.u32 %v105, 7
    %v107 = vsub.s32 0, %v106
    %v108 = vrot.slane %v103, %v107
    %v109 = vlaneseq
    %v110 = vshrl.u32 %v109, 7
    %v111 = vsub.s32 1, %v110
    %v112 = vrot.slane %v103, %v111
    %v113 = vcombine.low %v108, %v112
    %v115 = vunpack.c.l.s4 1983009808
    %v116 = vunpack.c.0.s8 %v115
    %v117 = vlaneseq
    %v118 = vshrl.u32 %v117, 7
    %v119 = vsub.s32 %v116, %v118
    %v120 = vrot.slane %v113, %v119
    %v122 = vadd.f32 %v102, %v120
    %v125 = vunpack.c.l.s4 1983009808
    %v126 = vunpack.c.0.s8 %v125
    %v127 = vlaneseq
    %v128 = vshrl.u32 %v127, 7
    %v129 = vsub.s32 %v126, %v128
    %v130 = vrot.slane %v122, %v129
    %v131 = vcombine.high %v130, %v130
    %v134 = vpack.c.bf16 %v130, %v130
    %v135 = vpack.c.bf16 %v131, %v131
    %v136 = vld [vmem:[%s1] sm:$0xf]
    %v137 = vld [vmem:[%s1 + $0x4] sm:$0xf]
    %v138 = vld [vmem:[%s1 + $0x8] sm:$0xf]
    %v139 = vld [vmem:[%s1 + $0xc] sm:$0xf]
    %v140 = vld [vmem:[%s1 + $0x10] sm:$0xf]
    %v141 = vld [vmem:[%s1 + $0x14] sm:$0xf]
    %v142 = vld [vmem:[%s1 + $0x18] sm:$0xf]
    %v143 = vld [vmem:[%s1 + $0x1c] sm:$0xf]
    %v144 = vld [vmem:[%s1 + $0x20] sm:$0xf]
    %v145 = vld [vmem:[%s1 + $0x24] sm:$0xf]
    %v146 = vld [vmem:[%s1 + $0x28] sm:$0xf]
    %v147 = vld [vmem:[%s1 + $0x2c] sm:$0xf]
    %v148 = vld [vmem:[%s1 + $0x30] sm:$0xf]
    %v149 = vld [vmem:[%s1 + $0x34] sm:$0xf]
    %v150 = vld [vmem:[%s1 + $0x38] sm:$0xf]
    %v151 = vld [vmem:[%s1 + $0x3c] sm:$0xf]
    %v152 = vld [vmem:[%s1 + $0x40] sm:$0xf]
    %v153 = vld [vmem:[%s1 + $0x44] sm:$0xf]
    %v154 = vld [vmem:[%s1 + $0x48] sm:$0xf]
    %v155 = vld [vmem:[%s1 + $0x4c] sm:$0xf]
    %v156 = vld [vmem:[%s1 + $0x50] sm:$0xf]
    %v157 = vld [vmem:[%s1 + $0x54] sm:$0xf]
    %v158 = vld [vmem:[%s1 + $0x58] sm:$0xf]
    %v159 = vld [vmem:[%s1 + $0x5c] sm:$0xf]
    %v160 = vld [vmem:[%s1 + $0x60] sm:$0xf]
    %v161 = vld [vmem:[%s1 + $0x64] sm:$0xf]
    %v162 = vld [vmem:[%s1 + $0x68] sm:$0xf]
    %v163 = vld [vmem:[%s1 + $0x6c] sm:$0xf]
    %v164 = vld [vmem:[%s1 + $0x70] sm:$0xf]
    %v165 = vld [vmem:[%s1 + $0x74] sm:$0xf]
    %v166 = vld [vmem:[%s1 + $0x78] sm:$0xf]
    %v167 = vld [vmem:[%s1 + $0x7c] sm:$0xf]
    %v168 = vld [vmem:[%s2] sm:$0x1]
    %v170 = vlaneseq
    %v171 = vshrl.u32 %v170, 7
    %v172 = vsub.s32 0, %v171
    %v173 = vrot.slane %v168, %v172
    %v207 = vunpack.c.l.b16 %v136
    %v208 = vunpack.c.l.b16 %v137
    %v209 = vunpack.c.l.b16 %v138
    %v210 = vunpack.c.l.b16 %v139
    %v211 = vunpack.c.l.b16 %v140
    %v212 = vunpack.c.l.b16 %v141
    %v213 = vunpack.c.l.b16 %v142
    %v214 = vunpack.c.l.b16 %v143
    %v215 = vunpack.c.l.b16 %v144
    %v216 = vunpack.c.l.b16 %v145
    %v217 = vunpack.c.l.b16 %v146
    %v218 = vunpack.c.l.b16 %v147
    %v219 = vunpack.c.l.b16 %v148
    %v220 = vunpack.c.l.b16 %v149
    %v221 = vunpack.c.l.b16 %v150
    %v222 = vunpack.c.l.b16 %v151
    %v223 = vunpack.c.l.b16 %v152
    %v224 = vunpack.c.l.b16 %v153
    %v225 = vunpack.c.l.b16 %v154
    %v226 = vunpack.c.l.b16 %v155
    %v227 = vunpack.c.l.b16 %v156
    %v228 = vunpack.c.l.b16 %v157
    %v229 = vunpack.c.l.b16 %v158
    %v230 = vunpack.c.l.b16 %v159
    %v231 = vunpack.c.l.b16 %v160
    %v232 = vunpack.c.l.b16 %v161
    %v233 = vunpack.c.l.b16 %v162
    %v234 = vunpack.c.l.b16 %v163
    %v235 = vunpack.c.l.b16 %v164
    %v236 = vunpack.c.l.b16 %v165
    %v237 = vunpack.c.l.b16 %v166
    %v238 = vunpack.c.l.b16 %v167
    %v239 = vpack.c.b16 %v208, %v207
    %v240 = vpack.c.b16 %v210, %v209
    %v241 = vpack.c.b16 %v212, %v211
    %v242 = vpack.c.b16 %v214, %v213
    %v243 = vpack.c.b16 %v216, %v215
    %v244 = vpack.c.b16 %v218, %v217
    %v245 = vpack.c.b16 %v220, %v219
    %v246 = vpack.c.b16 %v222, %v221
    %v247 = vpack.c.b16 %v224, %v223
    %v248 = vpack.c.b16 %v226, %v225
    %v249 = vpack.c.b16 %v228, %v227
    %v250 = vpack.c.b16 %v230, %v229
    %v251 = vpack.c.b16 %v232, %v231
    %v252 = vpack.c.b16 %v234, %v233
    %v253 = vpack.c.b16 %v236, %v235
    %v254 = vpack.c.b16 %v238, %v237
    %271 = vmatprep.subr.bf16.mxu0 0
    %272 = vmatpush1.bf16.msra.mxu0 %v246
    %273 = vmatprep.subr.bf16.mxu0 0
    %274 = vmatpush1.bf16.msra.mxu0 %v245
    %275 = vmatprep.subr.bf16.mxu0 0
    %276 = vmatpush1.bf16.msra.mxu0 %v244
    %277 = vmatprep.subr.bf16.mxu0 0
    %278 = vmatpush1.bf16.msra.mxu0 %v243
    %279 = vmatprep.subr.bf16.mxu0 0
    %280 = vmatpush1.bf16.msra.mxu0 %v242
    %281 = vmatprep.subr.bf16.mxu0 0
    %282 = vmatpush1.bf16.msra.mxu0 %v241
    %283 = vmatprep.subr.bf16.mxu0 0
    %284 = vmatpush1.bf16.msra.mxu0 %v240
    %285 = vmatprep.subr.bf16.mxu0 0
    %286 = vmatpush1.bf16.msra.mxu0 %v239
    %287 = vmatprep.subr.bf16.mxu0 0
    %288 = vmatpush2.bf16.msra.mxu0 %v254
    %289 = vmatprep.subr.bf16.mxu0 0
    %290 = vmatpush2.bf16.msra.mxu0 %v253
    %291 = vmatprep.subr.bf16.mxu0 0
    %292 = vmatpush2.bf16.msra.mxu0 %v252
    %293 = vmatprep.subr.bf16.mxu0 0
    %294 = vmatpush2.bf16.msra.mxu0 %v251
    %295 = vmatprep.subr.bf16.mxu0 0
    %296 = vmatpush2.bf16.msra.mxu0 %v250
    %297 = vmatprep.subr.bf16.mxu0 0
    %298 = vmatpush2.bf16.msra.mxu0 %v249
    %299 = vmatprep.subr.bf16.mxu0 0
    %300 = vmatpush2.bf16.msra.mxu0 %v248
    %301 = vmatprep.subr.bf16.mxu0 0
    %302 = vmatpush2.bf16.msra.mxu0 %v247
    %303 = vmatprep.mubr.bf16.mxu0 %v135
    %304 = vmatmul.mubr.bf16.gmra.mxu0 %v134
    %v305 = vpop.f32.mrf.mxu0
    %v306 = vadd.f32 %v173, %v305
    %v307 = vpop.f32.mrf.mxu0
    %v308 = vpop.f32.mrf.mxu0
    %v309 = vpop.f32.mrf.mxu0
    %310 = vdwg.mxu0
    %v311 = vsel %vm35, %v306, -inf
    %312 = vmax.xlane.f32.xlu0 %v311
    %v313 = vpop.xlane.xlu0 %312
    %v314 = vsub.f32 %v306, %v313
    %v315 = vmul.f32 %v314, 1.442695
    %v316 = vpow.pop %v315
    %v317 = vsel %vm35, %v316, 0.0
    %318 = vadd.xlane.f32.xlu0 %v317
    %v319 = vpop.xlane.xlu0 %318
    %v320 = vlog2.pop %v319
    %v321 = vmul.f32 %v320, 0.6931472
    %v322 = vsub.f32 %v314, %v321
    %323 = vst [vmem:[#allocation2] sm:$0x3] %v322
    // Predicated region
    $region22: #{forward.23} parent=1 // pred_check
      _
    $region23: #{forward.23} parent=1 // pred_check_branch
      %325 = sbr.rel (0) target = $region25
    $region24: #{forward.23} parent=1 // pred_region
      %s327 = ssub.s32 32, 32
      %328 = vsyncadd [#allocation3], %s327
      %s330 = sshll.u32 [#allocation2], 4
      %s331 = int_to_ptr.vmem [resolvable:$true] %s330
      %333 = dma.vmem_to_hbm [thread:$0]  %s331, 32, %s5, [#allocation3]
    $region25: #{forward.23} parent=1 // pred_fallthru
      _
    // Predicated region
    $region26: #{forward.23} parent=1 // pred_check
      _
    $region27: #{forward.23} parent=1 // pred_check_branch
      %335 = sbr.rel (0) target = $region29
    $region28: #{forward.23} parent=1 // pred_region
      %336 = dma.done [#allocation3], 32
    $region29: #{forward.23} parent=1 // pred_fallthru
      _
    %337 = vsyncpa [#allocation3], 1

</llo_original>
